<compile_context>
chip_gen: v7x
topology: tpu7x:2x2x1
jax: 0.10.0
libtpu: 0.0.40
codegen_flags: <defaults>
</compile_context>

<pallas_src>
import jax
import jax.numpy as jnp
import numpy as np
from jax.experimental import pallas as pl
from jax.experimental.pallas import tpu as pltpu

NUM_KERNEL = 64
IN_CHANNELS = 30
K1, K2, K3, K4 = 5, 5, 3, 3


def _round_up(x, m):
    return ((x + m - 1) // m) * m


# ---------------------------------------------------------------------------
# Kernel helpers (traced inside the Pallas kernel body)
# ---------------------------------------------------------------------------
def _conv1_im2col_relu(xcols, w_ref, b_ref):
    """Layer 1.  xcols: (L, TB, K*Cin) f32 (im2col built in the wrapper).
    w_ref: (K*Cin, Cout) bf16.  b_ref: (1, Cout) f32.  One MXU push."""
    L, TB, kcin = xcols.shape
    cout = b_ref.shape[-1]
    z = jnp.dot(xcols.reshape(L * TB, kcin).astype(jnp.bfloat16), w_ref[...],
                preferred_element_type=jnp.float32)              # (L*TB, Cout)
    return jnp.maximum(z + b_ref[...], 0.0).reshape(L, TB, cout)


def _conv_relu_stacked(h, w_ref, b_ref):
    """Layers 2-4.  h: (L, TB, Cin) f32.  w_ref: (Cin, K*Cout) bf16 with the K
    taps stacked along the output (N) axis.  b_ref: (1, Cout) f32.
    'same' padding, stride 1 -> (L, TB, Cout) f32.  One MXU push; taps are
    recombined with 64-lane-aligned slice adds."""
    L, TB, cin = h.shape
    cout = b_ref.shape[-1]
    K = w_ref.shape[1] // cout
    pad = K // 2
    zeros = jnp.zeros((pad, TB, cin), h.dtype)
    hp = jnp.concatenate([zeros, h, zeros], axis=0)              # (L+2p, TB, Cin)
    z = jnp.dot(hp.reshape((L + 2 * pad) * TB, cin).astype(jnp.bfloat16),
                w_ref[...], preferred_element_type=jnp.float32)  # (.., K*Cout)
    z = z.reshape(L + 2 * pad, TB, K * cout)
    acc = z[0:L, :, 0:cout]
    for k in range(1, K):                                        # small static unroll
        acc = acc + z[k:k + L, :, k * cout:(k + 1) * cout]
    return jnp.maximum(acc + b_ref[...], 0.0)                    # (L, TB, Cout)


def _maxpool1d(h, p):
    """PyTorch MaxPool1d(p): kernel=p, stride=p, floor mode.  h: (L, TB, C)."""
    L, TB, C = h.shape
    lo = L // p
    hr = h[:lo * p].reshape(lo, p, TB, C)
    return jnp.max(hr, axis=1)                                   # (lo, TB, C)


def _conv1d_model_kernel(x_ref, w1, b1, w2, b2, w3, b3, w4, b4,
                         wf1, bf1, wf2, bf2, out_ref):
    h = _conv1_im2col_relu(x_ref[...], w1, b1)                   # (L, TB, 64)
    h = _maxpool1d(h, 5)                                         # (L//5, TB, 64)
    h = _conv_relu_stacked(h, w2, b2)
    h = _maxpool1d(h, 3)                                         # (L//15, TB, 64)
    h = _conv_relu_stacked(h, w3, b3)
    h = _maxpool1d(h, 3)                                         # (L//45, TB, 64)
    h = _conv_relu_stacked(h, w4, b4)                            # (lout, TB, 64)

    # TODO(synk): nn.Dropout(0.8) is treated as inference-mode identity (no RNG mask).

    # fc1: PyTorch flattens (C, Lout) channel-major; wf1 was re-laid-out in the
    # wrapper to (Lout, Cin=64, 64out) so fc1 is a sum of per-position matmuls
    # with M = TB (the batch tile), K = 64, N = 64.
    lout, TB, _ = h.shape
    acc = jnp.zeros((TB, NUM_KERNEL), jnp.float32)
    for l in range(lout):                                        # small static unroll
        acc = acc + jnp.dot(h[l].astype(jnp.bfloat16), wf1[l],
                            preferred_element_type=jnp.float32)
    hfc = jnp.maximum(acc + bf1[...], 0.0)                       # (TB, 64)

    out_ref[...] = (jnp.dot(hfc, wf2[...], preferred_element_type=jnp.float32)
                    + bf2[...])                                  # (TB, num_classes)


# ---------------------------------------------------------------------------
# Wrapper (parameter re-layout + pallas_call)
# ---------------------------------------------------------------------------
def _const_spec(a):
    zeros = (0,) * a.ndim
    return pl.BlockSpec(a.shape, lambda b: zeros)


def conv1d_forward(x_ncl, params, num_classes, tile_b=None):
    B, cin, L = x_ncl.shape
    assert cin == IN_CHANNELS
    if L // 45 == 0:
        raise ValueError(f"signal_length too small: {L}")
    lout = L // 45

    # Batch tile: multiple of 8 (sublanes).  Default 64 keeps the per-step VMEM
    # working set comfortably under the 64 MiB limit even on v7x.
    if tile_b is None:
        tile_b = min(64, _round_up(B, 8))
    TB = _round_up(tile_b, 8)
    Bp = _round_up(B, TB)

    # -- input: sequence-major + layer-1 im2col done once in plain XLA ---------
    xs = jnp.transpose(x_ncl, (2, 0, 1)).astype(jnp.float32)     # (L, B, 30)
    if Bp != B:
        xs = jnp.concatenate(
            [xs, jnp.zeros((L, Bp - B, IN_CHANNELS), xs.dtype)], axis=1)
    p1 = K1 // 2
    xp = jnp.pad(xs, ((p1, p1), (0, 0), (0, 0)))
    xcols = jnp.concatenate([xp[k:k + L] for k in range(K1)], axis=-1)  # (L,Bp,150)

    # -- weights ---------------------------------------------------------------
    # layer 1: im2col weight (K*Cin, Cout), row index = k*Cin + c
    w1 = (jnp.transpose(params["w1"], (2, 1, 0))
          .reshape(K1 * IN_CHANNELS, NUM_KERNEL).astype(jnp.bfloat16))

    def stacked(w):  # PyTorch conv weight (Cout, Cin, K) -> (Cin, K*Cout)
        cout, cin_, k = w.shape
        return (jnp.transpose(w, (1, 2, 0)).reshape(cin_, k * cout)
                .astype(jnp.bfloat16))

    w2, w3, w4 = stacked(params["w2"]), stacked(params["w3"]), stacked(params["w4"])
    b1, b2, b3, b4 = (params[n].reshape(1, -1).astype(jnp.float32)
                      for n in ("b1", "b2", "b3", "b4"))

    # fc1 weight (64, 64*lout) with input index = c*lout + l -> (lout, 64c, 64out)
    wf1 = (params["wf1"].reshape(NUM_KERNEL, NUM_KERNEL, lout)
           .transpose(2, 1, 0).astype(jnp.bfloat16))
    bf1 = params["bf1"].reshape(1, -1).astype(jnp.float32)
    wf2 = params["wf2"].T.astype(jnp.float32)                    # (64, NC)
    bf2 = params["bf2"].reshape(1, -1).astype(jnp.float32)

    grid_spec = pltpu.PrefetchScalarGridSpec(
        num_scalar_prefetch=0,
        grid=(Bp // TB,),
        in_specs=[
            pl.BlockSpec((L, TB, K1 * IN_CHANNELS), lambda b: (0, b, 0)),  # x tile
            _const_spec(w1), _const_spec(b1),
            _const_spec(w2), _const_spec(b2),
            _const_spec(w3), _const_spec(b3),
            _const_spec(w4), _const_spec(b4),
            _const_spec(wf1), _const_spec(bf1),
            _const_spec(wf2), _const_spec(bf2),
        ],
        out_specs=pl.BlockSpec((TB, num_classes), lambda b: (b, 0)),
    )

    out = pl.pallas_call(
        _conv1d_model_kernel,
        out_shape=jax.ShapeDtypeStruct((Bp, num_classes), jnp.float32),
        grid_spec=grid_spec,
        compiler_params=pltpu.CompilerParams(
            dimension_semantics=("parallel",),          # batch tiles independent
            vmem_limit_bytes=64 * 1024 * 1024,
        ),
    )(xcols, w1, b1, w2, b2, w3, b3, w4, b4, wf1, bf1, wf2, bf2)
    return out[:B]                                               # (B, num_classes)


# ---------------------------------------------------------------------------
# Deterministic parameter init (PyTorch-convention shapes)
# ---------------------------------------------------------------------------
def init_params(key, signal_length, num_classes):
    lout = signal_length // 45
    ks = jax.random.split(key, 12)

    def u(k, shape, fan_in):
        bound = 1.0 / np.sqrt(fan_in)
        return jax.random.uniform(k, shape, jnp.float32, -bound, bound)

    return {
        "w1": u(ks[0], (NUM_KERNEL, IN_CHANNELS, 5), IN_CHANNELS * 5),
        "b1": u(ks[1], (NUM_KERNEL,), IN_CHANNELS * 5),
        "w2": u(ks[2], (NUM_KERNEL, NUM_KERNEL, 5), NUM_KERNEL * 5),
        "b2": u(ks[3], (NUM_KERNEL,), NUM_KERNEL * 5),
        "w3": u(ks[4], (NUM_KERNEL, NUM_KERNEL, 3), NUM_KERNEL * 3),
        "b3": u(ks[5], (NUM_KERNEL,), NUM_KERNEL * 3),
        "w4": u(ks[6], (NUM_KERNEL, NUM_KERNEL, 3), NUM_KERNEL * 3),
        "b4": u(ks[7], (NUM_KERNEL,), NUM_KERNEL * 3),
        "wf1": u(ks[8], (64, NUM_KERNEL * lout), NUM_KERNEL * lout),
        "bf1": u(ks[9], (64,), NUM_KERNEL * lout),
        "wf2": u(ks[10], (num_classes, 64), 64),
        "bf2": u(ks[11], (num_classes,), 64),
    }


# ---------------------------------------------------------------------------
# Pure-JAX reference (mirrors PyTorch forward, eval mode) for validation
# ---------------------------------------------------------------------------
def reference_forward(x_ncl, params):
    def conv_relu(x, w, b, pad):
        y = jax.lax.conv_general_dilated(
            x, w, window_strides=(1,), padding=[(pad, pad)],
            dimension_numbers=("NCH", "OIH", "NCH"))
        return jax.nn.relu(y + b[None, :, None])

    def maxpool(x, p):
        return jax.lax.reduce_window(x, -jnp.inf, jax.lax.max,
                                     (1, 1, p), (1, 1, p), "VALID")

    h = conv_relu(x_ncl, params["w1"], params["b1"], 2)
    h = maxpool(h, 5)
    h = conv_relu(h, params["w2"], params["b2"], 2)
    h = maxpool(h, 3)
    h = conv_relu(h, params["w3"], params["b3"], 1)
    h = maxpool(h, 3)
    h = conv_relu(h, params["w4"], params["b4"], 1)
    flat = h.reshape(h.shape[0], -1)                     # channel-major flatten
    hfc = jax.nn.relu(flat @ params["wf1"].T + params["bf1"])
    return hfc @ params["wf2"].T + params["bf2"]


if __name__ == "__main__":
    signal_length = 90             # must satisfy signal_length // 45 != 0 (lout = 2)
    num_classes = 5
    batch = 12                     # padded to 16 -> two grid steps with TB = 8

    key = jax.random.PRNGKey(0)
    kx, kp = jax.random.split(key)
    params = init_params(kp, signal_length, num_classes)
    x = jax.random.normal(kx, (batch, IN_CHANNELS, signal_length), jnp.float32)

    out = conv1d_forward(x, params, num_classes, tile_b=8)
    out = jax.block_until_ready(out)
    assert out.shape == (batch, num_classes)

    ref = reference_forward(x, params)
    np.testing.assert_allclose(np.asarray(out), np.asarray(ref), rtol=5e-2, atol=5e-2)

    print("KERNEL_OK")
</pallas_src>

<mosaic_0001>
module attributes {stable_mosaic.version = 11 : i64} {
  func.func @_conv1d_model_kernel(%arg0: i32, %arg1: memref<90x8x150xf32, #tpu.memory_space<vmem>>, %arg2: memref<150x64xbf16, #tpu.memory_space<vmem>>, %arg3: memref<1x64xf32, #tpu.memory_space<vmem>>, %arg4: memref<64x320xbf16, #tpu.memory_space<vmem>>, %arg5: memref<1x64xf32, #tpu.memory_space<vmem>>, %arg6: memref<64x192xbf16, #tpu.memory_space<vmem>>, %arg7: memref<1x64xf32, #tpu.memory_space<vmem>>, %arg8: memref<64x192xbf16, #tpu.memory_space<vmem>>, %arg9: memref<1x64xf32, #tpu.memory_space<vmem>>, %arg10: memref<2x64x64xbf16, #tpu.memory_space<vmem>>, %arg11: memref<1x64xf32, #tpu.memory_space<vmem>>, %arg12: memref<64x5xf32, #tpu.memory_space<vmem>>, %arg13: memref<1x5xf32, #tpu.memory_space<vmem>>, %arg14: memref<8x5xf32, #tpu.memory_space<vmem>>) attributes {dimension_semantics = [#tpu.dimension_semantics<parallel>], iteration_bounds = array<i64: 2>, scalar_prefetch = 0 : i64, scratch_operands = 0 : i64, tpu.core_type = #tpu.core_type<tc>, window_params = [{transform_indices = @transform_0, window_bounds = array<i64: 90, 8, 150>}, {pipeline_mode = #tpu.pipeline_mode<synchronous>, transform_indices = @transform_1, window_bounds = array<i64: 150, 64>}, {pipeline_mode = #tpu.pipeline_mode<synchronous>, transform_indices = @transform_2, window_bounds = array<i64: 1, 64>}, {pipeline_mode = #tpu.pipeline_mode<synchronous>, transform_indices = @transform_3, window_bounds = array<i64: 64, 320>}, {pipeline_mode = #tpu.pipeline_mode<synchronous>, transform_indices = @transform_4, window_bounds = array<i64: 1, 64>}, {pipeline_mode = #tpu.pipeline_mode<synchronous>, transform_indices = @transform_5, window_bounds = array<i64: 64, 192>}, {pipeline_mode = #tpu.pipeline_mode<synchronous>, transform_indices = @transform_6, window_bounds = array<i64: 1, 64>}, {pipeline_mode = #tpu.pipeline_mode<synchronous>, transform_indices = @transform_7, window_bounds = array<i64: 64, 192>}, {pipeline_mode = #tpu.pipeline_mode<synchronous>, transform_indices = @transform_8, window_bounds = array<i64: 1, 64>}, {pipeline_mode = #tpu.pipeline_mode<synchronous>, transform_indices = @transform_9, window_bounds = array<i64: 2, 64, 64>}, {pipeline_mode = #tpu.pipeline_mode<synchronous>, transform_indices = @transform_10, window_bounds = array<i64: 1, 64>}, {pipeline_mode = #tpu.pipeline_mode<synchronous>, transform_indices = @transform_11, window_bounds = array<i64: 64, 5>}, {pipeline_mode = #tpu.pipeline_mode<synchronous>, transform_indices = @transform_12, window_bounds = array<i64: 1, 5>}, {transform_indices = @transform_13, window_bounds = array<i64: 8, 5>}]} {
    %c0 = arith.constant 0 : index
    %c0_0 = arith.constant 0 : index
    %c0_1 = arith.constant 0 : index
    %0 = vector.load %arg1[%c0, %c0_0, %c0_1] : memref<90x8x150xf32, #tpu.memory_space<vmem>>, vector<90x8x150xf32>
    %1 = vector.shape_cast %0 : vector<90x8x150xf32> to vector<720x150xf32>
    %2 = arith.truncf %1 : vector<720x150xf32> to vector<720x150xbf16>
    %c0_2 = arith.constant 0 : index
    %c0_3 = arith.constant 0 : index
    %3 = vector.load %arg2[%c0_2, %c0_3] : memref<150x64xbf16, #tpu.memory_space<vmem>>, vector<150x64xbf16>
    %cst = arith.constant dense<0.000000e+00> : vector<720x64xf32>
    %4 = tpu.matmul %2, %3, %cst {dimension_numbers = #tpu.dot_dimension_numbers<[1], [0], [0], [1], [0, 0, 1, 1], [], []>} : vector<720x150xbf16>, vector<150x64xbf16>, vector<720x64xf32> -> vector<720x64xf32>
    %c0_4 = arith.constant 0 : index
    %c0_5 = arith.constant 0 : index
    %5 = vector.load %arg3[%c0_4, %c0_5] : memref<1x64xf32, #tpu.memory_space<vmem>>, vector<1x64xf32>
    %6 = vector.broadcast %5 : vector<1x64xf32> to vector<720x64xf32>
    %7 = arith.addf %4, %6 : vector<720x64xf32>
    %cst_6 = arith.constant 0.000000e+00 : f32
    %8 = vector.broadcast %cst_6 : f32 to vector<720x64xf32>
    %9 = arith.maximumf %7, %8 : vector<720x64xf32>
    %10 = vector.shape_cast %9 : vector<720x64xf32> to vector<90x8x64xf32>
    %11 = vector.shape_cast %10 : vector<90x8x64xf32> to vector<18x5x8x64xf32>
    %cst_7 = arith.constant dense<0xFF800000> : vector<18x8x64xf32>
    %12 = vector.multi_reduction <maximumf>, %11, %cst_7 [1] : vector<18x5x8x64xf32> to vector<18x8x64xf32>
    %cst_8 = arith.constant 0.000000e+00 : f32
    %13 = vector.broadcast %cst_8 : f32 to vector<2x8x64xf32>
    %14 = tpu.concatenate %13, %12, %13 in 0 : vector<2x8x64xf32>, vector<18x8x64xf32>, vector<2x8x64xf32> -> vector<22x8x64xf32>
    %15 = vector.shape_cast %14 : vector<22x8x64xf32> to vector<176x64xf32>
    %16 = arith.truncf %15 : vector<176x64xf32> to vector<176x64xbf16>
    %c0_9 = arith.constant 0 : index
    %c0_10 = arith.constant 0 : index
    %17 = vector.load %arg4[%c0_9, %c0_10] : memref<64x320xbf16, #tpu.memory_space<vmem>>, vector<64x320xbf16>
    %cst_11 = arith.constant dense<0.000000e+00> : vector<176x320xf32>
    %18 = tpu.matmul %16, %17, %cst_11 {dimension_numbers = #tpu.dot_dimension_numbers<[1], [0], [0], [1], [0, 0, 1, 1], [], []>} : vector<176x64xbf16>, vector<64x320xbf16>, vector<176x320xf32> -> vector<176x320xf32>
    %19 = vector.shape_cast %18 : vector<176x320xf32> to vector<22x8x320xf32>
    %20 = vector.extract_strided_slice %19 {offsets = [0, 0, 0], sizes = [18, 8, 64], strides = [1, 1, 1]} : vector<22x8x320xf32> to vector<18x8x64xf32>
    %21 = vector.extract_strided_slice %19 {offsets = [1, 0, 64], sizes = [18, 8, 64], strides = [1, 1, 1]} : vector<22x8x320xf32> to vector<18x8x64xf32>
    %22 = arith.addf %20, %21 : vector<18x8x64xf32>
    %23 = vector.extract_strided_slice %19 {offsets = [2, 0, 128], sizes = [18, 8, 64], strides = [1, 1, 1]} : vector<22x8x320xf32> to vector<18x8x64xf32>
    %24 = arith.addf %22, %23 : vector<18x8x64xf32>
    %25 = vector.extract_strided_slice %19 {offsets = [3, 0, 192], sizes = [18, 8, 64], strides = [1, 1, 1]} : vector<22x8x320xf32> to vector<18x8x64xf32>
    %26 = arith.addf %24, %25 : vector<18x8x64xf32>
    %27 = vector.extract_strided_slice %19 {offsets = [4, 0, 256], sizes = [18, 8, 64], strides = [1, 1, 1]} : vector<22x8x320xf32> to vector<18x8x64xf32>
    %28 = arith.addf %26, %27 : vector<18x8x64xf32>
    %c0_12 = arith.constant 0 : index
    %c0_13 = arith.constant 0 : index
    %29 = vector.load %arg5[%c0_12, %c0_13] : memref<1x64xf32, #tpu.memory_space<vmem>>, vector<1x64xf32>
    %30 = vector.shape_cast %29 : vector<1x64xf32> to vector<1x1x64xf32>
    %31 = vector.broadcast %30 : vector<1x1x64xf32> to vector<18x8x64xf32>
    %32 = arith.addf %28, %31 : vector<18x8x64xf32>
    %cst_14 = arith.constant 0.000000e+00 : f32
    %33 = vector.broadcast %cst_14 : f32 to vector<18x8x64xf32>
    %34 = arith.maximumf %32, %33 : vector<18x8x64xf32>
    %35 = vector.shape_cast %34 : vector<18x8x64xf32> to vector<6x3x8x64xf32>
    %cst_15 = arith.constant dense<0xFF800000> : vector<6x8x64xf32>
    %36 = vector.multi_reduction <maximumf>, %35, %cst_15 [1] : vector<6x3x8x64xf32> to vector<6x8x64xf32>
    %cst_16 = arith.constant 0.000000e+00 : f32
    %37 = vector.broadcast %cst_16 : f32 to vector<1x8x64xf32>
    %38 = tpu.concatenate %37, %36, %37 in 0 : vector<1x8x64xf32>, vector<6x8x64xf32>, vector<1x8x64xf32> -> vector<8x8x64xf32>
    %39 = vector.shape_cast %38 : vector<8x8x64xf32> to vector<64x64xf32>
    %40 = arith.truncf %39 : vector<64x64xf32> to vector<64x64xbf16>
    %c0_17 = arith.constant 0 : index
    %c0_18 = arith.constant 0 : index
    %41 = vector.load %arg6[%c0_17, %c0_18] : memref<64x192xbf16, #tpu.memory_space<vmem>>, vector<64x192xbf16>
    %cst_19 = arith.constant dense<0.000000e+00> : vector<64x192xf32>
    %42 = tpu.matmul %40, %41, %cst_19 {dimension_numbers = #tpu.dot_dimension_numbers<[1], [0], [0], [1], [0, 0, 1, 1], [], []>} : vector<64x64xbf16>, vector<64x192xbf16>, vector<64x192xf32> -> vector<64x192xf32>
    %43 = vector.shape_cast %42 : vector<64x192xf32> to vector<8x8x192xf32>
    %44 = vector.extract_strided_slice %43 {offsets = [0, 0, 0], sizes = [6, 8, 64], strides = [1, 1, 1]} : vector<8x8x192xf32> to vector<6x8x64xf32>
    %45 = vector.extract_strided_slice %43 {offsets = [1, 0, 64], sizes = [6, 8, 64], strides = [1, 1, 1]} : vector<8x8x192xf32> to vector<6x8x64xf32>
    %46 = arith.addf %44, %45 : vector<6x8x64xf32>
    %47 = vector.extract_strided_slice %43 {offsets = [2, 0, 128], sizes = [6, 8, 64], strides = [1, 1, 1]} : vector<8x8x192xf32> to vector<6x8x64xf32>
    %48 = arith.addf %46, %47 : vector<6x8x64xf32>
    %c0_20 = arith.constant 0 : index
    %c0_21 = arith.constant 0 : index
    %49 = vector.load %arg7[%c0_20, %c0_21] : memref<1x64xf32, #tpu.memory_space<vmem>>, vector<1x64xf32>
    %50 = vector.shape_cast %49 : vector<1x64xf32> to vector<1x1x64xf32>
    %51 = vector.broadcast %50 : vector<1x1x64xf32> to vector<6x8x64xf32>
    %52 = arith.addf %48, %51 : vector<6x8x64xf32>
    %cst_22 = arith.constant 0.000000e+00 : f32
    %53 = vector.broadcast %cst_22 : f32 to vector<6x8x64xf32>
    %54 = arith.maximumf %52, %53 : vector<6x8x64xf32>
    %55 = vector.shape_cast %54 : vector<6x8x64xf32> to vector<2x3x8x64xf32>
    %cst_23 = arith.constant dense<0xFF800000> : vector<2x8x64xf32>
    %56 = vector.multi_reduction <maximumf>, %55, %cst_23 [1] : vector<2x3x8x64xf32> to vector<2x8x64xf32>
    %cst_24 = arith.constant 0.000000e+00 : f32
    %57 = vector.broadcast %cst_24 : f32 to vector<1x8x64xf32>
    %58 = tpu.concatenate %57, %56, %57 in 0 : vector<1x8x64xf32>, vector<2x8x64xf32>, vector<1x8x64xf32> -> vector<4x8x64xf32>
    %59 = vector.shape_cast %58 : vector<4x8x64xf32> to vector<32x64xf32>
    %60 = arith.truncf %59 : vector<32x64xf32> to vector<32x64xbf16>
    %c0_25 = arith.constant 0 : index
    %c0_26 = arith.constant 0 : index
    %61 = vector.load %arg8[%c0_25, %c0_26] : memref<64x192xbf16, #tpu.memory_space<vmem>>, vector<64x192xbf16>
    %cst_27 = arith.constant dense<0.000000e+00> : vector<32x192xf32>
    %62 = tpu.matmul %60, %61, %cst_27 {dimension_numbers = #tpu.dot_dimension_numbers<[1], [0], [0], [1], [0, 0, 1, 1], [], []>} : vector<32x64xbf16>, vector<64x192xbf16>, vector<32x192xf32> -> vector<32x192xf32>
    %63 = vector.shape_cast %62 : vector<32x192xf32> to vector<4x8x192xf32>
    %64 = vector.extract_strided_slice %63 {offsets = [0, 0, 0], sizes = [2, 8, 64], strides = [1, 1, 1]} : vector<4x8x192xf32> to vector<2x8x64xf32>
    %65 = vector.extract_strided_slice %63 {offsets = [1, 0, 64], sizes = [2, 8, 64], strides = [1, 1, 1]} : vector<4x8x192xf32> to vector<2x8x64xf32>
    %66 = arith.addf %64, %65 : vector<2x8x64xf32>
    %67 = vector.extract_strided_slice %63 {offsets = [2, 0, 128], sizes = [2, 8, 64], strides = [1, 1, 1]} : vector<4x8x192xf32> to vector<2x8x64xf32>
    %68 = arith.addf %66, %67 : vector<2x8x64xf32>
    %c0_28 = arith.constant 0 : index
    %c0_29 = arith.constant 0 : index
    %69 = vector.load %arg9[%c0_28, %c0_29] : memref<1x64xf32, #tpu.memory_space<vmem>>, vector<1x64xf32>
    %70 = vector.shape_cast %69 : vector<1x64xf32> to vector<1x1x64xf32>
    %71 = vector.broadcast %70 : vector<1x1x64xf32> to vector<2x8x64xf32>
    %72 = arith.addf %68, %71 : vector<2x8x64xf32>
    %cst_30 = arith.constant 0.000000e+00 : f32
    %73 = vector.broadcast %cst_30 : f32 to vector<2x8x64xf32>
    %74 = arith.maximumf %72, %73 : vector<2x8x64xf32>
    %cst_31 = arith.constant 0.000000e+00 : f32
    %75 = vector.broadcast %cst_31 : f32 to vector<8x64xf32>
    %76 = vector.extract_strided_slice %74 {offsets = [0, 0, 0], sizes = [1, 8, 64], strides = [1, 1, 1]} : vector<2x8x64xf32> to vector<1x8x64xf32>
    %77 = vector.shape_cast %76 : vector<1x8x64xf32> to vector<8x64xf32>
    %78 = arith.truncf %77 : vector<8x64xf32> to vector<8x64xbf16>
    %c0_32 = arith.constant 0 : index
    %c0_33 = arith.constant 0 : index
    %c0_34 = arith.constant 0 : index
    %79 = vector.load %arg10[%c0_32, %c0_33, %c0_34] : memref<2x64x64xbf16, #tpu.memory_space<vmem>>, vector<1x64x64xbf16>
    %80 = vector.shape_cast %79 : vector<1x64x64xbf16> to vector<64x64xbf16>
    %cst_35 = arith.constant dense<0.000000e+00> : vector<8x64xf32>
    %81 = tpu.matmul %78, %80, %cst_35 {dimension_numbers = #tpu.dot_dimension_numbers<[1], [0], [0], [1], [0, 0, 1, 1], [], []>} : vector<8x64xbf16>, vector<64x64xbf16>, vector<8x64xf32> -> vector<8x64xf32>
    %82 = arith.addf %75, %81 : vector<8x64xf32>
    %83 = vector.extract_strided_slice %74 {offsets = [1, 0, 0], sizes = [1, 8, 64], strides = [1, 1, 1]} : vector<2x8x64xf32> to vector<1x8x64xf32>
    %84 = vector.shape_cast %83 : vector<1x8x64xf32> to vector<8x64xf32>
    %85 = arith.truncf %84 : vector<8x64xf32> to vector<8x64xbf16>
    %c1 = arith.constant 1 : index
    %c0_36 = arith.constant 0 : index
    %c0_37 = arith.constant 0 : index
    %86 = vector.load %arg10[%c1, %c0_36, %c0_37] : memref<2x64x64xbf16, #tpu.memory_space<vmem>>, vector<1x64x64xbf16>
    %87 = vector.shape_cast %86 : vector<1x64x64xbf16> to vector<64x64xbf16>
    %cst_38 = arith.constant dense<0.000000e+00> : vector<8x64xf32>
    %88 = tpu.matmul %85, %87, %cst_38 {dimension_numbers = #tpu.dot_dimension_numbers<[1], [0], [0], [1], [0, 0, 1, 1], [], []>} : vector<8x64xbf16>, vector<64x64xbf16>, vector<8x64xf32> -> vector<8x64xf32>
    %89 = arith.addf %82, %88 : vector<8x64xf32>
    %c0_39 = arith.constant 0 : index
    %c0_40 = arith.constant 0 : index
    %90 = vector.load %arg11[%c0_39, %c0_40] : memref<1x64xf32, #tpu.memory_space<vmem>>, vector<1x64xf32>
    %91 = vector.broadcast %90 : vector<1x64xf32> to vector<8x64xf32>
    %92 = arith.addf %89, %91 : vector<8x64xf32>
    %cst_41 = arith.constant 0.000000e+00 : f32
    %93 = vector.broadcast %cst_41 : f32 to vector<8x64xf32>
    %94 = arith.maximumf %92, %93 : vector<8x64xf32>
    %c0_42 = arith.constant 0 : index
    %c0_43 = arith.constant 0 : index
    %95 = vector.load %arg12[%c0_42, %c0_43] : memref<64x5xf32, #tpu.memory_space<vmem>>, vector<64x5xf32>
    %cst_44 = arith.constant dense<0.000000e+00> : vector<8x5xf32>
    %96 = tpu.matmul %94, %95, %cst_44 {dimension_numbers = #tpu.dot_dimension_numbers<[1], [0], [0], [1], [0, 0, 1, 1], [], []>} : vector<8x64xf32>, vector<64x5xf32>, vector<8x5xf32> -> vector<8x5xf32>
    %c0_45 = arith.constant 0 : index
    %c0_46 = arith.constant 0 : index
    %97 = vector.load %arg13[%c0_45, %c0_46] : memref<1x5xf32, #tpu.memory_space<vmem>>, vector<1x5xf32>
    %98 = vector.broadcast %97 : vector<1x5xf32> to vector<8x5xf32>
    %99 = arith.addf %96, %98 : vector<8x5xf32>
    %c0_47 = arith.constant 0 : index
    %c0_48 = arith.constant 0 : index
    %100 = vector.load %arg14[%c0_47, %c0_48] : memref<8x5xf32, #tpu.memory_space<vmem>>, vector<8x5xf32>
    tpu.vector_store %arg14[%c0_47, %c0_48], %99 {strides = array<i32>} : memref<8x5xf32, #tpu.memory_space<vmem>>, vector<8x5xf32>,
    return
  }
  func.func @transform_0(%arg0: i32) -> (i32, i32, i32) {
    %c0_i32 = arith.constant 0 : i32
    %c0_i32_0 = arith.constant 0 : i32
    %c0_i32_1 = arith.constant 0 : i32
    return %c0_i32, %arg0, %c0_i32_0 : i32, i32, i32
  }
  func.func @transform_1(%arg0: i32) -> (i32, i32) {
    %c0_i32 = arith.constant 0 : i32
    %c0_i32_0 = arith.constant 0 : i32
    %c0_i32_1 = arith.constant 0 : i32
    return %c0_i32, %c0_i32_0 : i32, i32
  }
  func.func @transform_2(%arg0: i32) -> (i32, i32) {
    %c0_i32 = arith.constant 0 : i32
    %c0_i32_0 = arith.constant 0 : i32
    %c0_i32_1 = arith.constant 0 : i32
    return %c0_i32, %c0_i32_0 : i32, i32
  }
  func.func @transform_3(%arg0: i32) -> (i32, i32) {
    %c0_i32 = arith.constant 0 : i32
    %c0_i32_0 = arith.constant 0 : i32
    %c0_i32_1 = arith.constant 0 : i32
    return %c0_i32, %c0_i32_0 : i32, i32
  }
  func.func @transform_4(%arg0: i32) -> (i32, i32) {
    %c0_i32 = arith.constant 0 : i32
    %c0_i32_0 = arith.constant 0 : i32
    %c0_i32_1 = arith.constant 0 : i32
    return %c0_i32, %c0_i32_0 : i32, i32
  }
  func.func @transform_5(%arg0: i32) -> (i32, i32) {
    %c0_i32 = arith.constant 0 : i32
    %c0_i32_0 = arith.constant 0 : i32
    %c0_i32_1 = arith.constant 0 : i32
    return %c0_i32, %c0_i32_0 : i32, i32
  }
  func.func @transform_6(%arg0: i32) -> (i32, i32) {
    %c0_i32 = arith.constant 0 : i32
    %c0_i32_0 = arith.constant 0 : i32
    %c0_i32_1 = arith.constant 0 : i32
    return %c0_i32, %c0_i32_0 : i32, i32
  }
  func.func @transform_7(%arg0: i32) -> (i32, i32) {
    %c0_i32 = arith.constant 0 : i32
    %c0_i32_0 = arith.constant 0 : i32
    %c0_i32_1 = arith.constant 0 : i32
    return %c0_i32, %c0_i32_0 : i32, i32
  }
  func.func @transform_8(%arg0: i32) -> (i32, i32) {
    %c0_i32 = arith.constant 0 : i32
    %c0_i32_0 = arith.constant 0 : i32
    %c0_i32_1 = arith.constant 0 : i32
    return %c0_i32, %c0_i32_0 : i32, i32
  }
  func.func @transform_9(%arg0: i32) -> (i32, i32, i32) {
    %c0_i32 = arith.constant 0 : i32
    %c0_i32_0 = arith.constant 0 : i32
    %c0_i32_1 = arith.constant 0 : i32
    %c0_i32_2 = arith.constant 0 : i32
    return %c0_i32, %c0_i32_0, %c0_i32_1 : i32, i32, i32
  }
  func.func @transform_10(%arg0: i32) -> (i32, i32) {
    %c0_i32 = arith.constant 0 : i32
    %c0_i32_0 = arith.constant 0 : i32
    %c0_i32_1 = arith.constant 0 : i32
    return %c0_i32, %c0_i32_0 : i32, i32
  }
  func.func @transform_11(%arg0: i32) -> (i32, i32) {
    %c0_i32 = arith.constant 0 : i32
    %c0_i32_0 = arith.constant 0 : i32
    %c0_i32_1 = arith.constant 0 : i32
    return %c0_i32, %c0_i32_0 : i32, i32
  }
  func.func @transform_12(%arg0: i32) -> (i32, i32) {
    %c0_i32 = arith.constant 0 : i32
    %c0_i32_0 = arith.constant 0 : i32
    %c0_i32_1 = arith.constant 0 : i32
    return %c0_i32, %c0_i32_0 : i32, i32
  }
  func.func @transform_13(%arg0: i32) -> (i32, i32) {
    %c0_i32 = arith.constant 0 : i32
    %c0_i32_0 = arith.constant 0 : i32
    return %arg0, %c0_i32 : i32, i32
  }
}

</mosaic_0001>

<llo_original>
// kernel: tpu_custom_call.1
$region0: #{tpu_custom_call.1}
  #allocation0 [shape = 'u32[]', space=smem, size = 0x4, offset = 0x4, fixed_abs, tag = 'smem constant byte address 0x4 - core index']
  #allocation1 [shape = 'u32[144,128]{1,0:T(1,128)}', space=vmem, size = 0x12000, scoped, tag = 'internal scratch']
  %s0 = inlined_call_operand.hbm [shape: f32[90,16,150], index: 0, kind: input, shape index: {}]
  %s1 = inlined_call_operand.hbm [shape: bf16[150,64], index: 1, kind: input, shape index: {}]
  %s2 = inlined_call_operand.hbm [shape: f32[1,64], index: 2, kind: input, shape index: {}]
  %s3 = inlined_call_operand.hbm [shape: bf16[64,320], index: 3, kind: input, shape index: {}]
  %s4 = inlined_call_operand.hbm [shape: f32[1,64], index: 4, kind: input, shape index: {}]
  %s5 = inlined_call_operand.hbm [shape: bf16[64,192], index: 5, kind: input, shape index: {}]
  %s6 = inlined_call_operand.hbm [shape: f32[1,64], index: 6, kind: input, shape index: {}]
  %s7 = inlined_call_operand.hbm [shape: bf16[64,192], index: 7, kind: input, shape index: {}]
  %s8 = inlined_call_operand.hbm [shape: f32[1,64], index: 8, kind: input, shape index: {}]
  %s9 = inlined_call_operand.hbm [shape: bf16[2,64,64], index: 9, kind: input, shape index: {}]
  %s10 = inlined_call_operand.hbm [shape: f32[1,64], index: 10, kind: input, shape index: {}]
  %s11 = inlined_call_operand.hbm [shape: f32[64,5], index: 11, kind: input, shape index: {}]
  %s12 = inlined_call_operand.hbm [shape: f32[1,5], index: 12, kind: input, shape index: {}]
  %s13 = inlined_call_operand.hbm [shape: f32[16,5], index: 13, kind: output, shape index: {}]
  %s14 = sld [smem:[#allocation0]]
  $region137: #{tpu_custom_call.1} parent=0
    _
  %s16 = ssub.s32 1, %s14
  %s17 = scalar_select 0, %s16, %s14
  $region1: #{tpu_custom_call.1} parent=0
    #allocation2 [shape = 'u8[1474560]{0}', space=vmem, size = 0x168000, scoped, tag = 'input window, operand 0']
    #allocation3 [shape = 's32[2]{0}', space=sflag, size = 0x8, scoped, tag = 'scoped memory for tpu_custom_call.1']
    #allocation4 [shape = 's32[2]{0}', space=sflag, size = 0x8, scoped, tag = 'scoped memory for tpu_custom_call.1']
    #allocation5 [shape = 'u8[38912]{0}', space=vmem, size = 0x9800, scoped, tag = 'input window, operand 1, single buffered']
    #allocation6 [shape = 's32[1]{0}', space=sflag, size = 0x4, scoped, tag = 'scoped memory for tpu_custom_call.1']
    #allocation7 [shape = 'u8[512]{0}', space=vmem, size = 0x400, scoped, tag = 'input window, operand 2, single buffered']
    #allocation8 [shape = 'u8[49152]{0}', space=vmem, size = 0xc000, scoped, tag = 'input window, operand 3, single buffered']
    #allocation9 [shape = 's32[1]{0}', space=sflag, size = 0x4, scoped, tag = 'scoped memory for tpu_custom_call.1']
    #allocation10 [shape = 'u8[512]{0}', space=vmem, size = 0x400, scoped, tag = 'input window, operand 4, single buffered']
    #allocation11 [shape = 'u8[32768]{0}', space=vmem, size = 0x8000, scoped, tag = 'input window, operand 5, single buffered']
    #allocation12 [shape = 's32[1]{0}', space=sflag, size = 0x4, scoped, tag = 'scoped memory for tpu_custom_call.1']
    #allocation13 [shape = 'u8[512]{0}', space=vmem, size = 0x400, scoped, tag = 'input window, operand 6, single buffered']
    #allocation14 [shape = 'u8[32768]{0}', space=vmem, size = 0x8000, scoped, tag = 'input window, operand 7, single buffered']
    #allocation15 [shape = 's32[1]{0}', space=sflag, size = 0x4, scoped, tag = 'scoped memory for tpu_custom_call.1']
    #allocation16 [shape = 'u8[512]{0}', space=vmem, size = 0x400, scoped, tag = 'input window, operand 8, single buffered']
    #allocation17 [shape = 'u8[32768]{0}', space=vmem, size = 0x8000, scoped, tag = 'input window, operand 9, single buffered']
    #allocation18 [shape = 's32[1]{0}', space=sflag, size = 0x4, scoped, tag = 'scoped memory for tpu_custom_call.1']
    #allocation19 [shape = 'u8[512]{0}', space=vmem, size = 0x400, scoped, tag = 'input window, operand 10, single buffered']
    #allocation20 [shape = 'u8[32768]{0}', space=vmem, size = 0x8000, scoped, tag = 'input window, operand 11, single buffered']
    #allocation21 [shape = 's32[1]{0}', space=sflag, size = 0x4, scoped, tag = 'scoped memory for tpu_custom_call.1']
    #allocation22 [shape = 'u8[512]{0}', space=vmem, size = 0x400, scoped, tag = 'input window, operand 12, single buffered']
    #allocation23 [shape = 'u8[8192]{0}', space=vmem, size = 0x2000, scoped, tag = 'output window, operand 0']
    %18 = vsyncpa [#allocation3], 0
    %s19 = scalar_lea.sflag [#allocation3], 1
    %20 = vsyncpa %s19, 0
    %21 = vsyncpa [#allocation6], 0
    %22 = vsyncpa [#allocation9], 0
    %23 = vsyncpa [#allocation12], 0
    %24 = vsyncpa [#allocation15], 0
    %25 = vsyncpa [#allocation18], 0
    %26 = vsyncpa [#allocation21], 0
    %27 = vsyncpa [#allocation4], 0
    %s28 = scalar_lea.sflag [#allocation4], 1
    %29 = vsyncpa %s28, 0
    loop: start=0, step=1, limit=4
    $region2: #{tpu_custom_call.1} parent=1 // loop_pre_header
      _
    $region3: #{tpu_custom_call.1} parent=1 // loop_header
      %s31 = sphi 0, %s35
      %p32 = scmp.ge.s32.totalorder %s31, 4
      %s41 = sphi 0, %s43
      %s44 = sphi 0, %s41
      %s45 = sphi 0, %s44
      %s61 = sphi 0, %s45
      %s65 = sphi 0, %s65
      %s67 = sphi 0, %s65
      %s68 = sphi 0, %s67
      %s82 = sphi 0, %s68
      %s86 = sphi 0, %s86
      %s88 = sphi 0, %s86
      %s89 = sphi 0, %s88
      %s103 = sphi 0, %s89
      %s107 = sphi 0, %s107
      %s109 = sphi 0, %s107
      %s110 = sphi 0, %s109
      %s124 = sphi 0, %s110
      %s128 = sphi 0, %s128
      %s130 = sphi 0, %s128
      %s131 = sphi 0, %s130
      %s145 = sphi 0, %s131
      %s149 = sphi 0, %s149
      %s151 = sphi 0, %s149
      %s152 = sphi 0, %s151
      %s166 = sphi 0, %s152
      %s170 = sphi 0, %s170
      %s172 = sphi 0, %s170
      %s173 = sphi 0, %s172
      %s187 = sphi 0, %s173
      %s191 = sphi 0, %s191
      %s193 = sphi 0, %s191
      %s194 = sphi 0, %s193
      %s208 = sphi 0, %s194
      %s212 = sphi 0, %s212
      %s214 = sphi 0, %s212
      %s215 = sphi 0, %s214
      %s229 = sphi 0, %s215
      %s233 = sphi 0, %s233
      %s235 = sphi 0, %s233
      %s236 = sphi 0, %s235
      %s250 = sphi 0, %s236
      %s254 = sphi 0, %s254
      %s256 = sphi 0, %s254
      %s257 = sphi 0, %s256
      %s271 = sphi 0, %s257
      %s275 = sphi 0, %s275
      %s277 = sphi 0, %s275
      %s278 = sphi 0, %s277
      %s292 = sphi 0, %s278
      %s296 = sphi 0, %s296
      %s298 = sphi 0, %s296
      %s299 = sphi 0, %s298
      %s313 = sphi 0, %s299
      %s319 = sphi 0, %s321
      %s322 = sphi 0, %s319
      %s323 = sphi 0, %s322
      %s339 = sphi 0, %s323
    $region4: #{tpu_custom_call.1} parent=1 // loop_header_branch
      %34 = sbr.rel (%p32) target = $region8
    $region5: #{tpu_custom_call.1} parent=1 // loop_body
      %s36 = ssub.s32 %s31, 1
      %s37 = ssub.s32 %s31, 2
      %s38 = sadd.s32 %s31, 1
      %s39 = ssub.s32 %s31, %s38
      %p40 = scmp.eq.s32.totalorder %s39, 0
      %s42 = sadd.s32 %s41, 1
      %s43 = scalar_select %p40, %s41, %s42
      %p46 = pneg %p40
      %p47 = scmp.eq.s32.totalorder %s31, 1
      %p48 = por %p46, %p47
      %p49 = scmp.ne.s32.totalorder %s41, %s44
      %p50 = scmp.eq.s32.totalorder %s31, 0
      %p51 = por %p49, %p50
      %p52 = scmp.ne.s32.totalorder %s41, %s44
      %p53 = scmp.eq.s32.totalorder %s36, 1
      %p54 = por %p52, %p53
      %p55 = scmp.ne.s32.totalorder %s44, %s45
      %p56 = scmp.eq.s32.totalorder %s36, 0
      %p57 = por %p55, %p56
      %p58 = scmp.ne.s32.totalorder %s44, %s45
      %p59 = scmp.eq.s32.totalorder %s37, 1
      %p60 = por %p58, %p59
      %p62 = scmp.ne.s32.totalorder %s45, %s61
      %p63 = scmp.eq.s32.totalorder %s37, 0
      %p64 = por %p62, %p63
      %s66 = sadd.s32 %s65, 1
      %p69 = scmp.eq.s32.totalorder %s31, 1
      %p70 = scmp.ne.s32.totalorder %s65, %s67
      %p71 = scmp.eq.s32.totalorder %s31, 0
      %p72 = por %p70, %p71
      %p73 = scmp.ne.s32.totalorder %s65, %s67
      %p74 = scmp.eq.s32.totalorder %s36, 1
      %p75 = por %p73, %p74
      %p76 = scmp.ne.s32.totalorder %s67, %s68
      %p77 = scmp.eq.s32.totalorder %s36, 0
      %p78 = por %p76, %p77
      %p79 = scmp.ne.s32.totalorder %s67, %s68
      %p80 = scmp.eq.s32.totalorder %s37, 1
      %p81 = por %p79, %p80
      %p83 = scmp.ne.s32.totalorder %s68, %s82
      %p84 = scmp.eq.s32.totalorder %s37, 0
      %p85 = por %p83, %p84
      %s87 = sadd.s32 %s86, 1
      %p90 = scmp.eq.s32.totalorder %s31, 1
      %p91 = scmp.ne.s32.totalorder %s86, %s88
      %p92 = scmp.eq.s32.totalorder %s31, 0
      %p93 = por %p91, %p92
      %p94 = scmp.ne.s32.totalorder %s86, %s88
      %p95 = scmp.eq.s32.totalorder %s36, 1
      %p96 = por %p94, %p95
      %p97 = scmp.ne.s32.totalorder %s88, %s89
      %p98 = scmp.eq.s32.totalorder %s36, 0
      %p99 = por %p97, %p98
      %p100 = scmp.ne.s32.totalorder %s88, %s89
      %p101 = scmp.eq.s32.totalorder %s37, 1
      %p102 = por %p100, %p101
      %p104 = scmp.ne.s32.totalorder %s89, %s103
      %p105 = scmp.eq.s32.totalorder %s37, 0
      %p106 = por %p104, %p105
      %s108 = sadd.s32 %s107, 1
      %p111 = scmp.eq.s32.totalorder %s31, 1
      %p112 = scmp.ne.s32.totalorder %s107, %s109
      %p113 = scmp.eq.s32.totalorder %s31, 0
      %p114 = por %p112, %p113
      %p115 = scmp.ne.s32.totalorder %s107, %s109
      %p116 = scmp.eq.s32.totalorder %s36, 1
      %p117 = por %p115, %p116
      %p118 = scmp.ne.s32.totalorder %s109, %s110
      %p119 = scmp.eq.s32.totalorder %s36, 0
      %p120 = por %p118, %p119
      %p121 = scmp.ne.s32.totalorder %s109, %s110
      %p122 = scmp.eq.s32.totalorder %s37, 1
      %p123 = por %p121, %p122
      %p125 = scmp.ne.s32.totalorder %s110, %s124
      %p126 = scmp.eq.s32.totalorder %s37, 0
      %p127 = por %p125, %p126
      %s129 = sadd.s32 %s128, 1
      %p132 = scmp.eq.s32.totalorder %s31, 1
      %p133 = scmp.ne.s32.totalorder %s128, %s130
      %p134 = scmp.eq.s32.totalorder %s31, 0
      %p135 = por %p133, %p134
      %p136 = scmp.ne.s32.totalorder %s128, %s130
      %p137 = scmp.eq.s32.totalorder %s36, 1
      %p138 = por %p136, %p137
      %p139 = scmp.ne.s32.totalorder %s130, %s131
      %p140 = scmp.eq.s32.totalorder %s36, 0
      %p141 = por %p139, %p140
      %p142 = scmp.ne.s32.totalorder %s130, %s131
      %p143 = scmp.eq.s32.totalorder %s37, 1
      %p144 = por %p142, %p143
      %p146 = scmp.ne.s32.totalorder %s131, %s145
      %p147 = scmp.eq.s32.totalorder %s37, 0
      %p148 = por %p146, %p147
      %s150 = sadd.s32 %s149, 1
      %p153 = scmp.eq.s32.totalorder %s31, 1
      %p154 = scmp.ne.s32.totalorder %s149, %s151
      %p155 = scmp.eq.s32.totalorder %s31, 0
      %p156 = por %p154, %p155
      %p157 = scmp.ne.s32.totalorder %s149, %s151
      %p158 = scmp.eq.s32.totalorder %s36, 1
      %p159 = por %p157, %p158
      %p160 = scmp.ne.s32.totalorder %s151, %s152
      %p161 = scmp.eq.s32.totalorder %s36, 0
      %p162 = por %p160, %p161
      %p163 = scmp.ne.s32.totalorder %s151, %s152
      %p164 = scmp.eq.s32.totalorder %s37, 1
      %p165 = por %p163, %p164
      %p167 = scmp.ne.s32.totalorder %s152, %s166
      %p168 = scmp.eq.s32.totalorder %s37, 0
      %p169 = por %p167, %p168
      %s171 = sadd.s32 %s170, 1
      %p174 = scmp.eq.s32.totalorder %s31, 1
      %p175 = scmp.ne.s32.totalorder %s170, %s172
      %p176 = scmp.eq.s32.totalorder %s31, 0
      %p177 = por %p175, %p176
      %p178 = scmp.ne.s32.totalorder %s170, %s172
      %p179 = scmp.eq.s32.totalorder %s36, 1
      %p180 = por %p178, %p179
      %p181 = scmp.ne.s32.totalorder %s172, %s173
      %p182 = scmp.eq.s32.totalorder %s36, 0
      %p183 = por %p181, %p182
      %p184 = scmp.ne.s32.totalorder %s172, %s173
      %p185 = scmp.eq.s32.totalorder %s37, 1
      %p186 = por %p184, %p185
      %p188 = scmp.ne.s32.totalorder %s173, %s187
      %p189 = scmp.eq.s32.totalorder %s37, 0
      %p190 = por %p188, %p189
      %s192 = sadd.s32 %s191, 1
      %p195 = scmp.eq.s32.totalorder %s31, 1
      %p196 = scmp.ne.s32.totalorder %s191, %s193
      %p197 = scmp.eq.s32.totalorder %s31, 0
      %p198 = por %p196, %p197
      %p199 = scmp.ne.s32.totalorder %s191, %s193
      %p200 = scmp.eq.s32.totalorder %s36, 1
      %p201 = por %p199, %p200
      %p202 = scmp.ne.s32.totalorder %s193, %s194
      %p203 = scmp.eq.s32.totalorder %s36, 0
      %p204 = por %p202, %p203
      %p205 = scmp.ne.s32.totalorder %s193, %s194
      %p206 = scmp.eq.s32.totalorder %s37, 1
      %p207 = por %p205, %p206
      %p209 = scmp.ne.s32.totalorder %s194, %s208
      %p210 = scmp.eq.s32.totalorder %s37, 0
      %p211 = por %p209, %p210
      %s213 = sadd.s32 %s212, 1
      %p216 = scmp.eq.s32.totalorder %s31, 1
      %p217 = scmp.ne.s32.totalorder %s212, %s214
      %p218 = scmp.eq.s32.totalorder %s31, 0
      %p219 = por %p217, %p218
      %p220 = scmp.ne.s32.totalorder %s212, %s214
      %p221 = scmp.eq.s32.totalorder %s36, 1
      %p222 = por %p220, %p221
      %p223 = scmp.ne.s32.totalorder %s214, %s215
      %p224 = scmp.eq.s32.totalorder %s36, 0
      %p225 = por %p223, %p224
      %p226 = scmp.ne.s32.totalorder %s214, %s215
      %p227 = scmp.eq.s32.totalorder %s37, 1
      %p228 = por %p226, %p227
      %p230 = scmp.ne.s32.totalorder %s215, %s229
      %p231 = scmp.eq.s32.totalorder %s37, 0
      %p232 = por %p230, %p231
      %s234 = sadd.s32 %s233, 1
      %p237 = scmp.eq.s32.totalorder %s31, 1
      %p238 = scmp.ne.s32.totalorder %s233, %s235
      %p239 = scmp.eq.s32.totalorder %s31, 0
      %p240 = por %p238, %p239
      %p241 = scmp.ne.s32.totalorder %s233, %s235
      %p242 = scmp.eq.s32.totalorder %s36, 1
      %p243 = por %p241, %p242
      %p244 = scmp.ne.s32.totalorder %s235, %s236
      %p245 = scmp.eq.s32.totalorder %s36, 0
      %p246 = por %p244, %p245
      %p247 = scmp.ne.s32.totalorder %s235, %s236
      %p248 = scmp.eq.s32.totalorder %s37, 1
      %p249 = por %p247, %p248
      %p251 = scmp.ne.s32.totalorder %s236, %s250
      %p252 = scmp.eq.s32.totalorder %s37, 0
      %p253 = por %p251, %p252
      %s255 = sadd.s32 %s254, 1
      %p258 = scmp.eq.s32.totalorder %s31, 1
      %p259 = scmp.ne.s32.totalorder %s254, %s256
      %p260 = scmp.eq.s32.totalorder %s31, 0
      %p261 = por %p259, %p260
      %p262 = scmp.ne.s32.totalorder %s254, %s256
      %p263 = scmp.eq.s32.totalorder %s36, 1
      %p264 = por %p262, %p263
      %p265 = scmp.ne.s32.totalorder %s256, %s257
      %p266 = scmp.eq.s32.totalorder %s36, 0
      %p267 = por %p265, %p266
      %p268 = scmp.ne.s32.totalorder %s256, %s257
      %p269 = scmp.eq.s32.totalorder %s37, 1
      %p270 = por %p268, %p269
      %p272 = scmp.ne.s32.totalorder %s257, %s271
      %p273 = scmp.eq.s32.totalorder %s37, 0
      %p274 = por %p272, %p273
      %s276 = sadd.s32 %s275, 1
      %p279 = scmp.eq.s32.totalorder %s31, 1
      %p280 = scmp.ne.s32.totalorder %s275, %s277
      %p281 = scmp.eq.s32.totalorder %s31, 0
      %p282 = por %p280, %p281
      %p283 = scmp.ne.s32.totalorder %s275, %s277
      %p284 = scmp.eq.s32.totalorder %s36, 1
      %p285 = por %p283, %p284
      %p286 = scmp.ne.s32.totalorder %s277, %s278
      %p287 = scmp.eq.s32.totalorder %s36, 0
      %p288 = por %p286, %p287
      %p289 = scmp.ne.s32.totalorder %s277, %s278
      %p290 = scmp.eq.s32.totalorder %s37, 1
      %p291 = por %p289, %p290
      %p293 = scmp.ne.s32.totalorder %s278, %s292
      %p294 = scmp.eq.s32.totalorder %s37, 0
      %p295 = por %p293, %p294
      %s297 = sadd.s32 %s296, 1
      %p300 = scmp.eq.s32.totalorder %s31, 1
      %p301 = scmp.ne.s32.totalorder %s296, %s298
      %p302 = scmp.eq.s32.totalorder %s31, 0
      %p303 = por %p301, %p302
      %p304 = scmp.ne.s32.totalorder %s296, %s298
      %p305 = scmp.eq.s32.totalorder %s36, 1
      %p306 = por %p304, %p305
      %p307 = scmp.ne.s32.totalorder %s298, %s299
      %p308 = scmp.eq.s32.totalorder %s36, 0
      %p309 = por %p307, %p308
      %p310 = scmp.ne.s32.totalorder %s298, %s299
      %p311 = scmp.eq.s32.totalorder %s37, 1
      %p312 = por %p310, %p311
      %p314 = scmp.ne.s32.totalorder %s299, %s313
      %p315 = scmp.eq.s32.totalorder %s37, 0
      %p316 = por %p314, %p315
      %s317 = ssub.s32 %s31, %s38
      %p318 = scmp.eq.s32.totalorder %s317, 0
      %s320 = sadd.s32 %s319, 1
      %s321 = scalar_select %p318, %s319, %s320
      %p324 = pneg %p318
      %p325 = scmp.eq.s32.totalorder %s31, 1
      %p326 = por %p324, %p325
      %p327 = scmp.ne.s32.totalorder %s319, %s322
      %p328 = scmp.eq.s32.totalorder %s31, 0
      %p329 = por %p327, %p328
      %p330 = scmp.ne.s32.totalorder %s319, %s322
      %p331 = scmp.eq.s32.totalorder %s36, 1
      %p332 = por %p330, %p331
      %p333 = scmp.ne.s32.totalorder %s322, %s323
      %p334 = scmp.eq.s32.totalorder %s36, 0
      %p335 = por %p333, %p334
      %p336 = scmp.ne.s32.totalorder %s322, %s323
      %p337 = scmp.eq.s32.totalorder %s37, 1
      %p338 = por %p336, %p337
      %p340 = scmp.ne.s32.totalorder %s323, %s339
      %p341 = scmp.eq.s32.totalorder %s37, 0
      %p342 = por %p340, %p341
      %p343 = scmp.le.s32.totalorder 1, %s31
      %p344 = scmp.lt.s32.totalorder %s31, 3
      %p345 = pnand %p343, %p344
      %p346 = pneg %p345
      // Predicated region
      $region9: #{tpu_custom_call.1} parent=5 // pred_check
        _
      $region10: #{tpu_custom_call.1} parent=5 // pred_check_branch
        %348 = sbr.rel (%p345) target = $region12
      $region11: #{tpu_custom_call.1} parent=5 // pred_region
        %s349 = ssub.s32 %s31, 1
        // Predicated region
        $region13: #{tpu_custom_call.1} parent=11 // pred_check
          %p350 = pneg %p78
        $region14: #{tpu_custom_call.1} parent=11 // pred_check_branch
          %352 = sbr.rel (%p350) target = $region16
        $region15: #{tpu_custom_call.1} parent=11 // pred_region
          %s354 = ssub.s32 1216, 1216
          %355 = vsyncadd [#allocation6], %s354
          %s356 = sshll.u32 [#allocation5], 4
          %s357 = int_to_ptr.vmem [resolvable:$true] %s356
          %362 = dma.hbm_to_vmem [thread:$0]  %s1, 1216, %s357, [#allocation6], 64, 64, 4
        $region16: #{tpu_custom_call.1} parent=11 // pred_fallthru
          _
        // Predicated region
        $region17: #{tpu_custom_call.1} parent=11 // pred_check
          %p363 = pneg %p99
        $region18: #{tpu_custom_call.1} parent=11 // pred_check_branch
          %365 = sbr.rel (%p363) target = $region20
        $region19: #{tpu_custom_call.1} parent=11 // pred_region
          %s367 = ssub.s32 16, 16
          %368 = vsyncadd [#allocation6], %s367
          %s370 = sshll.u32 [#allocation7], 4
          %s371 = int_to_ptr.vmem [resolvable:$true] %s370
          %373 = dma.hbm_to_vmem [thread:$0]  %s2, 16, %s371, [#allocation6]
        $region20: #{tpu_custom_call.1} parent=11 // pred_fallthru
          _
        // Predicated region
        $region21: #{tpu_custom_call.1} parent=11 // pred_check
          %p374 = pneg %p120
        $region22: #{tpu_custom_call.1} parent=11 // pred_check_branch
          %376 = sbr.rel (%p374) target = $region24
        $region23: #{tpu_custom_call.1} parent=11 // pred_region
          %s378 = ssub.s32 1536, 1536
          %379 = vsyncadd [#allocation9], %s378
          %s380 = sshll.u32 [#allocation8], 4
          %s381 = int_to_ptr.vmem [resolvable:$true] %s380
          %386 = dma.hbm_to_vmem [thread:$0]  %s3, 1536, %s381, [#allocation9], 192, 192, 12
        $region24: #{tpu_custom_call.1} parent=11 // pred_fallthru
          _
        // Predicated region
        $region25: #{tpu_custom_call.1} parent=11 // pred_check
          %p387 = pneg %p141
        $region26: #{tpu_custom_call.1} parent=11 // pred_check_branch
          %389 = sbr.rel (%p387) target = $region28
        $region27: #{tpu_custom_call.1} parent=11 // pred_region
          %s391 = ssub.s32 16, 16
          %392 = vsyncadd [#allocation9], %s391
          %s394 = sshll.u32 [#allocation10], 4
          %s395 = int_to_ptr.vmem [resolvable:$true] %s394
          %397 = dma.hbm_to_vmem [thread:$0]  %s4, 16, %s395, [#allocation9]
        $region28: #{tpu_custom_call.1} parent=11 // pred_fallthru
          _
        // Predicated region
        $region29: #{tpu_custom_call.1} parent=11 // pred_check
          %p398 = pneg %p162
        $region30: #{tpu_custom_call.1} parent=11 // pred_check_branch
          %400 = sbr.rel (%p398) target = $region32
        $region31: #{tpu_custom_call.1} parent=11 // pred_region
          %s402 = ssub.s32 1024, 1024
          %403 = vsyncadd [#allocation12], %s402
          %s404 = sshll.u32 [#allocation11], 4
          %s405 = int_to_ptr.vmem [resolvable:$true] %s404
          %410 = dma.hbm_to_vmem [thread:$0]  %s5, 1024, %s405, [#allocation12], 128, 128, 8
        $region32: #{tpu_custom_call.1} parent=11 // pred_fallthru
          _
        // Predicated region
        $region33: #{tpu_custom_call.1} parent=11 // pred_check
          %p411 = pneg %p183
        $region34: #{tpu_custom_call.1} parent=11 // pred_check_branch
          %413 = sbr.rel (%p411) target = $region36
        $region35: #{tpu_custom_call.1} parent=11 // pred_region
          %s415 = ssub.s32 16, 16
          %416 = vsyncadd [#allocation12], %s415
          %s418 = sshll.u32 [#allocation13], 4
          %s419 = int_to_ptr.vmem [resolvable:$true] %s418
          %421 = dma.hbm_to_vmem [thread:$0]  %s6, 16, %s419, [#allocation12]
        $region36: #{tpu_custom_call.1} parent=11 // pred_fallthru
          _
        // Predicated region
        $region37: #{tpu_custom_call.1} parent=11 // pred_check
          %p422 = pneg %p204
        $region38: #{tpu_custom_call.1} parent=11 // pred_check_branch
          %424 = sbr.rel (%p422) target = $region40
        $region39: #{tpu_custom_call.1} parent=11 // pred_region
          %s426 = ssub.s32 1024, 1024
          %427 = vsyncadd [#allocation15], %s426
          %s428 = sshll.u32 [#allocation14], 4
          %s429 = int_to_ptr.vmem [resolvable:$true] %s428
          %434 = dma.hbm_to_vmem [thread:$0]  %s7, 1024, %s429, [#allocation15], 128, 128, 8
        $region40: #{tpu_custom_call.1} parent=11 // pred_fallthru
          _
        // Predicated region
        $region41: #{tpu_custom_call.1} parent=11 // pred_check
          %p435 = pneg %p225
        $region42: #{tpu_custom_call.1} parent=11 // pred_check_branch
          %437 = sbr.rel (%p435) target = $region44
        $region43: #{tpu_custom_call.1} parent=11 // pred_region
          %s439 = ssub.s32 16, 16
          %440 = vsyncadd [#allocation15], %s439
          %s442 = sshll.u32 [#allocation16], 4
          %s443 = int_to_ptr.vmem [resolvable:$true] %s442
          %445 = dma.hbm_to_vmem [thread:$0]  %s8, 16, %s443, [#allocation15]
        $region44: #{tpu_custom_call.1} parent=11 // pred_fallthru
          _
        // Predicated region
        $region45: #{tpu_custom_call.1} parent=11 // pred_check
          %p446 = pneg %p246
        $region46: #{tpu_custom_call.1} parent=11 // pred_check_branch
          %448 = sbr.rel (%p446) target = $region48
        $region47: #{tpu_custom_call.1} parent=11 // pred_region
          %s450 = ssub.s32 1024, 1024
          %451 = vsyncadd [#allocation18], %s450
          %s452 = sshll.u32 [#allocation17], 4
          %s453 = int_to_ptr.vmem [resolvable:$true] %s452
          %458 = dma.hbm_to_vmem [thread:$0]  %s9, 1024, %s453, [#allocation18], 64, 64, 4
        $region48: #{tpu_custom_call.1} parent=11 // pred_fallthru
          _
        // Predicated region
        $region49: #{tpu_custom_call.1} parent=11 // pred_check
          %p459 = pneg %p267
        $region50: #{tpu_custom_call.1} parent=11 // pred_check_branch
          %461 = sbr.rel (%p459) target = $region52
        $region51: #{tpu_custom_call.1} parent=11 // pred_region
          %s463 = ssub.s32 16, 16
          %464 = vsyncadd [#allocation18], %s463
          %s466 = sshll.u32 [#allocation19], 4
          %s467 = int_to_ptr.vmem [resolvable:$true] %s466
          %469 = dma.hbm_to_vmem [thread:$0]  %s10, 16, %s467, [#allocation18]
        $region52: #{tpu_custom_call.1} parent=11 // pred_fallthru
          _
        // Predicated region
        $region53: #{tpu_custom_call.1} parent=11 // pred_check
          %p470 = pneg %p288
        $region54: #{tpu_custom_call.1} parent=11 // pred_check_branch
          %472 = sbr.rel (%p470) target = $region56
        $region55: #{tpu_custom_call.1} parent=11 // pred_region
          %s474 = ssub.s32 1024, 1024
          %475 = vsyncadd [#allocation21], %s474
          %s476 = sshll.u32 [#allocation20], 4
          %s477 = int_to_ptr.vmem [resolvable:$true] %s476
          %482 = dma.hbm_to_vmem [thread:$0]  %s11, 1024, %s477, [#allocation21], 128, 128, 8
        $region56: #{tpu_custom_call.1} parent=11 // pred_fallthru
          _
        // Predicated region
        $region57: #{tpu_custom_call.1} parent=11 // pred_check
          %p483 = pneg %p309
        $region58: #{tpu_custom_call.1} parent=11 // pred_check_branch
          %485 = sbr.rel (%p483) target = $region60
        $region59: #{tpu_custom_call.1} parent=11 // pred_region
          %s487 = ssub.s32 16, 16
          %488 = vsyncadd [#allocation21], %s487
          %s490 = sshll.u32 [#allocation22], 4
          %s491 = int_to_ptr.vmem [resolvable:$true] %s490
          %493 = dma.hbm_to_vmem [thread:$0]  %s12, 16, %s491, [#allocation21]
        $region60: #{tpu_custom_call.1} parent=11 // pred_fallthru
          _
      $region12: #{tpu_custom_call.1} parent=5 // pred_fallthru
        _
      %p494 = scmp.lt.s32.totalorder %s31, 2
      // Predicated region
      $region61: #{tpu_custom_call.1} parent=5 // pred_check
        %p495 = pneg %p494
      $region62: #{tpu_custom_call.1} parent=5 // pred_check_branch
        %497 = sbr.rel (%p495) target = $region64
      $region63: #{tpu_custom_call.1} parent=5 // pred_region
        // Predicated region
        $region65: #{tpu_custom_call.1} parent=63 // pred_check
          %p498 = pneg %p51
        $region66: #{tpu_custom_call.1} parent=63 // pred_check_branch
          %500 = sbr.rel (%p498) target = $region68
        $region67: #{tpu_custom_call.1} parent=63 // pred_region
          %s501 = sand.u32 %s41, 1
          %s502 = scalar_lea.sflag [#allocation3], %s501
          %s503 = sand.u32 %s41, 1
          %s504 = smul.addr %s503, 1440
          %s505 = scalar_lea.vmem [#allocation2], %s504
          %s507 = ssub.s32 23040, 23040
          %508 = vsyncadd %s502, %s507
          %s509 = smul.addr %s31, 2
          %s510 = smul.addr %s509, 128
          %s511 = scalar_lea.hbm %s0, %s510
          %s512 = sshll.u32 %s505, 4
          %s513 = int_to_ptr.vmem [resolvable:$true] %s512
          %518 = dma.hbm_to_vmem [thread:$0]  %s511, 23040, %s513, %s502, 512, 256, 16
        $region68: #{tpu_custom_call.1} parent=63 // pred_fallthru
          _
      $region64: #{tpu_custom_call.1} parent=5 // pred_fallthru
        _
      %p519 = scmp.le.s32.totalorder 1, %s31
      %p520 = scmp.lt.s32.totalorder %s31, 3
      %p521 = pnand %p519, %p520
      %p522 = pneg %p521
      // Predicated region
      $region69: #{tpu_custom_call.1} parent=5 // pred_check
        _
      $region70: #{tpu_custom_call.1} parent=5 // pred_check_branch
        %524 = sbr.rel (%p521) target = $region72
      $region71: #{tpu_custom_call.1} parent=5 // pred_region
        %s525 = ssub.s32 %s31, 1
        %s526 = sand.u32 %s44, 1
        %s527 = scalar_lea.sflag [#allocation3], %s526
        %s528 = sand.u32 %s44, 1
        %s529 = smul.addr %s528, 1440
        %s530 = scalar_lea.vmem [#allocation2], %s529
        // Predicated region
        $region73: #{tpu_custom_call.1} parent=71 // pred_check
          %p531 = pneg %p57
        $region74: #{tpu_custom_call.1} parent=71 // pred_check_branch
          %533 = sbr.rel (%p531) target = $region76
        $region75: #{tpu_custom_call.1} parent=71 // pred_region
          %534 = dma.done %s527, 23040
        $region76: #{tpu_custom_call.1} parent=71 // pred_fallthru
          _
        // Predicated region
        $region77: #{tpu_custom_call.1} parent=71 // pred_check
          %p535 = pneg %p78
        $region78: #{tpu_custom_call.1} parent=71 // pred_check_branch
          %537 = sbr.rel (%p535) target = $region80
        $region79: #{tpu_custom_call.1} parent=71 // pred_region
          %538 = dma.done [#allocation6], 1216
        $region80: #{tpu_custom_call.1} parent=71 // pred_fallthru
          _
        // Predicated region
        $region81: #{tpu_custom_call.1} parent=71 // pred_check
          %p539 = pneg %p99
        $region82: #{tpu_custom_call.1} parent=71 // pred_check_branch
          %541 = sbr.rel (%p539) target = $region84
        $region83: #{tpu_custom_call.1} parent=71 // pred_region
          %542 = dma.done [#allocation6], 16
        $region84: #{tpu_custom_call.1} parent=71 // pred_fallthru
          _
        // Predicated region
        $region85: #{tpu_custom_call.1} parent=71 // pred_check
          %p543 = pneg %p120
        $region86: #{tpu_custom_call.1} parent=71 // pred_check_branch
          %545 = sbr.rel (%p543) target = $region88
        $region87: #{tpu_custom_call.1} parent=71 // pred_region
          %546 = dma.done [#allocation9], 1536
        $region88: #{tpu_custom_call.1} parent=71 // pred_fallthru
          _
        // Predicated region
        $region89: #{tpu_custom_call.1} parent=71 // pred_check
          %p547 = pneg %p141
        $region90: #{tpu_custom_call.1} parent=71 // pred_check_branch
          %549 = sbr.rel (%p547) target = $region92
        $region91: #{tpu_custom_call.1} parent=71 // pred_region
          %550 = dma.done [#allocation9], 16
        $region92: #{tpu_custom_call.1} parent=71 // pred_fallthru
          _
        // Predicated region
        $region93: #{tpu_custom_call.1} parent=71 // pred_check
          %p551 = pneg %p162
        $region94: #{tpu_custom_call.1} parent=71 // pred_check_branch
          %553 = sbr.rel (%p551) target = $region96
        $region95: #{tpu_custom_call.1} parent=71 // pred_region
          %554 = dma.done [#allocation12], 1024
        $region96: #{tpu_custom_call.1} parent=71 // pred_fallthru
          _
        // Predicated region
        $region97: #{tpu_custom_call.1} parent=71 // pred_check
          %p555 = pneg %p183
        $region98: #{tpu_custom_call.1} parent=71 // pred_check_branch
          %557 = sbr.rel (%p555) target = $region100
        $region99: #{tpu_custom_call.1} parent=71 // pred_region
          %558 = dma.done [#allocation12], 16
        $region100: #{tpu_custom_call.1} parent=71 // pred_fallthru
          _
        // Predicated region
        $region101: #{tpu_custom_call.1} parent=71 // pred_check
          %p559 = pneg %p204
        $region102: #{tpu_custom_call.1} parent=71 // pred_check_branch
          %561 = sbr.rel (%p559) target = $region104
        $region103: #{tpu_custom_call.1} parent=71 // pred_region
          %562 = dma.done [#allocation15], 1024
        $region104: #{tpu_custom_call.1} parent=71 // pred_fallthru
          _
        // Predicated region
        $region105: #{tpu_custom_call.1} parent=71 // pred_check
          %p563 = pneg %p225
        $region106: #{tpu_custom_call.1} parent=71 // pred_check_branch
          %565 = sbr.rel (%p563) target = $region108
        $region107: #{tpu_custom_call.1} parent=71 // pred_region
          %566 = dma.done [#allocation15], 16
        $region108: #{tpu_custom_call.1} parent=71 // pred_fallthru
          _
        // Predicated region
        $region109: #{tpu_custom_call.1} parent=71 // pred_check
          %p567 = pneg %p246
        $region110: #{tpu_custom_call.1} parent=71 // pred_check_branch
          %569 = sbr.rel (%p567) target = $region112
        $region111: #{tpu_custom_call.1} parent=71 // pred_region
          %570 = dma.done [#allocation18], 1024
        $region112: #{tpu_custom_call.1} parent=71 // pred_fallthru
          _
        // Predicated region
        $region113: #{tpu_custom_call.1} parent=71 // pred_check
          %p571 = pneg %p267
        $region114: #{tpu_custom_call.1} parent=71 // pred_check_branch
          %573 = sbr.rel (%p571) target = $region116
        $region115: #{tpu_custom_call.1} parent=71 // pred_region
          %574 = dma.done [#allocation18], 16
        $region116: #{tpu_custom_call.1} parent=71 // pred_fallthru
          _
        // Predicated region
        $region117: #{tpu_custom_call.1} parent=71 // pred_check
          %p575 = pneg %p288
        $region118: #{tpu_custom_call.1} parent=71 // pred_check_branch
          %577 = sbr.rel (%p575) target = $region120
        $region119: #{tpu_custom_call.1} parent=71 // pred_region
          %578 = dma.done [#allocation21], 1024
        $region120: #{tpu_custom_call.1} parent=71 // pred_fallthru
          _
        // Predicated region
        $region121: #{tpu_custom_call.1} parent=71 // pred_check
          %p579 = pneg %p309
        $region122: #{tpu_custom_call.1} parent=71 // pred_check_branch
          %581 = sbr.rel (%p579) target = $region124
        $region123: #{tpu_custom_call.1} parent=71 // pred_region
          %582 = dma.done [#allocation21], 16
        $region124: #{tpu_custom_call.1} parent=71 // pred_fallthru
          _
        %s583 = sand.u32 %s44, 1
        %s584 = scalar_lea.sflag [#allocation3], %s583
        %s585 = sand.u32 %s44, 1
        %s586 = smul.addr %s585, 1440
        %s587 = scalar_lea.vmem [#allocation2], %s586
        %p588 = pneg %p57
        %p589 = pneg %p54
        %p590 = pneg %p78
        %p591 = pneg %p75
        %p592 = pneg %p99
        %p593 = pneg %p96
        %p594 = pneg %p120
        %p595 = pneg %p117
        %p596 = pneg %p141
        %p597 = pneg %p138
        %p598 = pneg %p162
        %p599 = pneg %p159
        %p600 = pneg %p183
        %p601 = pneg %p180
        %p602 = pneg %p204
        %p603 = pneg %p201
        %p604 = pneg %p225
        %p605 = pneg %p222
        %p606 = pneg %p246
        %p607 = pneg %p243
        %p608 = pneg %p267
        %p609 = pneg %p264
        %p610 = pneg %p288
        %p611 = pneg %p285
        %p612 = pneg %p309
        %p613 = pneg %p306
        %p614 = pneg %p335
        %p615 = pneg %p332
        %s616 = sand.u32 %s322, 1
        %s617 = scalar_lea.sflag [#allocation4], %s616
        %s618 = sand.u32 %s322, 1
        %s619 = smul.addr %s618, 8
        %s620 = scalar_lea.vmem [#allocation23], %s619
        %v622 = vld [vmem:[%s530] sm:$0xff]
        %v623 = vld [vmem:[%s530 + $0x8] sm:$0xff]
        %v624 = vld [vmem:[%s530 + $0x10] sm:$0xff]
        %v625 = vld [vmem:[%s530 + $0x18] sm:$0xff]
        %v626 = vld [vmem:[%s530 + $0x20] sm:$0xff]
        %v627 = vld [vmem:[%s530 + $0x28] sm:$0xff]
        %v628 = vld [vmem:[%s530 + $0x30] sm:$0xff]
        %v629 = vld [vmem:[%s530 + $0x38] sm:$0xff]
        %v630 = vld [vmem:[%s530 + $0x40] sm:$0xff]
        %v631 = vld [vmem:[%s530 + $0x48] sm:$0xff]
        %v632 = vld [vmem:[%s530 + $0x50] sm:$0xff]
        %v633 = vld [vmem:[%s530 + $0x58] sm:$0xff]
        %v634 = vld [vmem:[%s530 + $0x60] sm:$0xff]
        %v635 = vld [vmem:[%s530 + $0x68] sm:$0xff]
        %v636 = vld [vmem:[%s530 + $0x70] sm:$0xff]
        %v637 = vld [vmem:[%s530 + $0x78] sm:$0xff]
        %v638 = vld [vmem:[%s530 + $0x80] sm:$0xff]
        %v639 = vld [vmem:[%s530 + $0x88] sm:$0xff]
        %v640 = vld [vmem:[%s530 + $0x90] sm:$0xff]
        %v641 = vld [vmem:[%s530 + $0x98] sm:$0xff]
        %v642 = vld [vmem:[%s530 + $0xa0] sm:$0xff]
        %v643 = vld [vmem:[%s530 + $0xa8] sm:$0xff]
        %v644 = vld [vmem:[%s530 + $0xb0] sm:$0xff]
        %v645 = vld [vmem:[%s530 + $0xb8] sm:$0xff]
        %v646 = vld [vmem:[%s530 + $0xc0] sm:$0xff]
        %v647 = vld [vmem:[%s530 + $0xc8] sm:$0xff]
        %v648 = vld [vmem:[%s530 + $0xd0] sm:$0xff]
        %v649 = vld [vmem:[%s530 + $0xd8] sm:$0xff]
        %v650 = vld [vmem:[%s530 + $0xe0] sm:$0xff]
        %v651 = vld [vmem:[%s530 + $0xe8] sm:$0xff]
        %v652 = vld [vmem:[%s530 + $0xf0] sm:$0xff]
        %v653 = vld [vmem:[%s530 + $0xf8] sm:$0xff]
        %v654 = vld [vmem:[%s530 + $0x100] sm:$0xff]
        %v655 = vld [vmem:[%s530 + $0x108] sm:$0xff]
        %v656 = vld [vmem:[%s530 + $0x110] sm:$0xff]
        %v657 = vld [vmem:[%s530 + $0x118] sm:$0xff]
        %v658 = vld [vmem:[%s530 + $0x120] sm:$0xff]
        %v659 = vld [vmem:[%s530 + $0x128] sm:$0xff]
        %v660 = vld [vmem:[%s530 + $0x130] sm:$0xff]
        %v661 = vld [vmem:[%s530 + $0x138] sm:$0xff]
        %v662 = vld [vmem:[%s530 + $0x140] sm:$0xff]
        %v663 = vld [vmem:[%s530 + $0x148] sm:$0xff]
        %v664 = vld [vmem:[%s530 + $0x150] sm:$0xff]
        %v665 = vld [vmem:[%s530 + $0x158] sm:$0xff]
        %v666 = vld [vmem:[%s530 + $0x160] sm:$0xff]
        %v667 = vld [vmem:[%s530 + $0x168] sm:$0xff]
        %v668 = vld [vmem:[%s530 + $0x170] sm:$0xff]
        %v669 = vld [vmem:[%s530 + $0x178] sm:$0xff]
        %v670 = vld [vmem:[%s530 + $0x180] sm:$0xff]
        %v671 = vld [vmem:[%s530 + $0x188] sm:$0xff]
        %v672 = vld [vmem:[%s530 + $0x190] sm:$0xff]
        %v673 = vld [vmem:[%s530 + $0x198] sm:$0xff]
        %v674 = vld [vmem:[%s530 + $0x1a0] sm:$0xff]
        %v675 = vld [vmem:[%s530 + $0x1a8] sm:$0xff]
        %v676 = vld [vmem:[%s530 + $0x1b0] sm:$0xff]
        %v677 = vld [vmem:[%s530 + $0x1b8] sm:$0xff]
        %v678 = vld [vmem:[%s530 + $0x1c0] sm:$0xff]
        %v679 = vld [vmem:[%s530 + $0x1c8] sm:$0xff]
        %v680 = vld [vmem:[%s530 + $0x1d0] sm:$0xff]
        %v681 = vld [vmem:[%s530 + $0x1d8] sm:$0xff]
        %v682 = vld [vmem:[%s530 + $0x1e0] sm:$0xff]
        %v683 = vld [vmem:[%s530 + $0x1e8] sm:$0xff]
        %v684 = vld [vmem:[%s530 + $0x1f0] sm:$0xff]
        %v685 = vld [vmem:[%s530 + $0x1f8] sm:$0xff]
        %v686 = vld [vmem:[%s530 + $0x200] sm:$0xff]
        %v687 = vld [vmem:[%s530 + $0x208] sm:$0xff]
        %v688 = vld [vmem:[%s530 + $0x210] sm:$0xff]
        %v689 = vld [vmem:[%s530 + $0x218] sm:$0xff]
        %v690 = vld [vmem:[%s530 + $0x220] sm:$0xff]
        %v691 = vld [vmem:[%s530 + $0x228] sm:$0xff]
        %v692 = vld [vmem:[%s530 + $0x230] sm:$0xff]
        %v693 = vld [vmem:[%s530 + $0x238] sm:$0xff]
        %v694 = vld [vmem:[%s530 + $0x240] sm:$0xff]
        %v695 = vld [vmem:[%s530 + $0x248] sm:$0xff]
        %v696 = vld [vmem:[%s530 + $0x250] sm:$0xff]
        %v697 = vld [vmem:[%s530 + $0x258] sm:$0xff]
        %v698 = vld [vmem:[%s530 + $0x260] sm:$0xff]
        %v699 = vld [vmem:[%s530 + $0x268] sm:$0xff]
        %v700 = vld [vmem:[%s530 + $0x270] sm:$0xff]
        %v701 = vld [vmem:[%s530 + $0x278] sm:$0xff]
        %v702 = vld [vmem:[%s530 + $0x280] sm:$0xff]
        %v703 = vld [vmem:[%s530 + $0x288] sm:$0xff]
        %v704 = vld [vmem:[%s530 + $0x290] sm:$0xff]
        %v705 = vld [vmem:[%s530 + $0x298] sm:$0xff]
        %v706 = vld [vmem:[%s530 + $0x2a0] sm:$0xff]
        %v707 = vld [vmem:[%s530 + $0x2a8] sm:$0xff]
        %v708 = vld [vmem:[%s530 + $0x2b0] sm:$0xff]
        %v709 = vld [vmem:[%s530 + $0x2b8] sm:$0xff]
        %v710 = vld [vmem:[%s530 + $0x2c0] sm:$0xff]
        %v711 = vld [vmem:[%s530 + $0x2c8] sm:$0xff]
        %v712 = vld [vmem:[%s530 + $0x2d0] sm:$0xff]
        %v713 = vld [vmem:[%s530 + $0x2d8] sm:$0xff]
        %v714 = vld [vmem:[%s530 + $0x2e0] sm:$0xff]
        %v715 = vld [vmem:[%s530 + $0x2e8] sm:$0xff]
        %v716 = vld [vmem:[%s530 + $0x2f0] sm:$0xff]
        %v717 = vld [vmem:[%s530 + $0x2f8] sm:$0xff]
        %v718 = vld [vmem:[%s530 + $0x300] sm:$0xff]
        %v719 = vld [vmem:[%s530 + $0x308] sm:$0xff]
        %v720 = vld [vmem:[%s530 + $0x310] sm:$0xff]
        %v721 = vld [vmem:[%s530 + $0x318] sm:$0xff]
        %v722 = vld [vmem:[%s530 + $0x320] sm:$0xff]
        %v723 = vld [vmem:[%s530 + $0x328] sm:$0xff]
        %v724 = vld [vmem:[%s530 + $0x330] sm:$0xff]
        %v725 = vld [vmem:[%s530 + $0x338] sm:$0xff]
        %v726 = vld [vmem:[%s530 + $0x340] sm:$0xff]
        %v727 = vld [vmem:[%s530 + $0x348] sm:$0xff]
        %v728 = vld [vmem:[%s530 + $0x350] sm:$0xff]
        %v729 = vld [vmem:[%s530 + $0x358] sm:$0xff]
        %v730 = vld [vmem:[%s530 + $0x360] sm:$0xff]
        %v731 = vld [vmem:[%s530 + $0x368] sm:$0xff]
        %v732 = vld [vmem:[%s530 + $0x370] sm:$0xff]
        %v733 = vld [vmem:[%s530 + $0x378] sm:$0xff]
        %v734 = vld [vmem:[%s530 + $0x380] sm:$0xff]
        %v735 = vld [vmem:[%s530 + $0x388] sm:$0xff]
        %v736 = vld [vmem:[%s530 + $0x390] sm:$0xff]
        %v737 = vld [vmem:[%s530 + $0x398] sm:$0xff]
        %v738 = vld [vmem:[%s530 + $0x3a0] sm:$0xff]
        %v739 = vld [vmem:[%s530 + $0x3a8] sm:$0xff]
        %v740 = vld [vmem:[%s530 + $0x3b0] sm:$0xff]
        %v741 = vld [vmem:[%s530 + $0x3b8] sm:$0xff]
        %v742 = vld [vmem:[%s530 + $0x3c0] sm:$0xff]
        %v743 = vld [vmem:[%s530 + $0x3c8] sm:$0xff]
        %v744 = vld [vmem:[%s530 + $0x3d0] sm:$0xff]
        %v745 = vld [vmem:[%s530 + $0x3d8] sm:$0xff]
        %v746 = vld [vmem:[%s530 + $0x3e0] sm:$0xff]
        %v747 = vld [vmem:[%s530 + $0x3e8] sm:$0xff]
        %v748 = vld [vmem:[%s530 + $0x3f0] sm:$0xff]
        %v749 = vld [vmem:[%s530 + $0x3f8] sm:$0xff]
        %v750 = vld [vmem:[%s530 + $0x400] sm:$0xff]
        %v751 = vld [vmem:[%s530 + $0x408] sm:$0xff]
        %v752 = vld [vmem:[%s530 + $0x410] sm:$0xff]
        %v753 = vld [vmem:[%s530 + $0x418] sm:$0xff]
        %v754 = vld [vmem:[%s530 + $0x420] sm:$0xff]
        %v755 = vld [vmem:[%s530 + $0x428] sm:$0xff]
        %v756 = vld [vmem:[%s530 + $0x430] sm:$0xff]
        %v757 = vld [vmem:[%s530 + $0x438] sm:$0xff]
        %v758 = vld [vmem:[%s530 + $0x440] sm:$0xff]
        %v759 = vld [vmem:[%s530 + $0x448] sm:$0xff]
        %v760 = vld [vmem:[%s530 + $0x450] sm:$0xff]
        %v761 = vld [vmem:[%s530 + $0x458] sm:$0xff]
        %v762 = vld [vmem:[%s530 + $0x460] sm:$0xff]
        %v763 = vld [vmem:[%s530 + $0x468] sm:$0xff]
        %v764 = vld [vmem:[%s530 + $0x470] sm:$0xff]
        %v765 = vld [vmem:[%s530 + $0x478] sm:$0xff]
        %v766 = vld [vmem:[%s530 + $0x480] sm:$0xff]
        %v767 = vld [vmem:[%s530 + $0x488] sm:$0xff]
        %v768 = vld [vmem:[%s530 + $0x490] sm:$0xff]
        %v769 = vld [vmem:[%s530 + $0x498] sm:$0xff]
        %v770 = vld [vmem:[%s530 + $0x4a0] sm:$0xff]
        %v771 = vld [vmem:[%s530 + $0x4a8] sm:$0xff]
        %v772 = vld [vmem:[%s530 + $0x4b0] sm:$0xff]
        %v773 = vld [vmem:[%s530 + $0x4b8] sm:$0xff]
        %v774 = vld [vmem:[%s530 + $0x4c0] sm:$0xff]
        %v775 = vld [vmem:[%s530 + $0x4c8] sm:$0xff]
        %v776 = vld [vmem:[%s530 + $0x4d0] sm:$0xff]
        %v777 = vld [vmem:[%s530 + $0x4d8] sm:$0xff]
        %v778 = vld [vmem:[%s530 + $0x4e0] sm:$0xff]
        %v779 = vld [vmem:[%s530 + $0x4e8] sm:$0xff]
        %v780 = vld [vmem:[%s530 + $0x4f0] sm:$0xff]
        %v781 = vld [vmem:[%s530 + $0x4f8] sm:$0xff]
        %v782 = vld [vmem:[%s530 + $0x500] sm:$0xff]
        %v783 = vld [vmem:[%s530 + $0x508] sm:$0xff]
        %v784 = vld [vmem:[%s530 + $0x510] sm:$0xff]
        %v785 = vld [vmem:[%s530 + $0x518] sm:$0xff]
        %v786 = vld [vmem:[%s530 + $0x520] sm:$0xff]
        %v787 = vld [vmem:[%s530 + $0x528] sm:$0xff]
        %v788 = vld [vmem:[%s530 + $0x530] sm:$0xff]
        %v789 = vld [vmem:[%s530 + $0x538] sm:$0xff]
        %v790 = vld [vmem:[%s530 + $0x540] sm:$0xff]
        %v791 = vld [vmem:[%s530 + $0x548] sm:$0xff]
        %v792 = vld [vmem:[%s530 + $0x550] sm:$0xff]
        %v793 = vld [vmem:[%s530 + $0x558] sm:$0xff]
        %v794 = vld [vmem:[%s530 + $0x560] sm:$0xff]
        %v795 = vld [vmem:[%s530 + $0x568] sm:$0xff]
        %v796 = vld [vmem:[%s530 + $0x570] sm:$0xff]
        %v797 = vld [vmem:[%s530 + $0x578] sm:$0xff]
        %v798 = vld [vmem:[%s530 + $0x580] sm:$0xff]
        %v799 = vld [vmem:[%s530 + $0x588] sm:$0xff]
        %v800 = vld [vmem:[%s530 + $0x590] sm:$0xff]
        %v801 = vld [vmem:[%s530 + $0x598] sm:$0xff]
        %v802 = vpack.c.bf16 %v624, %v622
        %v803 = vpack.c.bf16 %v625, %v623
        %v804 = vpack.c.bf16 %v628, %v626
        %v805 = vpack.c.bf16 %v629, %v627
        %v806 = vpack.c.bf16 %v632, %v630
        %v807 = vpack.c.bf16 %v633, %v631
        %v808 = vpack.c.bf16 %v636, %v634
        %v809 = vpack.c.bf16 %v637, %v635
        %v810 = vpack.c.bf16 %v640, %v638
        %v811 = vpack.c.bf16 %v641, %v639
        %v812 = vpack.c.bf16 %v644, %v642
        %v813 = vpack.c.bf16 %v645, %v643
        %v814 = vpack.c.bf16 %v648, %v646
        %v815 = vpack.c.bf16 %v649, %v647
        %v816 = vpack.c.bf16 %v652, %v650
        %v817 = vpack.c.bf16 %v653, %v651
        %v818 = vpack.c.bf16 %v656, %v654
        %v819 = vpack.c.bf16 %v657, %v655
        %v820 = vpack.c.bf16 %v660, %v658
        %v821 = vpack.c.bf16 %v661, %v659
        %v822 = vpack.c.bf16 %v664, %v662
        %v823 = vpack.c.bf16 %v665, %v663
        %v824 = vpack.c.bf16 %v668, %v666
        %v825 = vpack.c.bf16 %v669, %v667
        %v826 = vpack.c.bf16 %v672, %v670
        %v827 = vpack.c.bf16 %v673, %v671
        %v828 = vpack.c.bf16 %v676, %v674
        %v829 = vpack.c.bf16 %v677, %v675
        %v830 = vpack.c.bf16 %v680, %v678
        %v831 = vpack.c.bf16 %v681, %v679
        %v832 = vpack.c.bf16 %v684, %v682
        %v833 = vpack.c.bf16 %v685, %v683
        %v834 = vpack.c.bf16 %v688, %v686
        %v835 = vpack.c.bf16 %v689, %v687
        %v836 = vpack.c.bf16 %v692, %v690
        %v837 = vpack.c.bf16 %v693, %v691
        %v838 = vpack.c.bf16 %v696, %v694
        %v839 = vpack.c.bf16 %v697, %v695
        %v840 = vpack.c.bf16 %v700, %v698
        %v841 = vpack.c.bf16 %v701, %v699
        %v842 = vpack.c.bf16 %v704, %v702
        %v843 = vpack.c.bf16 %v705, %v703
        %v844 = vpack.c.bf16 %v708, %v706
        %v845 = vpack.c.bf16 %v709, %v707
        %v846 = vpack.c.bf16 %v712, %v710
        %v847 = vpack.c.bf16 %v713, %v711
        %v848 = vpack.c.bf16 %v716, %v714
        %v849 = vpack.c.bf16 %v717, %v715
        %v850 = vpack.c.bf16 %v720, %v718
        %v851 = vpack.c.bf16 %v721, %v719
        %v852 = vpack.c.bf16 %v724, %v722
        %v853 = vpack.c.bf16 %v725, %v723
        %v854 = vpack.c.bf16 %v728, %v726
        %v855 = vpack.c.bf16 %v729, %v727
        %v856 = vpack.c.bf16 %v732, %v730
        %v857 = vpack.c.bf16 %v733, %v731
        %v858 = vpack.c.bf16 %v736, %v734
        %v859 = vpack.c.bf16 %v737, %v735
        %v860 = vpack.c.bf16 %v740, %v738
        %v861 = vpack.c.bf16 %v741, %v739
        %v862 = vpack.c.bf16 %v744, %v742
        %v863 = vpack.c.bf16 %v745, %v743
        %v864 = vpack.c.bf16 %v748, %v746
        %v865 = vpack.c.bf16 %v749, %v747
        %v866 = vpack.c.bf16 %v752, %v750
        %v867 = vpack.c.bf16 %v753, %v751
        %v868 = vpack.c.bf16 %v756, %v754
        %v869 = vpack.c.bf16 %v757, %v755
        %v870 = vpack.c.bf16 %v760, %v758
        %v871 = vpack.c.bf16 %v761, %v759
        %v872 = vpack.c.bf16 %v764, %v762
        %v873 = vpack.c.bf16 %v765, %v763
        %v874 = vpack.c.bf16 %v768, %v766
        %v875 = vpack.c.bf16 %v769, %v767
        %v876 = vpack.c.bf16 %v772, %v770
        %v877 = vpack.c.bf16 %v773, %v771
        %v878 = vpack.c.bf16 %v776, %v774
        %v879 = vpack.c.bf16 %v777, %v775
        %v880 = vpack.c.bf16 %v780, %v778
        %v881 = vpack.c.bf16 %v781, %v779
        %v882 = vpack.c.bf16 %v784, %v782
        %v883 = vpack.c.bf16 %v785, %v783
        %v884 = vpack.c.bf16 %v788, %v786
        %v885 = vpack.c.bf16 %v789, %v787
        %v886 = vpack.c.bf16 %v792, %v790
        %v887 = vpack.c.bf16 %v793, %v791
        %v888 = vpack.c.bf16 %v796, %v794
        %v889 = vpack.c.bf16 %v797, %v795
        %v890 = vpack.c.bf16 %v800, %v798
        %v891 = vpack.c.bf16 %v801, %v799
        %v892 = vld [vmem:[#allocation5] sm:$0xf]
        %v893 = vld [vmem:[#allocation5 + $0x4] sm:$0xf]
        %v894 = vld [vmem:[#allocation5 + $0x8] sm:$0xf]
        %v895 = vld [vmem:[#allocation5 + $0xc] sm:$0xf]
        %v896 = vld [vmem:[#allocation5 + $0x10] sm:$0xf]
        %v897 = vld [vmem:[#allocation5 + $0x14] sm:$0xf]
        %v898 = vld [vmem:[#allocation5 + $0x18] sm:$0xf]
        %v899 = vld [vmem:[#allocation5 + $0x1c] sm:$0xf]
        %v900 = vld [vmem:[#allocation5 + $0x20] sm:$0xf]
        %v901 = vld [vmem:[#allocation5 + $0x24] sm:$0xf]
        %v902 = vld [vmem:[#allocation5 + $0x28] sm:$0xf]
        %v903 = vld [vmem:[#allocation5 + $0x2c] sm:$0xf]
        %v904 = vld [vmem:[#allocation5 + $0x30] sm:$0xf]
        %v905 = vld [vmem:[#allocation5 + $0x34] sm:$0xf]
        %v906 = vld [vmem:[#allocation5 + $0x38] sm:$0xf]
        %v907 = vld [vmem:[#allocation5 + $0x3c] sm:$0xf]
        %v908 = vld [vmem:[#allocation5 + $0x40] sm:$0xf]
        %v909 = vld [vmem:[#allocation5 + $0x44] sm:$0xf]
        %v910 = vld [vmem:[#allocation5 + $0x48] sm:$0x7]
        %v911 = vld [vmem:[#allocation7] sm:$0x1]
        %v913 = vlaneseq
        %v914 = vshrl.u32 %v913, 7
        %v915 = vsub.s32 0, %v914
        %v916 = vrot.slane %v911, %v915
        %v937 = vunpack.c.l.b16 %v892
        %v938 = vunpack.c.l.b16 %v893
        %v939 = vunpack.c.l.b16 %v894
        %v940 = vunpack.c.l.b16 %v895
        %v941 = vunpack.c.l.b16 %v896
        %v942 = vunpack.c.l.b16 %v897
        %v943 = vunpack.c.l.b16 %v898
        %v944 = vunpack.c.l.b16 %v899
        %v945 = vunpack.c.l.b16 %v900
        %v946 = vunpack.c.l.b16 %v901
        %v947 = vunpack.c.l.b16 %v902
        %v948 = vunpack.c.l.b16 %v903
        %v949 = vunpack.c.l.b16 %v904
        %v950 = vunpack.c.l.b16 %v905
        %v951 = vunpack.c.l.b16 %v906
        %v952 = vunpack.c.l.b16 %v907
        %v953 = vunpack.c.l.b16 %v908
        %v954 = vunpack.c.l.b16 %v909
        %v955 = vunpack.c.l.b16 %v910
        %v956 = vpack.c.b16 %v938, %v937
        %v957 = vpack.c.b16 %v940, %v939
        %v958 = vpack.c.b16 %v942, %v941
        %v959 = vpack.c.b16 %v944, %v943
        %v960 = vpack.c.b16 %v946, %v945
        %v961 = vpack.c.b16 %v948, %v947
        %v962 = vpack.c.b16 %v950, %v949
        %v963 = vpack.c.b16 %v952, %v951
        %v964 = vpack.c.b16 %v954, %v953
        %v965 = vpack.c.b16 %v955, %v955
        %vm975 = vcmask 179200
        %v977 = vsel %vm975, %v803, 0
        %v980 = vsel %vm975, %v805, 0
        %v983 = vsel %vm975, %v807, 0
        %v986 = vsel %vm975, %v809, 0
        %v989 = vsel %vm975, %v811, 0
        %v992 = vsel %vm975, %v813, 0
        %v995 = vsel %vm975, %v815, 0
        %v998 = vsel %vm975, %v817, 0
        %v1001 = vsel %vm975, %v819, 0
        %v1004 = vsel %vm975, %v821, 0
        %v1007 = vsel %vm975, %v823, 0
        %v1010 = vsel %vm975, %v825, 0
        %v1013 = vsel %vm975, %v827, 0
        %v1016 = vsel %vm975, %v829, 0
        %v1019 = vsel %vm975, %v831, 0
        %v1022 = vsel %vm975, %v833, 0
        %v1025 = vsel %vm975, %v835, 0
        %v1028 = vsel %vm975, %v837, 0
        %v1031 = vsel %vm975, %v839, 0
        %v1034 = vsel %vm975, %v841, 0
        %v1037 = vsel %vm975, %v843, 0
        %v1040 = vsel %vm975, %v845, 0
        %v1043 = vsel %vm975, %v847, 0
        %v1046 = vsel %vm975, %v849, 0
        %v1049 = vsel %vm975, %v851, 0
        %v1052 = vsel %vm975, %v853, 0
        %v1055 = vsel %vm975, %v855, 0
        %v1058 = vsel %vm975, %v857, 0
        %v1061 = vsel %vm975, %v859, 0
        %v1064 = vsel %vm975, %v861, 0
        %v1067 = vsel %vm975, %v863, 0
        %v1070 = vsel %vm975, %v865, 0
        %v1073 = vsel %vm975, %v867, 0
        %v1076 = vsel %vm975, %v869, 0
        %v1079 = vsel %vm975, %v871, 0
        %v1082 = vsel %vm975, %v873, 0
        %v1085 = vsel %vm975, %v875, 0
        %v1088 = vsel %vm975, %v877, 0
        %v1091 = vsel %vm975, %v879, 0
        %v1094 = vsel %vm975, %v881, 0
        %v1097 = vsel %vm975, %v883, 0
        %v1100 = vsel %vm975, %v885, 0
        %v1103 = vsel %vm975, %v887, 0
        %v1106 = vsel %vm975, %v889, 0
        %v1109 = vsel %vm975, %v891, 0
        %vm1111 = vcmask 1042432
        %v1113 = vsel %vm1111, %v965, 0
        %1115 = vmatprep.subr.bf16.mxu0 0
        %1116 = vmatpush1.bf16.msra.mxu0 %v956
        %1117 = vmatprep.subr.bf16.mxu0 0
        %1118 = vmatpush1.bf16.msra.mxu0 %v957
        %1119 = vmatprep.subr.bf16.mxu0 0
        %1120 = vmatpush1.bf16.msra.mxu0 %v958
        %1121 = vmatprep.subr.bf16.mxu0 0
        %1122 = vmatpush1.bf16.msra.mxu0 %v959
        %1123 = vmatprep.subr.bf16.mxu0 0
        %1124 = vmatpush1.bf16.msra.mxu0 %v960
        %1125 = vmatprep.subr.bf16.mxu0 0
        %1126 = vmatpush1.bf16.msra.mxu0 %v961
        %1127 = vmatprep.subr.bf16.mxu0 0
        %1128 = vmatpush1.bf16.msra.mxu0 %v962
        %1129 = vmatprep.subr.bf16.mxu0 0
        %1130 = vmatpush1.bf16.msra.mxu0 %v963
        %1131 = vmatprep.subr.bf16.mxu0 0
        %1132 = vmatpush1.bf16.msra.mxu0 %v964
        %1133 = vmatprep.subr.bf16.mxu0 0
        %1134 = vmatpush1.bf16.msra.mxu0 %v1113
        %1135 = vmatprep.subr.bf16.mxu0 0
        %1136 = vmatpush1.bf16.msra.mxu0 0
        %1137 = vmatprep.subr.bf16.mxu0 0
        %1138 = vmatpush1.bf16.msra.mxu0 0
        %1139 = vmatprep.subr.bf16.mxu0 0
        %1140 = vmatpush1.bf16.msra.mxu0 0
        %1141 = vmatprep.subr.bf16.mxu0 0
        %1142 = vmatpush1.bf16.msra.mxu0 0
        %1143 = vmatprep.subr.bf16.mxu0 0
        %1144 = vmatpush1.bf16.msra.mxu0 0
        %1145 = vmatprep.subr.bf16.mxu0 0
        %1146 = vmatpush1.bf16.msra.mxu0 0
        %1147 = vmatprep.mubr.bf16.mxu0 %v977
        %1148 = vmatmul.mubr.bf16.gmra.mrb[0].mxu0 %v802
        %v1149 = vpop.f32.mrb[0].mxu0
        %v1150 = vadd.f32 %v916, %v1149
        %v1151 = vpop.f32.mrb[0].mxu0
        %v1152 = vpop.f32.mrb[0].mxu0
        %v1153 = vadd.f32 %v916, %v1152
        %v1154 = vpop.f32.mrb[0].mxu0
        %1155 = vmatprep.mubr.bf16.mxu0 %v980
        %1156 = vmatmul.mubr.bf16.gmra.mrb[0].mxu0 %v804
        %v1157 = vpop.f32.mrb[0].mxu0
        %v1158 = vadd.f32 %v916, %v1157
        %v1159 = vpop.f32.mrb[0].mxu0
        %v1160 = vpop.f32.mrb[0].mxu0
        %v1161 = vadd.f32 %v916, %v1160
        %v1162 = vpop.f32.mrb[0].mxu0
        %1163 = vmatprep.mubr.bf16.mxu0 %v983
        %1164 = vmatmul.mubr.bf16.gmra.mrb[0].mxu0 %v806
        %v1165 = vpop.f32.mrb[0].mxu0
        %v1166 = vadd.f32 %v916, %v1165
        %v1167 = vpop.f32.mrb[0].mxu0
        %v1168 = vpop.f32.mrb[0].mxu0
        %v1169 = vadd.f32 %v916, %v1168
        %v1170 = vpop.f32.mrb[0].mxu0
        %1171 = vmatprep.mubr.bf16.mxu0 %v986
        %1172 = vmatmul.mubr.bf16.gmra.mrb[0].mxu0 %v808
        %v1173 = vpop.f32.mrb[0].mxu0
        %v1174 = vadd.f32 %v916, %v1173
        %v1175 = vpop.f32.mrb[0].mxu0
        %v1176 = vpop.f32.mrb[0].mxu0
        %v1177 = vadd.f32 %v916, %v1176
        %v1178 = vpop.f32.mrb[0].mxu0
        %1179 = vmatprep.mubr.bf16.mxu0 %v989
        %1180 = vmatmul.mubr.bf16.gmra.mrb[0].mxu0 %v810
        %v1181 = vpop.f32.mrb[0].mxu0
        %v1182 = vadd.f32 %v916, %v1181
        %v1183 = vpop.f32.mrb[0].mxu0
        %v1184 = vpop.f32.mrb[0].mxu0
        %v1185 = vadd.f32 %v916, %v1184
        %v1186 = vpop.f32.mrb[0].mxu0
        %1187 = vmatprep.mubr.bf16.mxu0 %v992
        %1188 = vmatmul.mubr.bf16.gmra.mrb[0].mxu0 %v812
        %v1189 = vpop.f32.mrb[0].mxu0
        %v1190 = vadd.f32 %v916, %v1189
        %v1191 = vpop.f32.mrb[0].mxu0
        %v1192 = vpop.f32.mrb[0].mxu0
        %v1193 = vadd.f32 %v916, %v1192
        %v1194 = vpop.f32.mrb[0].mxu0
        %1195 = vmatprep.mubr.bf16.mxu0 %v995
        %1196 = vmatmul.mubr.bf16.gmra.mrb[0].mxu0 %v814
        %v1197 = vpop.f32.mrb[0].mxu0
        %v1198 = vadd.f32 %v916, %v1197
        %v1199 = vpop.f32.mrb[0].mxu0
        %v1200 = vpop.f32.mrb[0].mxu0
        %v1201 = vadd.f32 %v916, %v1200
        %v1202 = vpop.f32.mrb[0].mxu0
        %1203 = vmatprep.mubr.bf16.mxu0 %v998
        %1204 = vmatmul.mubr.bf16.gmra.mrb[0].mxu0 %v816
        %v1205 = vpop.f32.mrb[0].mxu0
        %v1206 = vadd.f32 %v916, %v1205
        %v1207 = vpop.f32.mrb[0].mxu0
        %v1208 = vpop.f32.mrb[0].mxu0
        %v1209 = vadd.f32 %v916, %v1208
        %v1210 = vpop.f32.mrb[0].mxu0
        %1211 = vmatprep.mubr.bf16.mxu0 %v1001
        %1212 = vmatmul.mubr.bf16.gmra.mrb[0].mxu0 %v818
        %v1213 = vpop.f32.mrb[0].mxu0
        %v1214 = vadd.f32 %v916, %v1213
        %v1215 = vpop.f32.mrb[0].mxu0
        %v1216 = vpop.f32.mrb[0].mxu0
        %v1217 = vadd.f32 %v916, %v1216
        %v1218 = vpop.f32.mrb[0].mxu0
        %1219 = vmatprep.mubr.bf16.mxu0 %v1004
        %1220 = vmatmul.mubr.bf16.gmra.mrb[0].mxu0 %v820
        %v1221 = vpop.f32.mrb[0].mxu0
        %v1222 = vadd.f32 %v916, %v1221
        %v1223 = vpop.f32.mrb[0].mxu0
        %v1224 = vpop.f32.mrb[0].mxu0
        %v1225 = vadd.f32 %v916, %v1224
        %v1226 = vpop.f32.mrb[0].mxu0
        %1227 = vmatprep.mubr.bf16.mxu0 %v1007
        %1228 = vmatmul.mubr.bf16.gmra.mrb[0].mxu0 %v822
        %v1229 = vpop.f32.mrb[0].mxu0
        %v1230 = vadd.f32 %v916, %v1229
        %v1231 = vpop.f32.mrb[0].mxu0
        %v1232 = vpop.f32.mrb[0].mxu0
        %v1233 = vadd.f32 %v916, %v1232
        %v1234 = vpop.f32.mrb[0].mxu0
        %1235 = vmatprep.mubr.bf16.mxu0 %v1010
        %1236 = vmatmul.mubr.bf16.gmra.mrb[0].mxu0 %v824
        %v1237 = vpop.f32.mrb[0].mxu0
        %v1238 = vadd.f32 %v916, %v1237
        %v1239 = vpop.f32.mrb[0].mxu0
        %v1240 = vpop.f32.mrb[0].mxu0
        %v1241 = vadd.f32 %v916, %v1240
        %v1242 = vpop.f32.mrb[0].mxu0
        %1243 = vmatprep.mubr.bf16.mxu0 %v1013
        %1244 = vmatmul.mubr.bf16.gmra.mrb[0].mxu0 %v826
        %v1245 = vpop.f32.mrb[0].mxu0
        %v1246 = vadd.f32 %v916, %v1245
        %v1247 = vpop.f32.mrb[0].mxu0
        %v1248 = vpop.f32.mrb[0].mxu0
        %v1249 = vadd.f32 %v916, %v1248
        %v1250 = vpop.f32.mrb[0].mxu0
        %1251 = vmatprep.mubr.bf16.mxu0 %v1016
        %1252 = vmatmul.mubr.bf16.gmra.mrb[0].mxu0 %v828
        %v1253 = vpop.f32.mrb[0].mxu0
        %v1254 = vadd.f32 %v916, %v1253
        %v1255 = vpop.f32.mrb[0].mxu0
        %v1256 = vpop.f32.mrb[0].mxu0
        %v1257 = vadd.f32 %v916, %v1256
        %v1258 = vpop.f32.mrb[0].mxu0
        %1259 = vmatprep.mubr.bf16.mxu0 %v1019
        %1260 = vmatmul.mubr.bf16.gmra.mrb[0].mxu0 %v830
        %v1261 = vpop.f32.mrb[0].mxu0
        %v1262 = vadd.f32 %v916, %v1261
        %v1263 = vpop.f32.mrb[0].mxu0
        %v1264 = vpop.f32.mrb[0].mxu0
        %v1265 = vadd.f32 %v916, %v1264
        %v1266 = vpop.f32.mrb[0].mxu0
        %1267 = vmatprep.mubr.bf16.mxu0 %v1022
        %1268 = vmatmul.mubr.bf16.gmra.mrb[0].mxu0 %v832
        %v1269 = vpop.f32.mrb[0].mxu0
        %v1270 = vadd.f32 %v916, %v1269
        %v1271 = vpop.f32.mrb[0].mxu0
        %v1272 = vpop.f32.mrb[0].mxu0
        %v1273 = vadd.f32 %v916, %v1272
        %v1274 = vpop.f32.mrb[0].mxu0
        %1275 = vmatprep.mubr.bf16.mxu0 %v1025
        %1276 = vmatmul.mubr.bf16.gmra.mrb[0].mxu0 %v834
        %v1277 = vpop.f32.mrb[0].mxu0
        %v1278 = vadd.f32 %v916, %v1277
        %v1279 = vpop.f32.mrb[0].mxu0
        %v1280 = vpop.f32.mrb[0].mxu0
        %v1281 = vadd.f32 %v916, %v1280
        %v1282 = vpop.f32.mrb[0].mxu0
        %1283 = vmatprep.mubr.bf16.mxu0 %v1028
        %1284 = vmatmul.mubr.bf16.gmra.mrb[0].mxu0 %v836
        %v1285 = vpop.f32.mrb[0].mxu0
        %v1286 = vadd.f32 %v916, %v1285
        %v1287 = vpop.f32.mrb[0].mxu0
        %v1288 = vpop.f32.mrb[0].mxu0
        %v1289 = vadd.f32 %v916, %v1288
        %v1290 = vpop.f32.mrb[0].mxu0
        %1291 = vmatprep.mubr.bf16.mxu0 %v1031
        %1292 = vmatmul.mubr.bf16.gmra.mrb[0].mxu0 %v838
        %v1293 = vpop.f32.mrb[0].mxu0
        %v1294 = vadd.f32 %v916, %v1293
        %v1295 = vpop.f32.mrb[0].mxu0
        %v1296 = vpop.f32.mrb[0].mxu0
        %v1297 = vadd.f32 %v916, %v1296
        %v1298 = vpop.f32.mrb[0].mxu0
        %1299 = vmatprep.mubr.bf16.mxu0 %v1034
        %1300 = vmatmul.mubr.bf16.gmra.mrb[0].mxu0 %v840
        %v1301 = vpop.f32.mrb[0].mxu0
        %v1302 = vadd.f32 %v916, %v1301
        %v1303 = vpop.f32.mrb[0].mxu0
        %v1304 = vpop.f32.mrb[0].mxu0
        %v1305 = vadd.f32 %v916, %v1304
        %v1306 = vpop.f32.mrb[0].mxu0
        %1307 = vmatprep.mubr.bf16.mxu0 %v1037
        %1308 = vmatmul.mubr.bf16.gmra.mrb[0].mxu0 %v842
        %v1309 = vpop.f32.mrb[0].mxu0
        %v1310 = vadd.f32 %v916, %v1309
        %v1311 = vpop.f32.mrb[0].mxu0
        %v1312 = vpop.f32.mrb[0].mxu0
        %v1313 = vadd.f32 %v916, %v1312
        %v1314 = vpop.f32.mrb[0].mxu0
        %1315 = vmatprep.mubr.bf16.mxu0 %v1040
        %1316 = vmatmul.mubr.bf16.gmra.mrb[0].mxu0 %v844
        %v1317 = vpop.f32.mrb[0].mxu0
        %v1318 = vadd.f32 %v916, %v1317
        %v1319 = vpop.f32.mrb[0].mxu0
        %v1320 = vpop.f32.mrb[0].mxu0
        %v1321 = vadd.f32 %v916, %v1320
        %v1322 = vpop.f32.mrb[0].mxu0
        %1323 = vmatprep.mubr.bf16.mxu0 %v1043
        %1324 = vmatmul.mubr.bf16.gmra.mrb[0].mxu0 %v846
        %v1325 = vpop.f32.mrb[0].mxu0
        %v1326 = vadd.f32 %v916, %v1325
        %v1327 = vpop.f32.mrb[0].mxu0
        %v1328 = vpop.f32.mrb[0].mxu0
        %v1329 = vadd.f32 %v916, %v1328
        %v1330 = vpop.f32.mrb[0].mxu0
        %1331 = vmatprep.mubr.bf16.mxu0 %v1046
        %1332 = vmatmul.mubr.bf16.gmra.mrb[0].mxu0 %v848
        %v1333 = vpop.f32.mrb[0].mxu0
        %v1334 = vadd.f32 %v916, %v1333
        %v1335 = vpop.f32.mrb[0].mxu0
        %v1336 = vpop.f32.mrb[0].mxu0
        %v1337 = vadd.f32 %v916, %v1336
        %v1338 = vpop.f32.mrb[0].mxu0
        %1339 = vmatprep.mubr.bf16.mxu0 %v1049
        %1340 = vmatmul.mubr.bf16.gmra.mrb[0].mxu0 %v850
        %v1341 = vpop.f32.mrb[0].mxu0
        %v1342 = vadd.f32 %v916, %v1341
        %v1343 = vpop.f32.mrb[0].mxu0
        %v1344 = vpop.f32.mrb[0].mxu0
        %v1345 = vadd.f32 %v916, %v1344
        %v1346 = vpop.f32.mrb[0].mxu0
        %1347 = vmatprep.mubr.bf16.mxu0 %v1052
        %1348 = vmatmul.mubr.bf16.gmra.mrb[0].mxu0 %v852
        %v1349 = vpop.f32.mrb[0].mxu0
        %v1350 = vadd.f32 %v916, %v1349
        %v1351 = vpop.f32.mrb[0].mxu0
        %v1352 = vpop.f32.mrb[0].mxu0
        %v1353 = vadd.f32 %v916, %v1352
        %v1354 = vpop.f32.mrb[0].mxu0
        %1355 = vmatprep.mubr.bf16.mxu0 %v1055
        %1356 = vmatmul.mubr.bf16.gmra.mrb[0].mxu0 %v854
        %v1357 = vpop.f32.mrb[0].mxu0
        %v1358 = vadd.f32 %v916, %v1357
        %v1359 = vpop.f32.mrb[0].mxu0
        %v1360 = vpop.f32.mrb[0].mxu0
        %v1361 = vadd.f32 %v916, %v1360
        %v1362 = vpop.f32.mrb[0].mxu0
        %1363 = vmatprep.mubr.bf16.mxu0 %v1058
        %1364 = vmatmul.mubr.bf16.gmra.mrb[0].mxu0 %v856
        %v1365 = vpop.f32.mrb[0].mxu0
        %v1366 = vadd.f32 %v916, %v1365
        %v1367 = vpop.f32.mrb[0].mxu0
        %v1368 = vpop.f32.mrb[0].mxu0
        %v1369 = vadd.f32 %v916, %v1368
        %v1370 = vpop.f32.mrb[0].mxu0
        %1371 = vmatprep.mubr.bf16.mxu0 %v1061
        %1372 = vmatmul.mubr.bf16.gmra.mrb[0].mxu0 %v858
        %v1373 = vpop.f32.mrb[0].mxu0
        %v1374 = vadd.f32 %v916, %v1373
        %v1375 = vpop.f32.mrb[0].mxu0
        %v1376 = vpop.f32.mrb[0].mxu0
        %v1377 = vadd.f32 %v916, %v1376
        %v1378 = vpop.f32.mrb[0].mxu0
        %1379 = vmatprep.mubr.bf16.mxu0 %v1064
        %1380 = vmatmul.mubr.bf16.gmra.mrb[0].mxu0 %v860
        %v1381 = vpop.f32.mrb[0].mxu0
        %v1382 = vadd.f32 %v916, %v1381
        %v1383 = vpop.f32.mrb[0].mxu0
        %v1384 = vpop.f32.mrb[0].mxu0
        %v1385 = vadd.f32 %v916, %v1384
        %v1386 = vpop.f32.mrb[0].mxu0
        %1387 = vmatprep.mubr.bf16.mxu0 %v1067
        %1388 = vmatmul.mubr.bf16.gmra.mrb[0].mxu0 %v862
        %v1389 = vpop.f32.mrb[0].mxu0
        %v1390 = vadd.f32 %v916, %v1389
        %v1391 = vpop.f32.mrb[0].mxu0
        %v1392 = vpop.f32.mrb[0].mxu0
        %v1393 = vadd.f32 %v916, %v1392
        %v1394 = vpop.f32.mrb[0].mxu0
        %1395 = vmatprep.mubr.bf16.mxu0 %v1070
        %1396 = vmatmul.mubr.bf16.gmra.mrb[0].mxu0 %v864
        %v1397 = vpop.f32.mrb[0].mxu0
        %v1398 = vadd.f32 %v916, %v1397
        %v1399 = vpop.f32.mrb[0].mxu0
        %v1400 = vpop.f32.mrb[0].mxu0
        %v1401 = vadd.f32 %v916, %v1400
        %v1402 = vpop.f32.mrb[0].mxu0
        %1403 = vmatprep.mubr.bf16.mxu0 %v1073
        %1404 = vmatmul.mubr.bf16.gmra.mrb[0].mxu0 %v866
        %v1405 = vpop.f32.mrb[0].mxu0
        %v1406 = vadd.f32 %v916, %v1405
        %v1407 = vpop.f32.mrb[0].mxu0
        %v1408 = vpop.f32.mrb[0].mxu0
        %v1409 = vadd.f32 %v916, %v1408
        %v1410 = vpop.f32.mrb[0].mxu0
        %1411 = vmatprep.mubr.bf16.mxu0 %v1076
        %1412 = vmatmul.mubr.bf16.gmra.mrb[0].mxu0 %v868
        %v1413 = vpop.f32.mrb[0].mxu0
        %v1414 = vadd.f32 %v916, %v1413
        %v1415 = vpop.f32.mrb[0].mxu0
        %v1416 = vpop.f32.mrb[0].mxu0
        %v1417 = vadd.f32 %v916, %v1416
        %v1418 = vpop.f32.mrb[0].mxu0
        %1419 = vmatprep.mubr.bf16.mxu0 %v1079
        %1420 = vmatmul.mubr.bf16.gmra.mrb[0].mxu0 %v870
        %v1421 = vpop.f32.mrb[0].mxu0
        %v1422 = vadd.f32 %v916, %v1421
        %v1423 = vpop.f32.mrb[0].mxu0
        %v1424 = vpop.f32.mrb[0].mxu0
        %v1425 = vadd.f32 %v916, %v1424
        %v1426 = vpop.f32.mrb[0].mxu0
        %1427 = vmatprep.mubr.bf16.mxu0 %v1082
        %1428 = vmatmul.mubr.bf16.gmra.mrb[0].mxu0 %v872
        %v1429 = vpop.f32.mrb[0].mxu0
        %v1430 = vadd.f32 %v916, %v1429
        %v1431 = vpop.f32.mrb[0].mxu0
        %v1432 = vpop.f32.mrb[0].mxu0
        %v1433 = vadd.f32 %v916, %v1432
        %v1434 = vpop.f32.mrb[0].mxu0
        %1435 = vmatprep.mubr.bf16.mxu0 %v1085
        %1436 = vmatmul.mubr.bf16.gmra.mrb[0].mxu0 %v874
        %v1437 = vpop.f32.mrb[0].mxu0
        %v1438 = vadd.f32 %v916, %v1437
        %v1439 = vpop.f32.mrb[0].mxu0
        %v1440 = vpop.f32.mrb[0].mxu0
        %v1441 = vadd.f32 %v916, %v1440
        %v1442 = vpop.f32.mrb[0].mxu0
        %1443 = vmatprep.mubr.bf16.mxu0 %v1088
        %1444 = vmatmul.mubr.bf16.gmra.mrb[0].mxu0 %v876
        %v1445 = vpop.f32.mrb[0].mxu0
        %v1446 = vadd.f32 %v916, %v1445
        %v1447 = vpop.f32.mrb[0].mxu0
        %v1448 = vpop.f32.mrb[0].mxu0
        %v1449 = vadd.f32 %v916, %v1448
        %v1450 = vpop.f32.mrb[0].mxu0
        %1451 = vmatprep.mubr.bf16.mxu0 %v1091
        %1452 = vmatmul.mubr.bf16.gmra.mrb[0].mxu0 %v878
        %v1453 = vpop.f32.mrb[0].mxu0
        %v1454 = vadd.f32 %v916, %v1453
        %v1455 = vpop.f32.mrb[0].mxu0
        %v1456 = vpop.f32.mrb[0].mxu0
        %v1457 = vadd.f32 %v916, %v1456
        %v1458 = vpop.f32.mrb[0].mxu0
        %1459 = vmatprep.mubr.bf16.mxu0 %v1094
        %1460 = vmatmul.mubr.bf16.gmra.mrb[0].mxu0 %v880
        %v1461 = vpop.f32.mrb[0].mxu0
        %v1462 = vadd.f32 %v916, %v1461
        %v1463 = vpop.f32.mrb[0].mxu0
        %v1464 = vpop.f32.mrb[0].mxu0
        %v1465 = vadd.f32 %v916, %v1464
        %v1466 = vpop.f32.mrb[0].mxu0
        %1467 = vmatprep.mubr.bf16.mxu0 %v1097
        %1468 = vmatmul.mubr.bf16.gmra.mrb[0].mxu0 %v882
        %v1469 = vpop.f32.mrb[0].mxu0
        %v1470 = vadd.f32 %v916, %v1469
        %v1471 = vpop.f32.mrb[0].mxu0
        %v1472 = vpop.f32.mrb[0].mxu0
        %v1473 = vadd.f32 %v916, %v1472
        %v1474 = vpop.f32.mrb[0].mxu0
        %1475 = vmatprep.mubr.bf16.mxu0 %v1100
        %1476 = vmatmul.mubr.bf16.gmra.mrb[0].mxu0 %v884
        %v1477 = vpop.f32.mrb[0].mxu0
        %v1478 = vadd.f32 %v916, %v1477
        %v1479 = vpop.f32.mrb[0].mxu0
        %v1480 = vpop.f32.mrb[0].mxu0
        %v1481 = vadd.f32 %v916, %v1480
        %v1482 = vpop.f32.mrb[0].mxu0
        %1483 = vmatprep.mubr.bf16.mxu0 %v1103
        %1484 = vmatmul.mubr.bf16.gmra.mrb[0].mxu0 %v886
        %v1485 = vpop.f32.mrb[0].mxu0
        %v1486 = vadd.f32 %v916, %v1485
        %v1487 = vpop.f32.mrb[0].mxu0
        %v1488 = vpop.f32.mrb[0].mxu0
        %v1489 = vadd.f32 %v916, %v1488
        %v1490 = vpop.f32.mrb[0].mxu0
        %1491 = vmatprep.mubr.bf16.mxu0 %v1106
        %1492 = vmatmul.mubr.bf16.gmra.mrb[0].mxu0 %v888
        %v1493 = vpop.f32.mrb[0].mxu0
        %v1494 = vadd.f32 %v916, %v1493
        %v1495 = vpop.f32.mrb[0].mxu0
        %v1496 = vpop.f32.mrb[0].mxu0
        %v1497 = vadd.f32 %v916, %v1496
        %v1498 = vpop.f32.mrb[0].mxu0
        %1499 = vmatprep.mubr.bf16.mxu0 %v1109
        %1500 = vmatmul.mubr.bf16.gmra.mrb[0].mxu0 %v890
        %v1501 = vpop.f32.mrb[0].mxu0
        %v1502 = vadd.f32 %v916, %v1501
        %v1503 = vpop.f32.mrb[0].mxu0
        %v1504 = vpop.f32.mrb[0].mxu0
        %v1505 = vadd.f32 %v916, %v1504
        %v1506 = vpop.f32.mrb[0].mxu0
        %1507 = vdwg.mxu0
        %v1508 = vmax.f32 %v1150, 0.0
        %v1509 = vmax.f32 %v1153, 0.0
        %v1510 = vmax.f32 %v1158, 0.0
        %v1511 = vmax.f32 %v1161, 0.0
        %v1512 = vmax.f32 %v1166, 0.0
        %v1513 = vmax.f32 %v1169, 0.0
        %v1514 = vmax.f32 %v1174, 0.0
        %v1515 = vmax.f32 %v1177, 0.0
        %v1516 = vmax.f32 %v1182, 0.0
        %v1517 = vmax.f32 %v1185, 0.0
        %v1518 = vmax.f32 %v1190, 0.0
        %v1519 = vmax.f32 %v1193, 0.0
        %v1520 = vmax.f32 %v1198, 0.0
        %v1521 = vmax.f32 %v1201, 0.0
        %v1522 = vmax.f32 %v1206, 0.0
        %v1523 = vmax.f32 %v1209, 0.0
        %v1524 = vmax.f32 %v1214, 0.0
        %v1525 = vmax.f32 %v1217, 0.0
        %v1526 = vmax.f32 %v1222, 0.0
        %v1527 = vmax.f32 %v1225, 0.0
        %v1528 = vmax.f32 %v1230, 0.0
        %v1529 = vmax.f32 %v1233, 0.0
        %v1530 = vmax.f32 %v1238, 0.0
        %v1531 = vmax.f32 %v1241, 0.0
        %v1532 = vmax.f32 %v1246, 0.0
        %v1533 = vmax.f32 %v1249, 0.0
        %v1534 = vmax.f32 %v1254, 0.0
        %v1535 = vmax.f32 %v1257, 0.0
        %v1536 = vmax.f32 %v1262, 0.0
        %v1537 = vmax.f32 %v1265, 0.0
        %v1538 = vmax.f32 %v1270, 0.0
        %v1539 = vmax.f32 %v1273, 0.0
        %v1540 = vmax.f32 %v1278, 0.0
        %v1541 = vmax.f32 %v1281, 0.0
        %v1542 = vmax.f32 %v1286, 0.0
        %v1543 = vmax.f32 %v1289, 0.0
        %v1544 = vmax.f32 %v1294, 0.0
        %v1545 = vmax.f32 %v1297, 0.0
        %v1546 = vmax.f32 %v1302, 0.0
        %v1547 = vmax.f32 %v1305, 0.0
        %v1548 = vmax.f32 %v1310, 0.0
        %v1549 = vmax.f32 %v1313, 0.0
        %v1550 = vmax.f32 %v1318, 0.0
        %v1551 = vmax.f32 %v1321, 0.0
        %v1552 = vmax.f32 %v1326, 0.0
        %v1553 = vmax.f32 %v1329, 0.0
        %v1554 = vmax.f32 %v1334, 0.0
        %v1555 = vmax.f32 %v1337, 0.0
        %v1556 = vmax.f32 %v1342, 0.0
        %v1557 = vmax.f32 %v1345, 0.0
        %v1558 = vmax.f32 %v1350, 0.0
        %v1559 = vmax.f32 %v1353, 0.0
        %v1560 = vmax.f32 %v1358, 0.0
        %v1561 = vmax.f32 %v1361, 0.0
        %v1562 = vmax.f32 %v1366, 0.0
        %v1563 = vmax.f32 %v1369, 0.0
        %v1564 = vmax.f32 %v1374, 0.0
        %v1565 = vmax.f32 %v1377, 0.0
        %v1566 = vmax.f32 %v1382, 0.0
        %v1567 = vmax.f32 %v1385, 0.0
        %v1568 = vmax.f32 %v1390, 0.0
        %v1569 = vmax.f32 %v1393, 0.0
        %v1570 = vmax.f32 %v1398, 0.0
        %v1571 = vmax.f32 %v1401, 0.0
        %v1572 = vmax.f32 %v1406, 0.0
        %v1573 = vmax.f32 %v1409, 0.0
        %v1574 = vmax.f32 %v1414, 0.0
        %v1575 = vmax.f32 %v1417, 0.0
        %v1576 = vmax.f32 %v1422, 0.0
        %v1577 = vmax.f32 %v1425, 0.0
        %v1578 = vmax.f32 %v1430, 0.0
        %v1579 = vmax.f32 %v1433, 0.0
        %v1580 = vmax.f32 %v1438, 0.0
        %v1581 = vmax.f32 %v1441, 0.0
        %v1582 = vmax.f32 %v1446, 0.0
        %v1583 = vmax.f32 %v1449, 0.0
        %v1584 = vmax.f32 %v1454, 0.0
        %v1585 = vmax.f32 %v1457, 0.0
        %v1586 = vmax.f32 %v1462, 0.0
        %v1587 = vmax.f32 %v1465, 0.0
        %v1588 = vmax.f32 %v1470, 0.0
        %v1589 = vmax.f32 %v1473, 0.0
        %v1590 = vmax.f32 %v1478, 0.0
        %v1591 = vmax.f32 %v1481, 0.0
        %v1592 = vmax.f32 %v1486, 0.0
        %v1593 = vmax.f32 %v1489, 0.0
        %v1594 = vmax.f32 %v1494, 0.0
        %v1595 = vmax.f32 %v1497, 0.0
        %v1596 = vmax.f32 %v1502, 0.0
        %v1597 = vmax.f32 %v1505, 0.0
        %vm1598 = vcmask 523264
        %v1599 = vsel %vm1598, %v1508, -inf
        %v1600 = vsel %vm1598, %v1509, -inf
        %v1601 = vmax.f32 %v1599, %v1600
        %v1602 = vsel %vm1598, %v1510, -inf
        %v1603 = vmax.f32 %v1601, %v1602
        %v1604 = vsel %vm1598, %v1511, -inf
        %v1605 = vmax.f32 %v1603, %v1604
        %v1606 = vsel %vm1598, %v1512, -inf
        %v1607 = vmax.f32 %v1605, %v1606
        %v1608 = vsel %vm1598, %v1513, -inf
        %v1609 = vsel %vm1598, %v1514, -inf
        %v1610 = vmax.f32 %v1608, %v1609
        %v1611 = vsel %vm1598, %v1515, -inf
        %v1612 = vmax.f32 %v1610, %v1611
        %v1613 = vsel %vm1598, %v1516, -inf
        %v1614 = vmax.f32 %v1612, %v1613
        %v1615 = vsel %vm1598, %v1517, -inf
        %v1616 = vmax.f32 %v1614, %v1615
        %v1617 = vsel %vm1598, %v1518, -inf
        %v1618 = vsel %vm1598, %v1519, -inf
        %v1619 = vmax.f32 %v1617, %v1618
        %v1620 = vsel %vm1598, %v1520, -inf
        %v1621 = vmax.f32 %v1619, %v1620
        %v1622 = vsel %vm1598, %v1521, -inf
        %v1623 = vmax.f32 %v1621, %v1622
        %v1624 = vsel %vm1598, %v1522, -inf
        %v1625 = vmax.f32 %v1623, %v1624
        %v1626 = vsel %vm1598, %v1523, -inf
        %v1627 = vsel %vm1598, %v1524, -inf
        %v1628 = vmax.f32 %v1626, %v1627
        %v1629 = vsel %vm1598, %v1525, -inf
        %v1630 = vmax.f32 %v1628, %v1629
        %v1631 = vsel %vm1598, %v1526, -inf
        %v1632 = vmax.f32 %v1630, %v1631
        %v1633 = vsel %vm1598, %v1527, -inf
        %v1634 = vmax.f32 %v1632, %v1633
        %v1635 = vsel %vm1598, %v1528, -inf
        %v1636 = vsel %vm1598, %v1529, -inf
        %v1637 = vmax.f32 %v1635, %v1636
        %v1638 = vsel %vm1598, %v1530, -inf
        %v1639 = vmax.f32 %v1637, %v1638
        %v1640 = vsel %vm1598, %v1531, -inf
        %v1641 = vmax.f32 %v1639, %v1640
        %v1642 = vsel %vm1598, %v1532, -inf
        %v1643 = vmax.f32 %v1641, %v1642
        %v1644 = vsel %vm1598, %v1533, -inf
        %v1645 = vsel %vm1598, %v1534, -inf
        %v1646 = vmax.f32 %v1644, %v1645
        %v1647 = vsel %vm1598, %v1535, -inf
        %v1648 = vmax.f32 %v1646, %v1647
        %v1649 = vsel %vm1598, %v1536, -inf
        %v1650 = vmax.f32 %v1648, %v1649
        %v1651 = vsel %vm1598, %v1537, -inf
        %v1652 = vmax.f32 %v1650, %v1651
        %v1653 = vsel %vm1598, %v1538, -inf
        %v1654 = vsel %vm1598, %v1539, -inf
        %v1655 = vmax.f32 %v1653, %v1654
        %v1656 = vsel %vm1598, %v1540, -inf
        %v1657 = vmax.f32 %v1655, %v1656
        %v1658 = vsel %vm1598, %v1541, -inf
        %v1659 = vmax.f32 %v1657, %v1658
        %v1660 = vsel %vm1598, %v1542, -inf
        %v1661 = vmax.f32 %v1659, %v1660
        %v1662 = vsel %vm1598, %v1543, -inf
        %v1663 = vsel %vm1598, %v1544, -inf
        %v1664 = vmax.f32 %v1662, %v1663
        %v1665 = vsel %vm1598, %v1545, -inf
        %v1666 = vmax.f32 %v1664, %v1665
        %v1667 = vsel %vm1598, %v1546, -inf
        %v1668 = vmax.f32 %v1666, %v1667
        %v1669 = vsel %vm1598, %v1547, -inf
        %v1670 = vmax.f32 %v1668, %v1669
        %v1671 = vsel %vm1598, %v1548, -inf
        %v1672 = vsel %vm1598, %v1549, -inf
        %v1673 = vmax.f32 %v1671, %v1672
        %v1674 = vsel %vm1598, %v1550, -inf
        %v1675 = vmax.f32 %v1673, %v1674
        %v1676 = vsel %vm1598, %v1551, -inf
        %v1677 = vmax.f32 %v1675, %v1676
        %v1678 = vsel %vm1598, %v1552, -inf
        %v1679 = vmax.f32 %v1677, %v1678
        %v1680 = vsel %vm1598, %v1553, -inf
        %v1681 = vsel %vm1598, %v1554, -inf
        %v1682 = vmax.f32 %v1680, %v1681
        %v1683 = vsel %vm1598, %v1555, -inf
        %v1684 = vmax.f32 %v1682, %v1683
        %v1685 = vsel %vm1598, %v1556, -inf
        %v1686 = vmax.f32 %v1684, %v1685
        %v1687 = vsel %vm1598, %v1557, -inf
        %v1688 = vmax.f32 %v1686, %v1687
        %v1689 = vsel %vm1598, %v1558, -inf
        %v1690 = vsel %vm1598, %v1559, -inf
        %v1691 = vmax.f32 %v1689, %v1690
        %v1692 = vsel %vm1598, %v1560, -inf
        %v1693 = vmax.f32 %v1691, %v1692
        %v1694 = vsel %vm1598, %v1561, -inf
        %v1695 = vmax.f32 %v1693, %v1694
        %v1696 = vsel %vm1598, %v1562, -inf
        %v1697 = vmax.f32 %v1695, %v1696
        %v1698 = vsel %vm1598, %v1563, -inf
        %v1699 = vsel %vm1598, %v1564, -inf
        %v1700 = vmax.f32 %v1698, %v1699
        %v1701 = vsel %vm1598, %v1565, -inf
        %v1702 = vmax.f32 %v1700, %v1701
        %v1703 = vsel %vm1598, %v1566, -inf
        %v1704 = vmax.f32 %v1702, %v1703
        %v1705 = vsel %vm1598, %v1567, -inf
        %v1706 = vmax.f32 %v1704, %v1705
        %v1707 = vsel %vm1598, %v1568, -inf
        %v1708 = vsel %vm1598, %v1569, -inf
        %v1709 = vmax.f32 %v1707, %v1708
        %v1710 = vsel %vm1598, %v1570, -inf
        %v1711 = vmax.f32 %v1709, %v1710
        %v1712 = vsel %vm1598, %v1571, -inf
        %v1713 = vmax.f32 %v1711, %v1712
        %v1714 = vsel %vm1598, %v1572, -inf
        %v1715 = vmax.f32 %v1713, %v1714
        %v1716 = vsel %vm1598, %v1573, -inf
        %v1717 = vsel %vm1598, %v1574, -inf
        %v1718 = vmax.f32 %v1716, %v1717
        %v1719 = vsel %vm1598, %v1575, -inf
        %v1720 = vmax.f32 %v1718, %v1719
        %v1721 = vsel %vm1598, %v1576, -inf
        %v1722 = vmax.f32 %v1720, %v1721
        %v1723 = vsel %vm1598, %v1577, -inf
        %v1724 = vmax.f32 %v1722, %v1723
        %v1725 = vsel %vm1598, %v1578, -inf
        %v1726 = vsel %vm1598, %v1579, -inf
        %v1727 = vmax.f32 %v1725, %v1726
        %v1728 = vsel %vm1598, %v1580, -inf
        %v1729 = vmax.f32 %v1727, %v1728
        %v1730 = vsel %vm1598, %v1581, -inf
        %v1731 = vmax.f32 %v1729, %v1730
        %v1732 = vsel %vm1598, %v1582, -inf
        %v1733 = vmax.f32 %v1731, %v1732
        %v1734 = vsel %vm1598, %v1583, -inf
        %v1735 = vsel %vm1598, %v1584, -inf
        %v1736 = vmax.f32 %v1734, %v1735
        %v1737 = vsel %vm1598, %v1585, -inf
        %v1738 = vmax.f32 %v1736, %v1737
        %v1739 = vsel %vm1598, %v1586, -inf
        %v1740 = vmax.f32 %v1738, %v1739
        %v1741 = vsel %vm1598, %v1587, -inf
        %v1742 = vmax.f32 %v1740, %v1741
        %v1743 = vsel %vm1598, %v1588, -inf
        %v1744 = vsel %vm1598, %v1589, -inf
        %v1745 = vmax.f32 %v1743, %v1744
        %v1746 = vsel %vm1598, %v1590, -inf
        %v1747 = vmax.f32 %v1745, %v1746
        %v1748 = vsel %vm1598, %v1591, -inf
        %v1749 = vmax.f32 %v1747, %v1748
        %v1750 = vsel %vm1598, %v1592, -inf
        %v1751 = vmax.f32 %v1749, %v1750
        %v1752 = vsel %vm1598, %v1593, -inf
        %v1753 = vsel %vm1598, %v1594, -inf
        %v1754 = vmax.f32 %v1752, %v1753
        %v1755 = vsel %vm1598, %v1595, -inf
        %v1756 = vmax.f32 %v1754, %v1755
        %v1757 = vsel %vm1598, %v1596, -inf
        %v1758 = vmax.f32 %v1756, %v1757
        %v1759 = vsel %vm1598, %v1597, -inf
        %v1760 = vmax.f32 %v1758, %v1759
        %v1761 = vpack.c.bf16 0.0, 0.0
        %v1762 = vpack.c.bf16 %v1616, %v1607
        %v1763 = vpack.c.bf16 %v1634, %v1625
        %v1764 = vpack.c.bf16 %v1652, %v1643
        %v1765 = vpack.c.bf16 %v1670, %v1661
        %v1766 = vpack.c.bf16 %v1688, %v1679
        %v1767 = vpack.c.bf16 %v1706, %v1697
        %v1768 = vpack.c.bf16 %v1724, %v1715
        %v1769 = vpack.c.bf16 %v1742, %v1733
        %v1770 = vpack.c.bf16 %v1760, %v1751
        %v1771 = vld [vmem:[#allocation8] sm:$0xff]
        %v1772 = vld [vmem:[#allocation8 + $0x8] sm:$0xf]
        %v1773 = vld [vmem:[#allocation8 + $0xc] sm:$0xff]
        %v1774 = vld [vmem:[#allocation8 + $0x14] sm:$0xf]
        %v1775 = vld [vmem:[#allocation8 + $0x18] sm:$0xff]
        %v1776 = vld [vmem:[#allocation8 + $0x20] sm:$0xf]
        %v1777 = vld [vmem:[#allocation8 + $0x24] sm:$0xff]
        %v1778 = vld [vmem:[#allocation8 + $0x2c] sm:$0xf]
        %v1779 = vld [vmem:[#allocation8 + $0x30] sm:$0xff]
        %v1780 = vld [vmem:[#allocation8 + $0x38] sm:$0xf]
        %v1781 = vld [vmem:[#allocation8 + $0x3c] sm:$0xff]
        %v1782 = vld [vmem:[#allocation8 + $0x44] sm:$0xf]
        %v1783 = vld [vmem:[#allocation8 + $0x48] sm:$0xff]
        %v1784 = vld [vmem:[#allocation8 + $0x50] sm:$0xf]
        %v1785 = vld [vmem:[#allocation8 + $0x54] sm:$0xff]
        %v1786 = vld [vmem:[#allocation8 + $0x5c] sm:$0xf]
        %v1803 = vunpack.c.l.b16 %v1771
        %v1804 = vunpack.c.h.b16 %v1771
        %v1805 = vunpack.c.l.b16 %v1772
        %v1806 = vunpack.c.l.b16 %v1773
        %v1807 = vunpack.c.h.b16 %v1773
        %v1808 = vunpack.c.l.b16 %v1774
        %v1809 = vunpack.c.l.b16 %v1775
        %v1810 = vunpack.c.h.b16 %v1775
        %v1811 = vunpack.c.l.b16 %v1776
        %v1812 = vunpack.c.l.b16 %v1777
        %v1813 = vunpack.c.h.b16 %v1777
        %v1814 = vunpack.c.l.b16 %v1778
        %v1815 = vunpack.c.l.b16 %v1779
        %v1816 = vunpack.c.h.b16 %v1779
        %v1817 = vunpack.c.l.b16 %v1780
        %v1818 = vunpack.c.l.b16 %v1781
        %v1819 = vunpack.c.h.b16 %v1781
        %v1820 = vunpack.c.l.b16 %v1782
        %v1821 = vunpack.c.l.b16 %v1783
        %v1822 = vunpack.c.h.b16 %v1783
        %v1823 = vunpack.c.l.b16 %v1784
        %v1824 = vunpack.c.l.b16 %v1785
        %v1825 = vunpack.c.h.b16 %v1785
        %v1826 = vunpack.c.l.b16 %v1786
        %v1827 = vpack.c.b16 %v1806, %v1803
        %v1828 = vpack.c.b16 %v1807, %v1804
        %v1829 = vpack.c.b16 %v1808, %v1805
        %v1830 = vpack.c.b16 %v1812, %v1809
        %v1831 = vpack.c.b16 %v1813, %v1810
        %v1832 = vpack.c.b16 %v1814, %v1811
        %v1833 = vpack.c.b16 %v1818, %v1815
        %v1834 = vpack.c.b16 %v1819, %v1816
        %v1835 = vpack.c.b16 %v1820, %v1817
        %v1836 = vpack.c.b16 %v1824, %v1821
        %v1837 = vpack.c.b16 %v1825, %v1822
        %v1838 = vpack.c.b16 %v1826, %v1823
        %v1852 = vsel %vm1598, %v1761, 0
        %v1855 = vsel %vm1598, %v1762, 0
        %v1858 = vsel %vm1598, %v1763, 0
        %v1861 = vsel %vm1598, %v1764, 0
        %v1864 = vsel %vm1598, %v1765, 0
        %v1867 = vsel %vm1598, %v1766, 0
        %v1870 = vsel %vm1598, %v1767, 0
        %v1873 = vsel %vm1598, %v1768, 0
        %v1876 = vsel %vm1598, %v1769, 0
        %v1879 = vsel %vm1598, %v1770, 0
        %1881 = vmatprep.subr.bf16.mxu0 %v1828
        %1882 = vmatpush1.bf16.msra.mxu0 %v1827
        %1883 = vmatprep.subr.bf16.mxu0 %v1831
        %1884 = vmatpush1.bf16.msra.mxu0 %v1830
        %1885 = vmatprep.subr.bf16.mxu0 %v1834
        %1886 = vmatpush1.bf16.msra.mxu0 %v1833
        %1887 = vmatprep.subr.bf16.mxu0 %v1837
        %1888 = vmatpush1.bf16.msra.mxu0 %v1836
        %1889 = vmatprep.subr.bf16.mxu0 0
        %1890 = vmatpush1.bf16.msra.mxu0 0
        %1891 = vmatprep.subr.bf16.mxu0 0
        %1892 = vmatpush1.bf16.msra.mxu0 0
        %1893 = vmatprep.subr.bf16.mxu0 0
        %1894 = vmatpush1.bf16.msra.mxu0 0
        %1895 = vmatprep.subr.bf16.mxu0 0
        %1896 = vmatpush1.bf16.msra.mxu0 0
        %1897 = vmatprep.subr.bf16.mxu0 0
        %1898 = vmatpush1.bf16.msra.mxu0 0
        %1899 = vmatprep.subr.bf16.mxu0 0
        %1900 = vmatpush1.bf16.msra.mxu0 0
        %1901 = vmatprep.subr.bf16.mxu0 0
        %1902 = vmatpush1.bf16.msra.mxu0 0
        %1903 = vmatprep.subr.bf16.mxu0 0
        %1904 = vmatpush1.bf16.msra.mxu0 0
        %1905 = vmatprep.subr.bf16.mxu0 0
        %1906 = vmatpush1.bf16.msra.mxu0 0
        %1907 = vmatprep.subr.bf16.mxu0 0
        %1908 = vmatpush1.bf16.msra.mxu0 0
        %1909 = vmatprep.subr.bf16.mxu0 0
        %1910 = vmatpush1.bf16.msra.mxu0 0
        %1911 = vmatprep.subr.bf16.mxu0 0
        %1912 = vmatpush1.bf16.msra.mxu0 0
        %1913 = vmatprep.mubr.bf16.mxu0 0
        %1914 = vmatmul.mubr.bf16.gmra.mrb[0].mxu0 %v1852
        %v1915 = vpop.f32.mrb[0].mxu0
        %v1916 = vadd.f32 0.0, %v1915
        %v1917 = vpop.f32.mrb[0].mxu0
        %v1918 = vpop.f32.mrb[0].mxu0
        %v1919 = vadd.f32 0.0, %v1918
        %v1920 = vpop.f32.mrb[0].mxu0
        %1921 = vmatprep.mubr.bf16.mxu0 0
        %1922 = vmatmul.mubr.bf16.gmra.mrb[0].mxu0 %v1855
        %v1923 = vpop.f32.mrb[0].mxu0
        %v1924 = vadd.f32 0.0, %v1923
        %v1925 = vpop.f32.mrb[0].mxu0
        %v1926 = vadd.f32 0.0, %v1925
        %v1927 = vpop.f32.mrb[0].mxu0
        %v1928 = vadd.f32 0.0, %v1927
        %v1929 = vpop.f32.mrb[0].mxu0
        %v1930 = vadd.f32 0.0, %v1929
        %1931 = vmatprep.mubr.bf16.mxu0 0
        %1932 = vmatmul.mubr.bf16.gmra.mrb[0].mxu0 %v1858
        %v1933 = vpop.f32.mrb[0].mxu0
        %v1934 = vadd.f32 0.0, %v1933
        %v1935 = vpop.f32.mrb[0].mxu0
        %v1936 = vadd.f32 0.0, %v1935
        %v1937 = vpop.f32.mrb[0].mxu0
        %v1938 = vadd.f32 0.0, %v1937
        %v1939 = vpop.f32.mrb[0].mxu0
        %v1940 = vadd.f32 0.0, %v1939
        %1941 = vmatprep.mubr.bf16.mxu0 0
        %1942 = vmatmul.mubr.bf16.gmra.mrb[0].mxu0 %v1861
        %v1943 = vpop.f32.mrb[0].mxu0
        %v1944 = vadd.f32 0.0, %v1943
        %v1945 = vpop.f32.mrb[0].mxu0
        %v1946 = vadd.f32 0.0, %v1945
        %v1947 = vpop.f32.mrb[0].mxu0
        %v1948 = vadd.f32 0.0, %v1947
        %v1949 = vpop.f32.mrb[0].mxu0
        %v1950 = vadd.f32 0.0, %v1949
        %1951 = vmatprep.mubr.bf16.mxu0 0
        %1952 = vmatmul.mubr.bf16.gmra.mrb[0].mxu0 %v1864
        %v1953 = vpop.f32.mrb[0].mxu0
        %v1954 = vadd.f32 0.0, %v1953
        %v1955 = vpop.f32.mrb[0].mxu0
        %v1956 = vadd.f32 0.0, %v1955
        %v1957 = vpop.f32.mrb[0].mxu0
        %v1958 = vadd.f32 0.0, %v1957
        %v1959 = vpop.f32.mrb[0].mxu0
        %v1960 = vadd.f32 0.0, %v1959
        %1961 = vmatprep.mubr.bf16.mxu0 0
        %1962 = vmatmul.mubr.bf16.gmra.mrb[0].mxu0 %v1867
        %v1963 = vpop.f32.mrb[0].mxu0
        %v1964 = vadd.f32 0.0, %v1963
        %v1965 = vpop.f32.mrb[0].mxu0
        %v1966 = vadd.f32 0.0, %v1965
        %v1967 = vpop.f32.mrb[0].mxu0
        %v1968 = vadd.f32 0.0, %v1967
        %v1969 = vpop.f32.mrb[0].mxu0
        %v1970 = vadd.f32 0.0, %v1969
        %1971 = vmatprep.mubr.bf16.mxu0 0
        %1972 = vmatmul.mubr.bf16.gmra.mrb[0].mxu0 %v1870
        %v1973 = vpop.f32.mrb[0].mxu0
        %v1974 = vadd.f32 0.0, %v1973
        %v1975 = vpop.f32.mrb[0].mxu0
        %v1976 = vadd.f32 0.0, %v1975
        %v1977 = vpop.f32.mrb[0].mxu0
        %v1978 = vadd.f32 0.0, %v1977
        %v1979 = vpop.f32.mrb[0].mxu0
        %v1980 = vadd.f32 0.0, %v1979
        %1981 = vmatprep.mubr.bf16.mxu0 0
        %1982 = vmatmul.mubr.bf16.gmra.mrb[0].mxu0 %v1873
        %v1983 = vpop.f32.mrb[0].mxu0
        %v1984 = vadd.f32 0.0, %v1983
        %v1985 = vpop.f32.mrb[0].mxu0
        %v1986 = vadd.f32 0.0, %v1985
        %v1987 = vpop.f32.mrb[0].mxu0
        %v1988 = vadd.f32 0.0, %v1987
        %v1989 = vpop.f32.mrb[0].mxu0
        %v1990 = vadd.f32 0.0, %v1989
        %1991 = vmatprep.mubr.bf16.mxu0 0
        %1992 = vmatmul.mubr.bf16.gmra.mrb[0].mxu0 %v1876
        %v1993 = vpop.f32.mrb[0].mxu0
        %v1994 = vadd.f32 0.0, %v1993
        %v1995 = vpop.f32.mrb[0].mxu0
        %v1996 = vadd.f32 0.0, %v1995
        %v1997 = vpop.f32.mrb[0].mxu0
        %v1998 = vadd.f32 0.0, %v1997
        %v1999 = vpop.f32.mrb[0].mxu0
        %v2000 = vadd.f32 0.0, %v1999
        %2001 = vmatprep.mubr.bf16.mxu0 0
        %2002 = vmatmul.mubr.bf16.gmra.mrb[0].mxu0 %v1879
        %v2003 = vpop.f32.mrb[0].mxu0
        %v2004 = vadd.f32 0.0, %v2003
        %v2005 = vpop.f32.mrb[0].mxu0
        %v2006 = vadd.f32 0.0, %v2005
        %v2007 = vpop.f32.mrb[0].mxu0
        %v2008 = vpop.f32.mrb[0].mxu0
        %v2009 = vadd.f32 0.0, %v2008
        %2010 = vmatprep.mubr.bf16.mxu0 0
        %2011 = vmatmul.mubr.bf16.gmra.mrb[0].mxu0 %v1852
        %v2012 = vpop.f32.mrb[0].mxu0
        %v2013 = vpop.f32.mrb[0].mxu0
        %v2014 = vadd.f32 0.0, %v2013
        %v2015 = vpop.f32.mrb[0].mxu0
        %v2016 = vpop.f32.mrb[0].mxu0
        %2017 = vdwg.mxu0
        %2018 = vmatprep.subr.bf16.mxu0 0
        %2019 = vmatpush1.bf16.msra.mxu0 %v1829
        %2020 = vmatprep.subr.bf16.mxu0 0
        %2021 = vmatpush1.bf16.msra.mxu0 %v1832
        %2022 = vmatprep.subr.bf16.mxu0 0
        %2023 = vmatpush1.bf16.msra.mxu0 %v1835
        %2024 = vmatprep.subr.bf16.mxu0 0
        %2025 = vmatpush1.bf16.msra.mxu0 %v1838
        %2026 = vmatprep.subr.bf16.mxu0 0
        %2027 = vmatpush1.bf16.msra.mxu0 0
        %2028 = vmatprep.subr.bf16.mxu0 0
        %2029 = vmatpush1.bf16.msra.mxu0 0
        %2030 = vmatprep.subr.bf16.mxu0 0
        %2031 = vmatpush1.bf16.msra.mxu0 0
        %2032 = vmatprep.subr.bf16.mxu0 0
        %2033 = vmatpush1.bf16.msra.mxu0 0
        %2034 = vmatprep.subr.bf16.mxu0 0
        %2035 = vmatpush1.bf16.msra.mxu0 0
        %2036 = vmatprep.subr.bf16.mxu0 0
        %2037 = vmatpush1.bf16.msra.mxu0 0
        %2038 = vmatprep.subr.bf16.mxu0 0
        %2039 = vmatpush1.bf16.msra.mxu0 0
        %2040 = vmatprep.subr.bf16.mxu0 0
        %2041 = vmatpush1.bf16.msra.mxu0 0
        %2042 = vmatprep.subr.bf16.mxu0 0
        %2043 = vmatpush1.bf16.msra.mxu0 0
        %2044 = vmatprep.subr.bf16.mxu0 0
        %2045 = vmatpush1.bf16.msra.mxu0 0
        %2046 = vmatprep.subr.bf16.mxu0 0
        %2047 = vmatpush1.bf16.msra.mxu0 0
        %2048 = vmatprep.subr.bf16.mxu0 0
        %2049 = vmatpush1.bf16.msra.mxu0 0
        %2050 = vmatprep.mubr.bf16.mxu0 0
        %2051 = vmatmul.mubr.bf16.gmra.mrb[0].mxu0 %v1852
        %v2052 = vpop.f32.mrb[0].mxu0
        %v2053 = vpop.f32.mrb[0].mxu0
        %v2054 = vpop.f32.mrb[0].mxu0
        %v2055 = vpop.f32.mrb[0].mxu0
        %2056 = vmatprep.mubr.bf16.mxu0 0
        %2057 = vmatmul.mubr.bf16.gmra.mrb[0].mxu0 %v1855
        %v2058 = vpop.f32.mrb[0].mxu0
        %v2059 = vpop.f32.mrb[0].mxu0
        %v2060 = vpop.f32.mrb[0].mxu0
        %v2061 = vpop.f32.mrb[0].mxu0
        %2062 = vmatprep.mubr.bf16.mxu0 0
        %2063 = vmatmul.mubr.bf16.gmra.mrb[0].mxu0 %v1858
        %v2064 = vpop.f32.mrb[0].mxu0
        %v2065 = vadd.f32 0.0, %v2064
        %v2066 = vpop.f32.mrb[0].mxu0
        %v2067 = vpop.f32.mrb[0].mxu0
        %v2068 = vadd.f32 0.0, %v2067
        %v2069 = vpop.f32.mrb[0].mxu0
        %2070 = vmatprep.mubr.bf16.mxu0 0
        %2071 = vmatmul.mubr.bf16.gmra.mrb[0].mxu0 %v1861
        %v2072 = vpop.f32.mrb[0].mxu0
        %v2073 = vadd.f32 0.0, %v2072
        %v2074 = vpop.f32.mrb[0].mxu0
        %v2075 = vpop.f32.mrb[0].mxu0
        %v2076 = vadd.f32 0.0, %v2075
        %v2077 = vpop.f32.mrb[0].mxu0
        %2078 = vmatprep.mubr.bf16.mxu0 0
        %2079 = vmatmul.mubr.bf16.gmra.mrb[0].mxu0 %v1864
        %v2080 = vpop.f32.mrb[0].mxu0
        %v2081 = vadd.f32 0.0, %v2080
        %v2082 = vpop.f32.mrb[0].mxu0
        %v2083 = vpop.f32.mrb[0].mxu0
        %v2084 = vadd.f32 0.0, %v2083
        %v2085 = vpop.f32.mrb[0].mxu0
        %2086 = vmatprep.mubr.bf16.mxu0 0
        %2087 = vmatmul.mubr.bf16.gmra.mrb[0].mxu0 %v1867
        %v2088 = vpop.f32.mrb[0].mxu0
        %v2089 = vadd.f32 0.0, %v2088
        %v2090 = vpop.f32.mrb[0].mxu0
        %v2091 = vpop.f32.mrb[0].mxu0
        %v2092 = vadd.f32 0.0, %v2091
        %v2093 = vpop.f32.mrb[0].mxu0
        %2094 = vmatprep.mubr.bf16.mxu0 0
        %2095 = vmatmul.mubr.bf16.gmra.mrb[0].mxu0 %v1870
        %v2096 = vpop.f32.mrb[0].mxu0
        %v2097 = vadd.f32 0.0, %v2096
        %v2098 = vpop.f32.mrb[0].mxu0
        %v2099 = vpop.f32.mrb[0].mxu0
        %v2100 = vadd.f32 0.0, %v2099
        %v2101 = vpop.f32.mrb[0].mxu0
        %2102 = vmatprep.mubr.bf16.mxu0 0
        %2103 = vmatmul.mubr.bf16.gmra.mrb[0].mxu0 %v1873
        %v2104 = vpop.f32.mrb[0].mxu0
        %v2105 = vadd.f32 0.0, %v2104
        %v2106 = vpop.f32.mrb[0].mxu0
        %v2107 = vpop.f32.mrb[0].mxu0
        %v2108 = vadd.f32 0.0, %v2107
        %v2109 = vpop.f32.mrb[0].mxu0
        %2110 = vmatprep.mubr.bf16.mxu0 0
        %2111 = vmatmul.mubr.bf16.gmra.mrb[0].mxu0 %v1876
        %v2112 = vpop.f32.mrb[0].mxu0
        %v2113 = vadd.f32 0.0, %v2112
        %v2114 = vpop.f32.mrb[0].mxu0
        %v2115 = vpop.f32.mrb[0].mxu0
        %v2116 = vadd.f32 0.0, %v2115
        %v2117 = vpop.f32.mrb[0].mxu0
        %2118 = vmatprep.mubr.bf16.mxu0 0
        %2119 = vmatmul.mubr.bf16.gmra.mrb[0].mxu0 %v1879
        %v2120 = vpop.f32.mrb[0].mxu0
        %v2121 = vadd.f32 0.0, %v2120
        %v2122 = vpop.f32.mrb[0].mxu0
        %v2123 = vpop.f32.mrb[0].mxu0
        %v2124 = vadd.f32 0.0, %v2123
        %v2125 = vpop.f32.mrb[0].mxu0
        %2126 = vmatprep.mubr.bf16.mxu0 0
        %2127 = vmatmul.mubr.bf16.gmra.mrb[0].mxu0 %v1852
        %v2128 = vpop.f32.mrb[0].mxu0
        %v2129 = vadd.f32 0.0, %v2128
        %v2130 = vpop.f32.mrb[0].mxu0
        %v2131 = vpop.f32.mrb[0].mxu0
        %v2132 = vadd.f32 0.0, %v2131
        %v2133 = vpop.f32.mrb[0].mxu0
        %2134 = vdwg.mxu0
        %2153 = vrot.lane.b32.xlu0 %v1919, 64
        %v2154 = vpop.permute.xlu0 %2153
        %2155 = vrot.lane.b32.xlu0 %v1924, 64
        %v2156 = vpop.permute.xlu0 %2155
        %2157 = vrot.lane.b32.xlu0 %v1928, 64
        %v2158 = vpop.permute.xlu0 %2157
        %2159 = vrot.lane.b32.xlu0 %v1934, 64
        %v2160 = vpop.permute.xlu0 %2159
        %2161 = vrot.lane.b32.xlu0 %v1938, 64
        %v2162 = vpop.permute.xlu0 %2161
        %2163 = vrot.lane.b32.xlu0 %v1944, 64
        %v2164 = vpop.permute.xlu0 %2163
        %2165 = vrot.lane.b32.xlu0 %v1948, 64
        %v2166 = vpop.permute.xlu0 %2165
        %2167 = vrot.lane.b32.xlu0 %v1954, 64
        %v2168 = vpop.permute.xlu0 %2167
        %2169 = vrot.lane.b32.xlu0 %v1958, 64
        %v2170 = vpop.permute.xlu0 %2169
        %2171 = vrot.lane.b32.xlu0 %v1964, 64
        %v2172 = vpop.permute.xlu0 %2171
        %2173 = vrot.lane.b32.xlu0 %v1968, 64
        %v2174 = vpop.permute.xlu0 %2173
        %2175 = vrot.lane.b32.xlu0 %v1974, 64
        %v2176 = vpop.permute.xlu0 %2175
        %2177 = vrot.lane.b32.xlu0 %v1978, 64
        %v2178 = vpop.permute.xlu0 %2177
        %2179 = vrot.lane.b32.xlu0 %v1984, 64
        %v2180 = vpop.permute.xlu0 %2179
        %2181 = vrot.lane.b32.xlu0 %v1988, 64
        %v2182 = vpop.permute.xlu0 %2181
        %2183 = vrot.lane.b32.xlu0 %v1994, 64
        %v2184 = vpop.permute.xlu0 %2183
        %2185 = vrot.lane.b32.xlu0 %v1998, 64
        %v2186 = vpop.permute.xlu0 %2185
        %2187 = vrot.lane.b32.xlu0 %v2004, 64
        %v2188 = vpop.permute.xlu0 %2187
        %v2207 = vadd.f32 %v1916, %v2154
        %v2208 = vadd.f32 %v1919, %v2156
        %v2209 = vadd.f32 %v1924, %v2158
        %v2210 = vadd.f32 %v1928, %v2160
        %v2211 = vadd.f32 %v1934, %v2162
        %v2212 = vadd.f32 %v1938, %v2164
        %v2213 = vadd.f32 %v1944, %v2166
        %v2214 = vadd.f32 %v1948, %v2168
        %v2215 = vadd.f32 %v1954, %v2170
        %v2216 = vadd.f32 %v1958, %v2172
        %v2217 = vadd.f32 %v1964, %v2174
        %v2218 = vadd.f32 %v1968, %v2176
        %v2219 = vadd.f32 %v1974, %v2178
        %v2220 = vadd.f32 %v1978, %v2180
        %v2221 = vadd.f32 %v1984, %v2182
        %v2222 = vadd.f32 %v1988, %v2184
        %v2223 = vadd.f32 %v1994, %v2186
        %v2224 = vadd.f32 %v1998, %v2188
        %v2225 = vadd.f32 %v2207, %v1926
        %v2226 = vadd.f32 %v2208, %v1930
        %v2227 = vadd.f32 %v2209, %v1936
        %v2228 = vadd.f32 %v2210, %v1940
        %v2229 = vadd.f32 %v2211, %v1946
        %v2230 = vadd.f32 %v2212, %v1950
        %v2231 = vadd.f32 %v2213, %v1956
        %v2232 = vadd.f32 %v2214, %v1960
        %v2233 = vadd.f32 %v2215, %v1966
        %v2234 = vadd.f32 %v2216, %v1970
        %v2235 = vadd.f32 %v2217, %v1976
        %v2236 = vadd.f32 %v2218, %v1980
        %v2237 = vadd.f32 %v2219, %v1986
        %v2238 = vadd.f32 %v2220, %v1990
        %v2239 = vadd.f32 %v2221, %v1996
        %v2240 = vadd.f32 %v2222, %v2000
        %v2241 = vadd.f32 %v2223, %v2006
        %v2242 = vadd.f32 %v2224, %v2009
        %2261 = vrot.lane.b32.xlu0 %v1930, 64
        %v2262 = vpop.permute.xlu0 %2261
        %2263 = vrot.lane.b32.xlu0 %v1936, 64
        %v2264 = vpop.permute.xlu0 %2263
        %2265 = vrot.lane.b32.xlu0 %v1940, 64
        %v2266 = vpop.permute.xlu0 %2265
        %2267 = vrot.lane.b32.xlu0 %v1946, 64
        %v2268 = vpop.permute.xlu0 %2267
        %2269 = vrot.lane.b32.xlu0 %v1950, 64
        %v2270 = vpop.permute.xlu0 %2269
        %2271 = vrot.lane.b32.xlu0 %v1956, 64
        %v2272 = vpop.permute.xlu0 %2271
        %2273 = vrot.lane.b32.xlu0 %v1960, 64
        %v2274 = vpop.permute.xlu0 %2273
        %2275 = vrot.lane.b32.xlu0 %v1966, 64
        %v2276 = vpop.permute.xlu0 %2275
        %2277 = vrot.lane.b32.xlu0 %v1970, 64
        %v2278 = vpop.permute.xlu0 %2277
        %2279 = vrot.lane.b32.xlu0 %v1976, 64
        %v2280 = vpop.permute.xlu0 %2279
        %2281 = vrot.lane.b32.xlu0 %v1980, 64
        %v2282 = vpop.permute.xlu0 %2281
        %2283 = vrot.lane.b32.xlu0 %v1986, 64
        %v2284 = vpop.permute.xlu0 %2283
        %2285 = vrot.lane.b32.xlu0 %v1990, 64
        %v2286 = vpop.permute.xlu0 %2285
        %2287 = vrot.lane.b32.xlu0 %v1996, 64
        %v2288 = vpop.permute.xlu0 %2287
        %2289 = vrot.lane.b32.xlu0 %v2000, 64
        %v2290 = vpop.permute.xlu0 %2289
        %2291 = vrot.lane.b32.xlu0 %v2006, 64
        %v2292 = vpop.permute.xlu0 %2291
        %2293 = vrot.lane.b32.xlu0 %v2009, 64
        %v2294 = vpop.permute.xlu0 %2293
        %2295 = vrot.lane.b32.xlu0 %v2014, 64
        %v2296 = vpop.permute.xlu0 %2295
        %v2315 = vadd.f32 %v2225, %v2262
        %v2316 = vadd.f32 %v2226, %v2264
        %v2317 = vadd.f32 %v2227, %v2266
        %v2318 = vadd.f32 %v2228, %v2268
        %v2319 = vadd.f32 %v2229, %v2270
        %v2320 = vadd.f32 %v2230, %v2272
        %v2321 = vadd.f32 %v2231, %v2274
        %v2322 = vadd.f32 %v2232, %v2276
        %v2323 = vadd.f32 %v2233, %v2278
        %v2324 = vadd.f32 %v2234, %v2280
        %v2325 = vadd.f32 %v2235, %v2282
        %v2326 = vadd.f32 %v2236, %v2284
        %v2327 = vadd.f32 %v2237, %v2286
        %v2328 = vadd.f32 %v2238, %v2288
        %v2329 = vadd.f32 %v2239, %v2290
        %v2330 = vadd.f32 %v2240, %v2292
        %v2331 = vadd.f32 %v2241, %v2294
        %v2332 = vadd.f32 %v2242, %v2296
        %v2333 = vadd.f32 %v2315, %v2065
        %v2334 = vadd.f32 %v2316, %v2068
        %v2335 = vadd.f32 %v2317, %v2073
        %v2336 = vadd.f32 %v2318, %v2076
        %v2337 = vadd.f32 %v2319, %v2081
        %v2338 = vadd.f32 %v2320, %v2084
        %v2339 = vadd.f32 %v2321, %v2089
        %v2340 = vadd.f32 %v2322, %v2092
        %v2341 = vadd.f32 %v2323, %v2097
        %v2342 = vadd.f32 %v2324, %v2100
        %v2343 = vadd.f32 %v2325, %v2105
        %v2344 = vadd.f32 %v2326, %v2108
        %v2345 = vadd.f32 %v2327, %v2113
        %v2346 = vadd.f32 %v2328, %v2116
        %v2347 = vadd.f32 %v2329, %v2121
        %v2348 = vadd.f32 %v2330, %v2124
        %v2349 = vadd.f32 %v2331, %v2129
        %v2350 = vadd.f32 %v2332, %v2132
        %v2351 = vld [vmem:[#allocation10] sm:$0x1]
        %v2353 = vlaneseq
        %v2354 = vshrl.u32 %v2353, 7
        %v2355 = vsub.s32 0, %v2354
        %v2356 = vrot.slane %v2351, %v2355
        %v2358 = vadd.f32 %v2333, %v2356
        %v2359 = vadd.f32 %v2334, %v2356
        %v2360 = vadd.f32 %v2335, %v2356
        %v2361 = vadd.f32 %v2336, %v2356
        %v2362 = vadd.f32 %v2337, %v2356
        %v2363 = vadd.f32 %v2338, %v2356
        %v2364 = vadd.f32 %v2339, %v2356
        %v2365 = vadd.f32 %v2340, %v2356
        %v2366 = vadd.f32 %v2341, %v2356
        %v2367 = vadd.f32 %v2342, %v2356
        %v2368 = vadd.f32 %v2343, %v2356
        %v2369 = vadd.f32 %v2344, %v2356
        %v2370 = vadd.f32 %v2345, %v2356
        %v2371 = vadd.f32 %v2346, %v2356
        %v2372 = vadd.f32 %v2347, %v2356
        %v2373 = vadd.f32 %v2348, %v2356
        %v2374 = vadd.f32 %v2349, %v2356
        %v2375 = vadd.f32 %v2350, %v2356
        %v2376 = vmax.f32 %v2358, 0.0
        %v2377 = vmax.f32 %v2359, 0.0
        %v2378 = vmax.f32 %v2360, 0.0
        %v2379 = vmax.f32 %v2361, 0.0
        %v2380 = vmax.f32 %v2362, 0.0
        %v2381 = vmax.f32 %v2363, 0.0
        %v2382 = vmax.f32 %v2364, 0.0
        %v2383 = vmax.f32 %v2365, 0.0
        %v2384 = vmax.f32 %v2366, 0.0
        %v2385 = vmax.f32 %v2367, 0.0
        %v2386 = vmax.f32 %v2368, 0.0
        %v2387 = vmax.f32 %v2369, 0.0
        %v2388 = vmax.f32 %v2370, 0.0
        %v2389 = vmax.f32 %v2371, 0.0
        %v2390 = vmax.f32 %v2372, 0.0
        %v2391 = vmax.f32 %v2373, 0.0
        %v2392 = vmax.f32 %v2374, 0.0
        %v2393 = vmax.f32 %v2375, 0.0
        %v2394 = vsel %vm1598, %v2376, -inf
        %v2395 = vsel %vm1598, %v2377, -inf
        %v2396 = vmax.f32 %v2394, %v2395
        %v2397 = vsel %vm1598, %v2378, -inf
        %v2398 = vmax.f32 %v2396, %v2397
        %v2399 = vsel %vm1598, %v2379, -inf
        %v2400 = vsel %vm1598, %v2380, -inf
        %v2401 = vmax.f32 %v2399, %v2400
        %v2402 = vsel %vm1598, %v2381, -inf
        %v2403 = vmax.f32 %v2401, %v2402
        %v2404 = vsel %vm1598, %v2382, -inf
        %v2405 = vsel %vm1598, %v2383, -inf
        %v2406 = vmax.f32 %v2404, %v2405
        %v2407 = vsel %vm1598, %v2384, -inf
        %v2408 = vmax.f32 %v2406, %v2407
        %v2409 = vsel %vm1598, %v2385, -inf
        %v2410 = vsel %vm1598, %v2386, -inf
        %v2411 = vmax.f32 %v2409, %v2410
        %v2412 = vsel %vm1598, %v2387, -inf
        %v2413 = vmax.f32 %v2411, %v2412
        %v2414 = vsel %vm1598, %v2388, -inf
        %v2415 = vsel %vm1598, %v2389, -inf
        %v2416 = vmax.f32 %v2414, %v2415
        %v2417 = vsel %vm1598, %v2390, -inf
        %v2418 = vmax.f32 %v2416, %v2417
        %v2419 = vsel %vm1598, %v2391, -inf
        %v2420 = vsel %vm1598, %v2392, -inf
        %v2421 = vmax.f32 %v2419, %v2420
        %v2422 = vsel %vm1598, %v2393, -inf
        %v2423 = vmax.f32 %v2421, %v2422
        %v2424 = vpack.c.bf16 %v2398, 0.0
        %v2425 = vpack.c.bf16 %v2408, %v2403
        %v2426 = vpack.c.bf16 %v2418, %v2413
        %v2427 = vpack.c.bf16 0.0, %v2423
        %v2428 = vld [vmem:[#allocation11] sm:$0xff]
        %v2429 = vld [vmem:[#allocation11 + $0x8] sm:$0xff]
        %v2430 = vld [vmem:[#allocation11 + $0x10] sm:$0xff]
        %v2431 = vld [vmem:[#allocation11 + $0x18] sm:$0xff]
        %v2432 = vld [vmem:[#allocation11 + $0x20] sm:$0xff]
        %v2433 = vld [vmem:[#allocation11 + $0x28] sm:$0xff]
        %v2434 = vld [vmem:[#allocation11 + $0x30] sm:$0xff]
        %v2435 = vld [vmem:[#allocation11 + $0x38] sm:$0xff]
        %v2444 = vunpack.c.l.b16 %v2428
        %v2445 = vunpack.c.h.b16 %v2428
        %v2446 = vunpack.c.l.b16 %v2429
        %v2447 = vunpack.c.h.b16 %v2429
        %v2448 = vunpack.c.l.b16 %v2430
        %v2449 = vunpack.c.h.b16 %v2430
        %v2450 = vunpack.c.l.b16 %v2431
        %v2451 = vunpack.c.h.b16 %v2431
        %v2452 = vunpack.c.l.b16 %v2432
        %v2453 = vunpack.c.h.b16 %v2432
        %v2454 = vunpack.c.l.b16 %v2433
        %v2455 = vunpack.c.h.b16 %v2433
        %v2456 = vunpack.c.l.b16 %v2434
        %v2457 = vunpack.c.h.b16 %v2434
        %v2458 = vunpack.c.l.b16 %v2435
        %v2459 = vunpack.c.h.b16 %v2435
        %v2460 = vpack.c.b16 %v2446, %v2444
        %v2461 = vpack.c.b16 %v2447, %v2445
        %v2462 = vpack.c.b16 %v2450, %v2448
        %v2463 = vpack.c.b16 %v2451, %v2449
        %v2464 = vpack.c.b16 %v2454, %v2452
        %v2465 = vpack.c.b16 %v2455, %v2453
        %v2466 = vpack.c.b16 %v2458, %v2456
        %v2467 = vpack.c.b16 %v2459, %v2457
        %v2477 = vsel %vm1598, %v2424, 0
        %v2480 = vsel %vm1598, %v2425, 0
        %v2483 = vsel %vm1598, %v2426, 0
        %v2486 = vsel %vm1598, %v2427, 0
        %2488 = vmatprep.subr.bf16.mxu0 %v2461
        %2489 = vmatpush1.bf16.msra.mxu0 %v2460
        %2490 = vmatprep.subr.bf16.mxu0 %v2463
        %2491 = vmatpush1.bf16.msra.mxu0 %v2462
        %2492 = vmatprep.subr.bf16.mxu0 %v2465
        %2493 = vmatpush1.bf16.msra.mxu0 %v2464
        %2494 = vmatprep.subr.bf16.mxu0 %v2467
        %2495 = vmatpush1.bf16.msra.mxu0 %v2466
        %2496 = vmatprep.subr.bf16.mxu0 0
        %2497 = vmatpush1.bf16.msra.mxu0 0
        %2498 = vmatprep.subr.bf16.mxu0 0
        %2499 = vmatpush1.bf16.msra.mxu0 0
        %2500 = vmatprep.subr.bf16.mxu0 0
        %2501 = vmatpush1.bf16.msra.mxu0 0
        %2502 = vmatprep.subr.bf16.mxu0 0
        %2503 = vmatpush1.bf16.msra.mxu0 0
        %2504 = vmatprep.subr.bf16.mxu0 0
        %2505 = vmatpush1.bf16.msra.mxu0 0
        %2506 = vmatprep.subr.bf16.mxu0 0
        %2507 = vmatpush1.bf16.msra.mxu0 0
        %2508 = vmatprep.subr.bf16.mxu0 0
        %2509 = vmatpush1.bf16.msra.mxu0 0
        %2510 = vmatprep.subr.bf16.mxu0 0
        %2511 = vmatpush1.bf16.msra.mxu0 0
        %2512 = vmatprep.subr.bf16.mxu0 0
        %2513 = vmatpush1.bf16.msra.mxu0 0
        %2514 = vmatprep.subr.bf16.mxu0 0
        %2515 = vmatpush1.bf16.msra.mxu0 0
        %2516 = vmatprep.subr.bf16.mxu0 0
        %2517 = vmatpush1.bf16.msra.mxu0 0
        %2518 = vmatprep.subr.bf16.mxu0 0
        %2519 = vmatpush1.bf16.msra.mxu0 0
        %2520 = vmatprep.mubr.bf16.mxu0 0
        %2521 = vmatmul.mubr.bf16.gmra.mrb[0].mxu0 %v2477
        %v2522 = vpop.f32.mrb[0].mxu0
        %v2523 = vadd.f32 0.0, %v2522
        %v2524 = vpop.f32.mrb[0].mxu0
        %v2525 = vpop.f32.mrb[0].mxu0
        %v2526 = vadd.f32 0.0, %v2525
        %v2527 = vpop.f32.mrb[0].mxu0
        %2528 = vmatprep.mubr.bf16.mxu0 0
        %2529 = vmatmul.mubr.bf16.gmra.mrb[0].mxu0 %v2480
        %v2530 = vpop.f32.mrb[0].mxu0
        %v2531 = vadd.f32 0.0, %v2530
        %v2532 = vpop.f32.mrb[0].mxu0
        %v2533 = vadd.f32 0.0, %v2532
        %v2534 = vpop.f32.mrb[0].mxu0
        %v2535 = vadd.f32 0.0, %v2534
        %v2536 = vpop.f32.mrb[0].mxu0
        %v2537 = vadd.f32 0.0, %v2536
        %2538 = vmatprep.mubr.bf16.mxu0 0
        %2539 = vmatmul.mubr.bf16.gmra.mrb[0].mxu0 %v2483
        %v2540 = vpop.f32.mrb[0].mxu0
        %v2541 = vadd.f32 0.0, %v2540
        %v2542 = vpop.f32.mrb[0].mxu0
        %v2543 = vadd.f32 0.0, %v2542
        %v2544 = vpop.f32.mrb[0].mxu0
        %v2545 = vadd.f32 0.0, %v2544
        %v2546 = vpop.f32.mrb[0].mxu0
        %v2547 = vadd.f32 0.0, %v2546
        %2548 = vmatprep.mubr.bf16.mxu0 0
        %2549 = vmatmul.mubr.bf16.gmra.mrb[0].mxu0 %v2486
        %v2550 = vpop.f32.mrb[0].mxu0
        %v2551 = vadd.f32 0.0, %v2550
        %v2552 = vpop.f32.mrb[0].mxu0
        %v2553 = vadd.f32 0.0, %v2552
        %v2554 = vpop.f32.mrb[0].mxu0
        %v2555 = vpop.f32.mrb[0].mxu0
        %v2556 = vadd.f32 0.0, %v2555
        %2557 = vdwg.mxu0
        %2564 = vrot.lane.b32.xlu0 %v2526, 64
        %v2565 = vpop.permute.xlu0 %2564
        %2566 = vrot.lane.b32.xlu0 %v2531, 64
        %v2567 = vpop.permute.xlu0 %2566
        %2568 = vrot.lane.b32.xlu0 %v2535, 64
        %v2569 = vpop.permute.xlu0 %2568
        %2570 = vrot.lane.b32.xlu0 %v2541, 64
        %v2571 = vpop.permute.xlu0 %2570
        %2572 = vrot.lane.b32.xlu0 %v2545, 64
        %v2573 = vpop.permute.xlu0 %2572
        %2574 = vrot.lane.b32.xlu0 %v2551, 64
        %v2575 = vpop.permute.xlu0 %2574
        %v2582 = vadd.f32 %v2523, %v2565
        %v2583 = vadd.f32 %v2526, %v2567
        %v2584 = vadd.f32 %v2531, %v2569
        %v2585 = vadd.f32 %v2535, %v2571
        %v2586 = vadd.f32 %v2541, %v2573
        %v2587 = vadd.f32 %v2545, %v2575
        %v2588 = vadd.f32 %v2582, %v2533
        %v2589 = vadd.f32 %v2583, %v2537
        %v2590 = vadd.f32 %v2584, %v2543
        %v2591 = vadd.f32 %v2585, %v2547
        %v2592 = vadd.f32 %v2586, %v2553
        %v2593 = vadd.f32 %v2587, %v2556
        %v2594 = vld [vmem:[#allocation13] sm:$0x1]
        %v2596 = vlaneseq
        %v2597 = vshrl.u32 %v2596, 7
        %v2598 = vsub.s32 0, %v2597
        %v2599 = vrot.slane %v2594, %v2598
        %v2601 = vadd.f32 %v2588, %v2599
        %v2602 = vadd.f32 %v2589, %v2599
        %v2603 = vadd.f32 %v2590, %v2599
        %v2604 = vadd.f32 %v2591, %v2599
        %v2605 = vadd.f32 %v2592, %v2599
        %v2606 = vadd.f32 %v2593, %v2599
        %v2607 = vmax.f32 %v2601, 0.0
        %v2608 = vmax.f32 %v2602, 0.0
        %v2609 = vmax.f32 %v2603, 0.0
        %v2610 = vmax.f32 %v2604, 0.0
        %v2611 = vmax.f32 %v2605, 0.0
        %v2612 = vmax.f32 %v2606, 0.0
        %v2613 = vsel %vm1598, %v2607, -inf
        %v2614 = vsel %vm1598, %v2608, -inf
        %v2615 = vsel %vm1598, %v2609, -inf
        %v2616 = vmax.f32 %v2613, %v2615
        %v2617 = vmax.f32 %v2616, %v2614
        %v2618 = vsel %vm1598, %v2610, -inf
        %v2619 = vsel %vm1598, %v2611, -inf
        %v2620 = vsel %vm1598, %v2612, -inf
        %v2621 = vmax.f32 %v2618, %v2620
        %v2622 = vmax.f32 %v2621, %v2619
        %v2623 = vpack.c.bf16 %v2617, 0.0
        %v2624 = vpack.c.bf16 0.0, %v2622
        %v2625 = vld [vmem:[#allocation14] sm:$0xff]
        %v2626 = vld [vmem:[#allocation14 + $0x8] sm:$0xff]
        %v2627 = vld [vmem:[#allocation14 + $0x10] sm:$0xff]
        %v2628 = vld [vmem:[#allocation14 + $0x18] sm:$0xff]
        %v2629 = vld [vmem:[#allocation14 + $0x20] sm:$0xff]
        %v2630 = vld [vmem:[#allocation14 + $0x28] sm:$0xff]
        %v2631 = vld [vmem:[#allocation14 + $0x30] sm:$0xff]
        %v2632 = vld [vmem:[#allocation14 + $0x38] sm:$0xff]
        %v2641 = vunpack.c.l.b16 %v2625
        %v2642 = vunpack.c.h.b16 %v2625
        %v2643 = vunpack.c.l.b16 %v2626
        %v2644 = vunpack.c.h.b16 %v2626
        %v2645 = vunpack.c.l.b16 %v2627
        %v2646 = vunpack.c.h.b16 %v2627
        %v2647 = vunpack.c.l.b16 %v2628
        %v2648 = vunpack.c.h.b16 %v2628
        %v2649 = vunpack.c.l.b16 %v2629
        %v2650 = vunpack.c.h.b16 %v2629
        %v2651 = vunpack.c.l.b16 %v2630
        %v2652 = vunpack.c.h.b16 %v2630
        %v2653 = vunpack.c.l.b16 %v2631
        %v2654 = vunpack.c.h.b16 %v2631
        %v2655 = vunpack.c.l.b16 %v2632
        %v2656 = vunpack.c.h.b16 %v2632
        %v2657 = vpack.c.b16 %v2643, %v2641
        %v2658 = vpack.c.b16 %v2644, %v2642
        %v2659 = vpack.c.b16 %v2647, %v2645
        %v2660 = vpack.c.b16 %v2648, %v2646
        %v2661 = vpack.c.b16 %v2651, %v2649
        %v2662 = vpack.c.b16 %v2652, %v2650
        %v2663 = vpack.c.b16 %v2655, %v2653
        %v2664 = vpack.c.b16 %v2656, %v2654
        %v2674 = vsel %vm1598, %v2623, 0
        %v2677 = vsel %vm1598, %v2624, 0
        %2679 = vmatprep.subr.bf16.mxu0 %v2658
        %2680 = vmatpush1.bf16.msra.mxu0 %v2657
        %2681 = vmatprep.subr.bf16.mxu0 %v2660
        %2682 = vmatpush1.bf16.msra.mxu0 %v2659
        %2683 = vmatprep.subr.bf16.mxu0 %v2662
        %2684 = vmatpush1.bf16.msra.mxu0 %v2661
        %2685 = vmatprep.subr.bf16.mxu0 %v2664
        %2686 = vmatpush1.bf16.msra.mxu0 %v2663
        %2687 = vmatprep.subr.bf16.mxu0 0
        %2688 = vmatpush1.bf16.msra.mxu0 0
        %2689 = vmatprep.subr.bf16.mxu0 0
        %2690 = vmatpush1.bf16.msra.mxu0 0
        %2691 = vmatprep.subr.bf16.mxu0 0
        %2692 = vmatpush1.bf16.msra.mxu0 0
        %2693 = vmatprep.subr.bf16.mxu0 0
        %2694 = vmatpush1.bf16.msra.mxu0 0
        %2695 = vmatprep.subr.bf16.mxu0 0
        %2696 = vmatpush1.bf16.msra.mxu0 0
        %2697 = vmatprep.subr.bf16.mxu0 0
        %2698 = vmatpush1.bf16.msra.mxu0 0
        %2699 = vmatprep.subr.bf16.mxu0 0
        %2700 = vmatpush1.bf16.msra.mxu0 0
        %2701 = vmatprep.subr.bf16.mxu0 0
        %2702 = vmatpush1.bf16.msra.mxu0 0
        %2703 = vmatprep.subr.bf16.mxu0 0
        %2704 = vmatpush1.bf16.msra.mxu0 0
        %2705 = vmatprep.subr.bf16.mxu0 0
        %2706 = vmatpush1.bf16.msra.mxu0 0
        %2707 = vmatprep.subr.bf16.mxu0 0
        %2708 = vmatpush1.bf16.msra.mxu0 0
        %2709 = vmatprep.subr.bf16.mxu0 0
        %2710 = vmatpush1.bf16.msra.mxu0 0
        %2711 = vmatprep.mubr.bf16.mxu0 0
        %2712 = vmatmul.mubr.bf16.gmra.mrb[0].mxu0 %v2674
        %v2713 = vpop.f32.mrb[0].mxu0
        %v2714 = vadd.f32 0.0, %v2713
        %v2715 = vpop.f32.mrb[0].mxu0
        %v2716 = vpop.f32.mrb[0].mxu0
        %v2717 = vadd.f32 0.0, %v2716
        %v2718 = vpop.f32.mrb[0].mxu0
        %2719 = vmatprep.mubr.bf16.mxu0 0
        %2720 = vmatmul.mubr.bf16.gmra.mrb[0].mxu0 %v2677
        %v2721 = vpop.f32.mrb[0].mxu0
        %v2722 = vadd.f32 0.0, %v2721
        %v2723 = vpop.f32.mrb[0].mxu0
        %v2724 = vadd.f32 0.0, %v2723
        %v2725 = vpop.f32.mrb[0].mxu0
        %v2726 = vpop.f32.mrb[0].mxu0
        %v2727 = vadd.f32 0.0, %v2726
        %2728 = vdwg.mxu0
        %2731 = vrot.lane.b32.xlu0 %v2717, 64
        %v2732 = vpop.permute.xlu0 %2731
        %2733 = vrot.lane.b32.xlu0 %v2722, 64
        %v2734 = vpop.permute.xlu0 %2733
        %v2737 = vadd.f32 %v2714, %v2732
        %v2738 = vadd.f32 %v2717, %v2734
        %v2739 = vadd.f32 %v2737, %v2724
        %v2740 = vadd.f32 %v2738, %v2727
        %v2741 = vld [vmem:[#allocation16] sm:$0x1]
        %v2743 = vlaneseq
        %v2744 = vshrl.u32 %v2743, 7
        %v2745 = vsub.s32 0, %v2744
        %v2746 = vrot.slane %v2741, %v2745
        %v2748 = vadd.f32 %v2739, %v2746
        %v2749 = vadd.f32 %v2740, %v2746
        %v2750 = vmax.f32 %v2748, 0.0
        %v2751 = vmax.f32 %v2749, 0.0
        %v2752 = vpack.c.bf16 %v2750, %v2750
        %v2753 = vld [vmem:[#allocation17] sm:$0xf]
        %v2754 = vld [vmem:[#allocation17 + $0x4] sm:$0xf]
        %v2755 = vld [vmem:[#allocation17 + $0x8] sm:$0xf]
        %v2756 = vld [vmem:[#allocation17 + $0xc] sm:$0xf]
        %v2757 = vld [vmem:[#allocation17 + $0x10] sm:$0xf]
        %v2758 = vld [vmem:[#allocation17 + $0x14] sm:$0xf]
        %v2759 = vld [vmem:[#allocation17 + $0x18] sm:$0xf]
        %v2760 = vld [vmem:[#allocation17 + $0x1c] sm:$0xf]
        %v2761 = vpack.c.bf16 %v2751, %v2751
        %s2762 = scalar_lea.vmem [#allocation17], 32
        %v2763 = vld [vmem:[%s2762] sm:$0xf]
        %v2764 = vld [vmem:[%s2762 + $0x4] sm:$0xf]
        %v2765 = vld [vmem:[%s2762 + $0x8] sm:$0xf]
        %v2766 = vld [vmem:[%s2762 + $0xc] sm:$0xf]
        %v2767 = vld [vmem:[%s2762 + $0x10] sm:$0xf]
        %v2768 = vld [vmem:[%s2762 + $0x14] sm:$0xf]
        %v2769 = vld [vmem:[%s2762 + $0x18] sm:$0xf]
        %v2770 = vld [vmem:[%s2762 + $0x1c] sm:$0xf]
        %v2779 = vunpack.c.l.b16 %v2763
        %v2780 = vunpack.c.l.b16 %v2764
        %v2781 = vunpack.c.l.b16 %v2765
        %v2782 = vunpack.c.l.b16 %v2766
        %v2783 = vunpack.c.l.b16 %v2767
        %v2784 = vunpack.c.l.b16 %v2768
        %v2785 = vunpack.c.l.b16 %v2769
        %v2786 = vunpack.c.l.b16 %v2770
        %v2787 = vpack.c.b16 %v2780, %v2779
        %v2788 = vpack.c.b16 %v2782, %v2781
        %v2789 = vpack.c.b16 %v2784, %v2783
        %v2790 = vpack.c.b16 %v2786, %v2785
        %v2796 = vsel %vm1598, %v2761, 0
        %2798 = vmatprep.subr.bf16.mxu0 0
        %2799 = vmatpush1.bf16.msra.mxu0 %v2787
        %2800 = vmatprep.subr.bf16.mxu0 0
        %2801 = vmatpush1.bf16.msra.mxu0 %v2788
        %2802 = vmatprep.subr.bf16.mxu0 0
        %2803 = vmatpush1.bf16.msra.mxu0 %v2789
        %2804 = vmatprep.subr.bf16.mxu0 0
        %2805 = vmatpush1.bf16.msra.mxu0 %v2790
        %2806 = vmatprep.subr.bf16.mxu0 0
        %2807 = vmatpush1.bf16.msra.mxu0 0
        %2808 = vmatprep.subr.bf16.mxu0 0
        %2809 = vmatpush1.bf16.msra.mxu0 0
        %2810 = vmatprep.subr.bf16.mxu0 0
        %2811 = vmatpush1.bf16.msra.mxu0 0
        %2812 = vmatprep.subr.bf16.mxu0 0
        %2813 = vmatpush1.bf16.msra.mxu0 0
        %2814 = vmatprep.subr.bf16.mxu0 0
        %2815 = vmatpush1.bf16.msra.mxu0 0
        %2816 = vmatprep.subr.bf16.mxu0 0
        %2817 = vmatpush1.bf16.msra.mxu0 0
        %2818 = vmatprep.subr.bf16.mxu0 0
        %2819 = vmatpush1.bf16.msra.mxu0 0
        %2820 = vmatprep.subr.bf16.mxu0 0
        %2821 = vmatpush1.bf16.msra.mxu0 0
        %2822 = vmatprep.subr.bf16.mxu0 0
        %2823 = vmatpush1.bf16.msra.mxu0 0
        %2824 = vmatprep.subr.bf16.mxu0 0
        %2825 = vmatpush1.bf16.msra.mxu0 0
        %2826 = vmatprep.subr.bf16.mxu0 0
        %2827 = vmatpush1.bf16.msra.mxu0 0
        %2828 = vmatprep.subr.bf16.mxu0 0
        %2829 = vmatpush1.bf16.msra.mxu0 0
        %2830 = vmatprep.mubr.bf16.mxu0 0
        %2831 = vmatmul.mubr.bf16.gmra.mrb[0].mxu0 %v2796
        %v2832 = vpop.f32.mrb[0].mxu0
        %v2833 = vadd.f32 0.0, %v2832
        %v2834 = vpop.f32.mrb[0].mxu0
        %v2835 = vpop.f32.mrb[0].mxu0
        %v2836 = vpop.f32.mrb[0].mxu0
        %2837 = vdwg.mxu0
        %v2846 = vunpack.c.l.b16 %v2753
        %v2847 = vunpack.c.l.b16 %v2754
        %v2848 = vunpack.c.l.b16 %v2755
        %v2849 = vunpack.c.l.b16 %v2756
        %v2850 = vunpack.c.l.b16 %v2757
        %v2851 = vunpack.c.l.b16 %v2758
        %v2852 = vunpack.c.l.b16 %v2759
        %v2853 = vunpack.c.l.b16 %v2760
        %v2854 = vpack.c.b16 %v2847, %v2846
        %v2855 = vpack.c.b16 %v2849, %v2848
        %v2856 = vpack.c.b16 %v2851, %v2850
        %v2857 = vpack.c.b16 %v2853, %v2852
        %v2863 = vsel %vm1598, %v2752, 0
        %2865 = vmatprep.subr.bf16.mxu0 0
        %2866 = vmatpush1.bf16.msra.mxu0 %v2854
        %2867 = vmatprep.subr.bf16.mxu0 0
        %2868 = vmatpush1.bf16.msra.mxu0 %v2855
        %2869 = vmatprep.subr.bf16.mxu0 0
        %2870 = vmatpush1.bf16.msra.mxu0 %v2856
        %2871 = vmatprep.subr.bf16.mxu0 0
        %2872 = vmatpush1.bf16.msra.mxu0 %v2857
        %2873 = vmatprep.subr.bf16.mxu0 0
        %2874 = vmatpush1.bf16.msra.mxu0 0
        %2875 = vmatprep.subr.bf16.mxu0 0
        %2876 = vmatpush1.bf16.msra.mxu0 0
        %2877 = vmatprep.subr.bf16.mxu0 0
        %2878 = vmatpush1.bf16.msra.mxu0 0
        %2879 = vmatprep.subr.bf16.mxu0 0
        %2880 = vmatpush1.bf16.msra.mxu0 0
        %2881 = vmatprep.subr.bf16.mxu0 0
        %2882 = vmatpush1.bf16.msra.mxu0 0
        %2883 = vmatprep.subr.bf16.mxu0 0
        %2884 = vmatpush1.bf16.msra.mxu0 0
        %2885 = vmatprep.subr.bf16.mxu0 0
        %2886 = vmatpush1.bf16.msra.mxu0 0
        %2887 = vmatprep.subr.bf16.mxu0 0
        %2888 = vmatpush1.bf16.msra.mxu0 0
        %2889 = vmatprep.subr.bf16.mxu0 0
        %2890 = vmatpush1.bf16.msra.mxu0 0
        %2891 = vmatprep.subr.bf16.mxu0 0
        %2892 = vmatpush1.bf16.msra.mxu0 0
        %2893 = vmatprep.subr.bf16.mxu0 0
        %2894 = vmatpush1.bf16.msra.mxu0 0
        %2895 = vmatprep.subr.bf16.mxu0 0
        %2896 = vmatpush1.bf16.msra.mxu0 0
        %2897 = vmatprep.mubr.bf16.mxu0 0
        %2898 = vmatmul.mubr.bf16.gmra.mrb[0].mxu0 %v2863
        %v2899 = vpop.f32.mrb[0].mxu0
        %v2900 = vadd.f32 %v2833, %v2899
        %v2901 = vpop.f32.mrb[0].mxu0
        %v2902 = vpop.f32.mrb[0].mxu0
        %v2903 = vpop.f32.mrb[0].mxu0
        %2904 = vdwg.mxu0
        %v2905 = vld [vmem:[#allocation19] sm:$0x1]
        %v2907 = vlaneseq
        %v2908 = vshrl.u32 %v2907, 7
        %v2909 = vsub.s32 0, %v2908
        %v2910 = vrot.slane %v2905, %v2909
        %v2912 = vadd.f32 %v2900, %v2910
        %v2913 = vmax.f32 %v2912, 0.0
        %v2914 = vld [vmem:[#allocation20] sm:$0xff]
        %v2915 = vld [vmem:[#allocation20 + $0x8] sm:$0xff]
        %v2916 = vld [vmem:[#allocation20 + $0x10] sm:$0xff]
        %v2917 = vld [vmem:[#allocation20 + $0x18] sm:$0xff]
        %v2918 = vld [vmem:[#allocation20 + $0x20] sm:$0xff]
        %v2919 = vld [vmem:[#allocation20 + $0x28] sm:$0xff]
        %v2920 = vld [vmem:[#allocation20 + $0x30] sm:$0xff]
        %v2921 = vld [vmem:[#allocation20 + $0x38] sm:$0xff]
        %v2922 = vld [vmem:[#allocation22] sm:$0x1]
        %v2924 = vlaneseq
        %v2925 = vshrl.u32 %v2924, 7
        %v2926 = vsub.s32 0, %v2925
        %v2927 = vrot.slane %v2922, %v2926
        %v2930 = vsel %vm1598, %v2913, 0
        %2932 = vmatprep.subr.mxu0 0.0
        %2933 = vmatpush1.msra.mxu0 %v2914
        %2934 = vmatprep.subr.mxu0 0.0
        %2935 = vmatpush1.msra.mxu0 %v2915
        %2936 = vmatprep.subr.mxu0 0.0
        %2937 = vmatpush1.msra.mxu0 %v2916
        %2938 = vmatprep.subr.mxu0 0.0
        %2939 = vmatpush1.msra.mxu0 %v2917
        %2940 = vmatprep.subr.mxu0 0.0
        %2941 = vmatpush1.msra.mxu0 %v2918
        %2942 = vmatprep.subr.mxu0 0.0
        %2943 = vmatpush1.msra.mxu0 %v2919
        %2944 = vmatprep.subr.mxu0 0.0
        %2945 = vmatpush1.msra.mxu0 %v2920
        %2946 = vmatprep.subr.mxu0 0.0
        %2947 = vmatpush1.msra.mxu0 %v2921
        %2948 = vmatprep.subr.mxu0 0.0
        %2949 = vmatpush1.msra.mxu0 0.0
        %2950 = vmatprep.subr.mxu0 0.0
        %2951 = vmatpush1.msra.mxu0 0.0
        %2952 = vmatprep.subr.mxu0 0.0
        %2953 = vmatpush1.msra.mxu0 0.0
        %2954 = vmatprep.subr.mxu0 0.0
        %2955 = vmatpush1.msra.mxu0 0.0
        %2956 = vmatprep.subr.mxu0 0.0
        %2957 = vmatpush1.msra.mxu0 0.0
        %2958 = vmatprep.subr.mxu0 0.0
        %2959 = vmatpush1.msra.mxu0 0.0
        %2960 = vmatprep.subr.mxu0 0.0
        %2961 = vmatpush1.msra.mxu0 0.0
        %2962 = vmatprep.subr.mxu0 0.0
        %2963 = vmatpush1.msra.mxu0 0.0
        %2964 = vmatprep.subr.mxu0 0.0
        %2965 = vmatpush1.msra.mxu0 0.0
        %2966 = vmatprep.subr.mxu0 0.0
        %2967 = vmatpush1.msra.mxu0 0.0
        %2968 = vmatprep.subr.mxu0 0.0
        %2969 = vmatpush1.msra.mxu0 0.0
        %2970 = vmatprep.subr.mxu0 0.0
        %2971 = vmatpush1.msra.mxu0 0.0
        %2972 = vmatprep.subr.mxu0 0.0
        %2973 = vmatpush1.msra.mxu0 0.0
        %2974 = vmatprep.subr.mxu0 0.0
        %2975 = vmatpush1.msra.mxu0 0.0
        %2976 = vmatprep.subr.mxu0 0.0
        %2977 = vmatpush1.msra.mxu0 0.0
        %2978 = vmatprep.subr.mxu0 0.0
        %2979 = vmatpush1.msra.mxu0 0.0
        %2980 = vmatprep.subr.mxu0 0.0
        %2981 = vmatpush1.msra.mxu0 0.0
        %2982 = vmatprep.subr.mxu0 0.0
        %2983 = vmatpush1.msra.mxu0 0.0
        %2984 = vmatprep.subr.mxu0 0.0
        %2985 = vmatpush1.msra.mxu0 0.0
        %2986 = vmatprep.subr.mxu0 0.0
        %2987 = vmatpush1.msra.mxu0 0.0
        %2988 = vmatprep.subr.mxu0 0.0
        %2989 = vmatpush1.msra.mxu0 0.0
        %2990 = vmatprep.subr.mxu0 0.0
        %2991 = vmatpush1.msra.mxu0 0.0
        %2992 = vmatprep.subr.mxu0 0.0
        %2993 = vmatpush1.msra.mxu0 0.0
        %2994 = vmatprep.subr.mxu0 0.0
        %2995 = vmatpush1.msra.mxu0 0.0
        %2996 = vmatprep.mubr.f32.mxu0 0.0
        %2997 = vmatmul.mubr.f32.gmra.mrb[0].mxu0 %v2930
        %v2998 = vpop.f32.mrb[0].mxu0
        %v2999 = vadd.f32 %v2927, %v2998
        %v3000 = vpop.f32.mrb[0].mxu0
        %3001 = vdwg.mxu0
        %vm3002 = vcmask 39936
        %3003 = vst.msk [vmem:[%s620] sm:$0xff] %vm3002, %v2999
        %s3004 = sand.u32 %s322, 1
        %s3005 = scalar_lea.sflag [#allocation4], %s3004
        %s3006 = sand.u32 %s322, 1
        %s3007 = smul.addr %s3006, 8
        %s3008 = scalar_lea.vmem [#allocation23], %s3007
        // Predicated region
        $region125: #{tpu_custom_call.1} parent=71 // pred_check
          %p3009 = pneg %p332
        $region126: #{tpu_custom_call.1} parent=71 // pred_check_branch
          %3011 = sbr.rel (%p3009) target = $region128
        $region127: #{tpu_custom_call.1} parent=71 // pred_region
          %s3013 = ssub.s32 128, 128
          %3014 = vsyncadd %s3005, %s3013
          %s3015 = smul.addr %s36, 128
          %s3016 = scalar_lea.hbm %s13, %s3015
          %s3018 = sshll.u32 %s3008, 4
          %s3019 = int_to_ptr.vmem [resolvable:$true] %s3018
          %3021 = dma.vmem_to_hbm [thread:$0]  %s3019, 128, %s3016, %s3005
        $region128: #{tpu_custom_call.1} parent=71 // pred_fallthru
          _
      $region72: #{tpu_custom_call.1} parent=5 // pred_fallthru
        _
      %p3022 = scmp.le.s32.totalorder 2, %s31
      // Predicated region
      $region129: #{tpu_custom_call.1} parent=5 // pred_check
        %p3023 = pneg %p3022
      $region130: #{tpu_custom_call.1} parent=5 // pred_check_branch
        %3025 = sbr.rel (%p3023) target = $region132
      $region131: #{tpu_custom_call.1} parent=5 // pred_region
        %s3026 = ssub.s32 %s31, 2
        // Predicated region
        $region133: #{tpu_custom_call.1} parent=131 // pred_check
          %p3027 = pneg %p338
        $region134: #{tpu_custom_call.1} parent=131 // pred_check_branch
          %3029 = sbr.rel (%p3027) target = $region136
        $region135: #{tpu_custom_call.1} parent=131 // pred_region
          %s3030 = sand.u32 %s323, 1
          %s3031 = scalar_lea.sflag [#allocation4], %s3030
          %s3032 = sand.u32 %s323, 1
          %s3033 = smul.addr %s3032, 8
          %s3034 = scalar_lea.vmem [#allocation23], %s3033
          %3035 = dma.done %s3031, 128
        $region136: #{tpu_custom_call.1} parent=131 // pred_fallthru
          _
      $region132: #{tpu_custom_call.1} parent=5 // pred_fallthru
        _
    $region6: #{tpu_custom_call.1} parent=1 // loop_footer
      %s35 = sadd.s32 1, %s31
    $region7: #{tpu_custom_call.1} parent=1 // loop_footer_branch
      %30 = sbr.rel target = $region3
    $region8: #{tpu_custom_call.1} parent=1 // loop_exit
      _
    %3036 = vsyncpa [#allocation3], 1
    %s3037 = scalar_lea.sflag [#allocation3], 1
    %3038 = vsyncpa %s3037, 1
    %3039 = vsyncpa [#allocation6], 1
    %3040 = vsyncpa [#allocation9], 1
    %3041 = vsyncpa [#allocation12], 1
    %3042 = vsyncpa [#allocation15], 1
    %3043 = vsyncpa [#allocation18], 1
    %3044 = vsyncpa [#allocation21], 1
    %3045 = vsyncpa [#allocation4], 1
    %s3046 = scalar_lea.sflag [#allocation4], 1
    %3047 = vsyncpa %s3046, 1

</llo_original>
